<compile_context>
chip_gen: v6e
topology: v6e:2x2x1
jax: 0.10.0
libtpu: 0.0.40
codegen_flags: <defaults>
</compile_context>

<pallas_src>
import functools

import jax
import jax.numpy as jnp
from jax import lax
from jax.experimental import pallas as pl
from jax.experimental.pallas import tpu as pltpu


def _round_up(n, m):
    return ((n + m - 1) // m) * m


# ----------------------------------------------------------------------------
# Kernel 1: GCNConv (rank-1 weight) + ReLU over a dense bf16 (A + I).
#   out = relu(dinv_row * (A @ (dinv * x)) * w + b)
# K-tiled matvec: grid = (rows/tm, cols/tk), f32 accumulator scratch.
# ----------------------------------------------------------------------------
def gcn_relu_kernel(a_ref, xs_ref, dinv_ref, w_ref, b_ref, out_ref, acc_ref):
    k = pl.program_id(1)

    @pl.when(k == 0)
    def _():
        acc_ref[...] = jnp.zeros_like(acc_ref)

    # [tm, tk](bf16) @ [tk, 1](bf16) -> f32 accumulation on the MXU.
    acc_ref[...] += jnp.dot(a_ref[...], xs_ref[...],
                            preferred_element_type=jnp.float32)

    @pl.when(k == pl.num_programs(1) - 1)
    def _():
        ax = acc_ref[...] * dinv_ref[...]                  # [tm, 1] f32
        # Rank-1 expansion on the VPU: [tm,1]*[1,H] + [1,H], ReLU, bf16 store.
        out_ref[...] = jnp.maximum(ax * w_ref[...] + b_ref[...],
                                   0.0).astype(out_ref.dtype)


def _gcn_tiles(n):
    """Row/col padding + tile sizes.  Padding is baked into the adjacency
    build (zeros), so all blocks are full and divisibility always holds."""
    rp = _round_up(n, 256)
    tm = 512 if rp % 512 == 0 else 256        # 512-row blocks ~85% HBM roofline
    if n <= 2048:
        cp, tk = rp, rp                        # single k step
    else:
        tk = 2048                              # 512*2048*2B = 2 MiB A block
        cp = _round_up(n, tk)
    return rp, cp, tm, tk


def gcn_relu(a, xs, dinv_rows, w, b, *, tm, tk):
    rp, cp = a.shape
    H = w.shape[1]
    grid = (rp // tm, cp // tk)
    cost = pl.CostEstimate(
        flops=2 * rp * cp + 3 * rp * H,
        transcendentals=0,
        bytes_accessed=rp * cp * 2 + cp * 2 + rp * 4 + 2 * H * 4 + rp * H * 2)
    # Derived VMEM budget (double-buffered A block dominates); capped below
    # v7x's 64 MiB physical VMEM.  TODO(synk): try pl.Buffered(3) on the A
    # BlockSpec on v7x if the DMA is still exposed.
    vmem_limit = min(48 * 1024 * 1024, max(8 * 1024 * 1024, 6 * tm * tk * 2))
    return pl.pallas_call(
        gcn_relu_kernel,
        out_shape=jax.ShapeDtypeStruct((rp, H), jnp.bfloat16),
        grid=grid,
        in_specs=[
            pl.BlockSpec((tm, tk), lambda i, k: (i, k)),   # A block
            pl.BlockSpec((tk, 1), lambda i, k: (k, 0)),    # dinv * x (col block)
            pl.BlockSpec((tm, 1), lambda i, k: (i, 0)),    # dinv (row block)
            pl.BlockSpec((1, H), lambda i, k: (0, 0)),     # w (resident)
            pl.BlockSpec((1, H), lambda i, k: (0, 0)),     # b (resident)
        ],
        out_specs=pl.BlockSpec((tm, H), lambda i, k: (i, 0)),
        scratch_shapes=[pltpu.VMEM((tm, 1), jnp.float32)],
        compiler_params=pltpu.CompilerParams(
            dimension_semantics=("parallel", "arbitrary"),
            vmem_limit_bytes=vmem_limit),
        cost_estimate=cost,
    )(a, xs, dinv_rows, w, b)


def gcn_relu_stage(x, edge_index, w, b, num_nodes):
    """Build (A + I) directly in bf16 at tile-padded shape plus the two
    normalisation vectors, then run the Pallas kernel.  Everything here is
    O(E + N); no O(N^2) normalise/cast passes over the adjacency."""
    rp, cp, tm, tk = _gcn_tiles(num_nodes)
    H = w.shape[1]
    src, dst = edge_index[0], edge_index[1]
    # Degree of A + I (target side, matching message flow src -> dst).
    deg = jnp.zeros((num_nodes,), jnp.float32).at[dst].add(
        jnp.ones(dst.shape, jnp.float32)) + 1.0
    dinv = lax.rsqrt(deg)
    # A (+ self loops) in bf16 at padded shape; padding rows/cols stay zero.
    loop = jnp.arange(num_nodes, dtype=edge_index.dtype)
    rows = jnp.concatenate([dst, loop])
    cols = jnp.concatenate([src, loop])
    a = jnp.zeros((rp, cp), jnp.bfloat16).at[rows, cols].add(
        jnp.ones(rows.shape, jnp.bfloat16))
    # dinv-scaled x (zero-padded so padded columns contribute nothing).
    xs = jnp.zeros((cp, 1), jnp.bfloat16).at[:num_nodes].set(
        (dinv[:, None] * x.astype(jnp.float32)).astype(jnp.bfloat16))
    dinv_rows = jnp.zeros((rp, 1), jnp.float32).at[:num_nodes].set(dinv[:, None])
    return gcn_relu(a, xs, dinv_rows,
                    w.reshape(1, H).astype(jnp.float32),
                    b.reshape(1, H).astype(jnp.float32),
                    tm=tm, tk=tk)          # [rp, H] bf16; padded rows never used


# ----------------------------------------------------------------------------
# Kernel 2: fused edge gather + LSTM (batch 1, seq len = E) + Linear head.
# ----------------------------------------------------------------------------
def lstm_head_kernel(ei_ref, nh_ref, ea_ref, ws_ref, wr_ref, wa_ref, whh_ref,
                     b_ref, wlin_ref, blin_ref, out_ref,
                     xwi, xwf, xwg, xwo, h_all):
    E = ea_ref.shape[0]
    Np = nh_ref.shape[0]
    Hl = h_all.shape[1]

    # ---- Fused gather: one-hot row select (iota compare) + MXU matmul ------
    node_h = nh_ref[...]                                     # [Np, H]  bf16
    idx = ei_ref[...]                                        # [E, 2]   int32
    node_ids = lax.broadcasted_iota(jnp.int32, (E, Np), 1)
    sel_s = (node_ids == idx[:, 0:1]).astype(jnp.bfloat16)   # [E, Np]
    sel_r = (node_ids == idx[:, 1:2]).astype(jnp.bfloat16)
    sender = jnp.dot(sel_s, node_h,
                     preferred_element_type=jnp.float32).astype(jnp.bfloat16)
    receiver = jnp.dot(sel_r, node_h,
                       preferred_element_type=jnp.float32).astype(jnp.bfloat16)
    attr = ea_ref[...]                                       # [E, Ap]  bf16

    # ---- Hoisted input projection, split along D_in (no concat at all) -----
    def proj(g):
        return (jnp.dot(sender, ws_ref[g], preferred_element_type=jnp.float32)
                + jnp.dot(receiver, wr_ref[g], preferred_element_type=jnp.float32)
                + jnp.dot(attr, wa_ref[g], preferred_element_type=jnp.float32)
                + b_ref[g])

    xwi[...] = proj(0)
    xwf[...] = proj(1)
    xwg[...] = proj(2)
    xwo[...] = proj(3)

    # ---- Serial recurrence: (h, c) carried in f32, bf16 at the MXU inputs, --
    # ---- recurrent weights read from VMEM each step (no 4x[Hl,Hl] hoist). --
    def step(t, carry):
        h, c = carry
        hb = h.astype(jnp.bfloat16)
        pre_i = xwi[pl.ds(t, 1), :] + jnp.dot(hb, whh_ref[0],
                                              preferred_element_type=jnp.float32)
        pre_f = xwf[pl.ds(t, 1), :] + jnp.dot(hb, whh_ref[1],
                                              preferred_element_type=jnp.float32)
        pre_g = xwg[pl.ds(t, 1), :] + jnp.dot(hb, whh_ref[2],
                                              preferred_element_type=jnp.float32)
        pre_o = xwo[pl.ds(t, 1), :] + jnp.dot(hb, whh_ref[3],
                                              preferred_element_type=jnp.float32)
        i_g = jax.nn.sigmoid(pre_i)
        f_g = jax.nn.sigmoid(pre_f)
        g_g = jnp.tanh(pre_g)
        o_g = jax.nn.sigmoid(pre_o)
        c = f_g * c + i_g * g_g
        h = o_g * jnp.tanh(c)
        h_all[pl.ds(t, 1), :] = h                 # stash for the deferred head
        return h, c

    carry = (jnp.zeros((1, Hl), jnp.float32), jnp.zeros((1, Hl), jnp.float32))
    if E <= 32:
        # Small static E: full unroll for LLO scheduling visibility.
        for t in range(E):
            carry = step(t, carry)
    else:
        # Larger E: bounded unroll keeps vreg pressure / IMEM under control.
        carry = lax.fori_loop(0, E, step, carry, unroll=8)

    # ---- Deferred Linear head: one [E,Hl] @ [Hl,OUT] matmul + one store ----
    out_ref[...] = (jnp.dot(h_all[...].astype(jnp.bfloat16), wlin_ref[...],
                            preferred_element_type=jnp.float32) + blin_ref[...])


def lstm_head(edge_index, node_h, edge_attr, w_ih, w_hh, b_lstm, w_lin, b_lin,
              hidden_channels):
    E = edge_attr.shape[0]
    H = hidden_channels
    Hl = w_hh.shape[-1]
    out_ch = w_lin.shape[1]
    Np = node_h.shape[0]

    # Split the input-projection weight along D_in = [sender | receiver | attr]
    # so the kernel never materialises a concatenated edge-feature array.
    w_s = w_ih[:, :H].astype(jnp.bfloat16)                   # [4, H, Hl]
    w_r = w_ih[:, H:2 * H].astype(jnp.bfloat16)              # [4, H, Hl]
    a_dim = w_ih.shape[1] - 2 * H                            # edge_attr features
    ap = _round_up(a_dim, 8)                                 # aligned contraction
    w_a = jnp.zeros((4, ap, Hl), jnp.bfloat16).at[:, :a_dim].set(
        w_ih[:, 2 * H:].astype(jnp.bfloat16))
    attr = jnp.zeros((E, ap), jnp.bfloat16).at[:, :a_dim].set(
        edge_attr.astype(jnp.bfloat16))
    ei = edge_index.T.astype(jnp.int32)                      # [E, 2]

    cost = pl.CostEstimate(
        flops=(2 * E * Np * H * 2 + 2 * E * (2 * H + ap) * 4 * Hl
               + 2 * E * Hl * 4 * Hl + 2 * E * Hl * out_ch),
        transcendentals=5 * E * Hl,
        bytes_accessed=(Np * H * 2 + E * 2 * 4 + E * ap * 2
                        + 4 * (2 * H + ap) * Hl * 2 + 4 * Hl * Hl * 2
                        + 4 * Hl * 4 + Hl * out_ch * 2 + E * out_ch * 4))
    return pl.pallas_call(
        lstm_head_kernel,
        out_shape=jax.ShapeDtypeStruct((E, out_ch), jnp.float32),
        in_specs=[pl.BlockSpec(memory_space=pltpu.MemorySpace.VMEM)
                  for _ in range(10)],
        out_specs=pl.BlockSpec(memory_space=pltpu.MemorySpace.VMEM),
        scratch_shapes=[
            pltpu.VMEM((E, Hl), jnp.float32),   # x @ W_i
            pltpu.VMEM((E, Hl), jnp.float32),   # x @ W_f
            pltpu.VMEM((E, Hl), jnp.float32),   # x @ W_g
            pltpu.VMEM((E, Hl), jnp.float32),   # x @ W_o
            pltpu.VMEM((E, Hl), jnp.float32),   # h_t stash for the head
        ],
        cost_estimate=cost,
    )(ei, node_h, attr,
      w_s, w_r, w_a,
      w_hh.astype(jnp.bfloat16),                         # [4, Hl, Hl]
      b_lstm.reshape(4, 1, Hl).astype(jnp.float32),      # b_ih + b_hh, per gate
      w_lin.astype(jnp.bfloat16),                        # [Hl, OUT]
      b_lin.reshape(1, out_ch).astype(jnp.float32))


# ----------------------------------------------------------------------------
# Parameters, forward pass, pure-jnp reference, demo
# ----------------------------------------------------------------------------
def init_params(key, hidden_channels, lstm_hidden, out_channels):
    ks = jax.random.split(key, 7)
    d_in = hidden_channels * 2 + 3
    s = 0.1
    return {
        "gcn_w": s * jax.random.normal(ks[0], (1, hidden_channels), jnp.float32),
        "gcn_b": s * jax.random.normal(ks[1], (hidden_channels,), jnp.float32),
        # LSTM weights per gate (PyTorch gate order i, f, g, o) and transposed
        # so kernels compute x @ W: w_ih[g]=[D_in,Hl], w_hh[g]=[Hl,Hl];
        # b_lstm[g] = b_ih[g] + b_hh[g].
        "w_ih": s * jax.random.normal(ks[2], (4, d_in, lstm_hidden), jnp.float32),
        "w_hh": s * jax.random.normal(ks[3], (4, lstm_hidden, lstm_hidden),
                                      jnp.float32),
        "b_lstm": s * jax.random.normal(ks[4], (4, lstm_hidden), jnp.float32),
        "w_lin": s * jax.random.normal(ks[5], (lstm_hidden, out_channels),
                                       jnp.float32),
        "b_lin": s * jax.random.normal(ks[6], (out_channels,), jnp.float32),
    }


@functools.partial(jax.jit, static_argnames=("num_nodes",))
def edge_gcn_lstm_forward(params, x, edge_index, edge_attr, num_nodes):
    H = params["gcn_w"].shape[1]
    # GCNConv(1, H) + ReLU  (dropout: eval mode => identity).
    node_h = gcn_relu_stage(x, edge_index, params["gcn_w"], params["gcn_b"],
                            num_nodes)                       # [N_pad, H] bf16
    # Fused edge gather + LSTM over the E edges + Linear head.
    out = lstm_head(edge_index, node_h, edge_attr,
                    params["w_ih"], params["w_hh"], params["b_lstm"],
                    params["w_lin"], params["b_lin"], H)
    return out.reshape(-1)                                   # view(-1)


def reference_forward(params, x, edge_index, edge_attr, num_nodes):
    """Pure-jnp f32 reference mirroring the PyTorch module (eval mode)."""
    src, dst = edge_index[0], edge_index[1]
    a = jnp.zeros((num_nodes, num_nodes), jnp.float32).at[dst, src].add(1.0)
    a = a + jnp.eye(num_nodes, dtype=jnp.float32)
    deg = a.sum(axis=1)
    dinv = 1.0 / jnp.sqrt(deg)
    a_hat = dinv[:, None] * a * dinv[None, :]
    node_h = jnp.maximum(a_hat @ x @ params["gcn_w"] + params["gcn_b"], 0.0)
    sender, receiver = node_h[edge_index[0]], node_h[edge_index[1]]
    ef = jnp.concatenate([sender, receiver, edge_attr], axis=1)
    Hl = params["w_hh"].shape[-1]
    h = jnp.zeros((Hl,), jnp.float32)
    c = jnp.zeros((Hl,), jnp.float32)
    hs = []
    for t in range(ef.shape[0]):
        pre = [ef[t] @ params["w_ih"][g] + h @ params["w_hh"][g]
               + params["b_lstm"][g] for g in range(4)]
        i_g, f_g = jax.nn.sigmoid(pre[0]), jax.nn.sigmoid(pre[1])
        g_g, o_g = jnp.tanh(pre[2]), jax.nn.sigmoid(pre[3])
        c = f_g * c + i_g * g_g
        h = o_g * jnp.tanh(c)
        hs.append(h)
    out = jnp.stack(hs) @ params["w_lin"] + params["b_lin"]
    return out.reshape(-1)


if __name__ == "__main__":
    N = 16            # num nodes
    E = 8             # num edges
    HIDDEN = 8        # hidden_channels
    LSTM_HIDDEN = 16  # lstm_hidden_channels
    OUT = 1           # out_channels

    key = jax.random.PRNGKey(0)
    k_x, k_ei, k_ea, k_p = jax.random.split(key, 4)

    x = jax.random.normal(k_x, (N, 1), jnp.float32)                  # node feats
    edge_index = jax.random.randint(k_ei, (2, E), 0, N, jnp.int32)   # [2, E]
    edge_attr = jax.random.normal(k_ea, (E, 3), jnp.float32)         # [E, 3]
    params = init_params(k_p, HIDDEN, LSTM_HIDDEN, OUT)

    out = edge_gcn_lstm_forward(params, x, edge_index, edge_attr, num_nodes=N)
    out = jax.block_until_ready(out)
    assert out.shape == (E * OUT,)
    assert bool(jnp.all(jnp.isfinite(out)))

    # Loose tolerance: adjacency counts are exact in bf16, but dinv*x, node_h
    # and the LSTM / head weights are bf16 at the MXU inputs (f32 accumulation).
    ref = reference_forward(params, x, edge_index, edge_attr, N)
    assert jnp.allclose(out, ref, atol=5e-2, rtol=5e-2), (out, ref)
    print("KERNEL_OK")
</pallas_src>

<mosaic_0001>
module attributes {stable_mosaic.version = 11 : i64} {
  func.func private @main(%arg0: i32) attributes {dimension_semantics = [#tpu.dimension_semantics<core_parallel>], iteration_bounds = array<i64: 2>, tpu.core_type = #tpu.core_type<sc_scalar_subcore>, window_params = []} {
    return
  }
}

module attributes {stable_mosaic.version = 11 : i64} {
  func.func private @main(%arg0: i32) attributes {dimension_semantics = [#tpu.dimension_semantics<core_parallel>], iteration_bounds = array<i64: 2>, tpu.core_type = #tpu.core_type<sc_scalar_subcore>, window_params = []} {
    return
  }
}

module attributes {stable_mosaic.version = 11 : i64} {
  func.func @gcn_relu_kernel(%arg0: i32, %arg1: i32, %arg2: memref<256x256xbf16, #tpu.memory_space<vmem>>, %arg3: memref<256x1xbf16, #tpu.memory_space<vmem>>, %arg4: memref<256x1xf32, #tpu.memory_space<vmem>>, %arg5: memref<1x8xf32, #tpu.memory_space<vmem>>, %arg6: memref<1x8xf32, #tpu.memory_space<vmem>>, %arg7: memref<256x8xbf16, #tpu.memory_space<vmem>>, %arg8: memref<256x1xf32, #tpu.memory_space<vmem>>) attributes {dimension_semantics = [#tpu.dimension_semantics<parallel>, #tpu.dimension_semantics<arbitrary>], iteration_bounds = array<i64: 1, 1>, scalar_prefetch = 0 : i64, scratch_operands = 1 : i64, tpu.core_type = #tpu.core_type<tc>, window_params = [{transform_indices = @transform_0, window_bounds = array<i64: 256, 256>}, {transform_indices = @transform_1, window_bounds = array<i64: 256, 1>}, {transform_indices = @transform_2, window_bounds = array<i64: 256, 1>}, {pipeline_mode = #tpu.pipeline_mode<synchronous>, transform_indices = @transform_3, window_bounds = array<i64: 1, 8>}, {pipeline_mode = #tpu.pipeline_mode<synchronous>, transform_indices = @transform_4, window_bounds = array<i64: 1, 8>}, {transform_indices = @transform_5, window_bounds = array<i64: 256, 8>}]} {
    %c0_i32 = arith.constant 0 : i32
    %0 = arith.cmpi eq, %arg1, %c0_i32 : i32
    %1 = arith.extui %0 : i1 to i32
    %c0_i32_0 = arith.constant 0 : i32
    %2 = arith.cmpi ne, %1, %c0_i32_0 : i32
    scf.if %2 {
      %cst_10 = arith.constant 0.000000e+00 : f32
      %12 = vector.broadcast %cst_10 : f32 to vector<256x1xf32>
      %c0_11 = arith.constant 0 : index
      %c0_12 = arith.constant 0 : index
      %13 = vector.load %arg8[%c0_11, %c0_12] : memref<256x1xf32, #tpu.memory_space<vmem>>, vector<256x1xf32>
      tpu.vector_store %arg8[%c0_11, %c0_12], %12 {strides = array<i32>} : memref<256x1xf32, #tpu.memory_space<vmem>>, vector<256x1xf32>,
    } else {
    }
    %c0 = arith.constant 0 : index
    %c0_1 = arith.constant 0 : index
    %3 = vector.load %arg8[%c0, %c0_1] : memref<256x1xf32, #tpu.memory_space<vmem>>, vector<256x1xf32>
    %c0_2 = arith.constant 0 : index
    %c0_3 = arith.constant 0 : index
    %4 = vector.load %arg2[%c0_2, %c0_3] : memref<256x256xbf16, #tpu.memory_space<vmem>>, vector<256x256xbf16>
    %c0_4 = arith.constant 0 : index
    %c0_5 = arith.constant 0 : index
    %5 = vector.load %arg3[%c0_4, %c0_5] : memref<256x1xbf16, #tpu.memory_space<vmem>>, vector<256x1xbf16>
    %cst = arith.constant dense<0.000000e+00> : vector<256x1xf32>
    %6 = tpu.matmul %4, %5, %cst {dimension_numbers = #tpu.dot_dimension_numbers<[1], [0], [0], [1], [0, 0, 1, 1], [], []>} : vector<256x256xbf16>, vector<256x1xbf16>, vector<256x1xf32> -> vector<256x1xf32>
    %7 = arith.addf %3, %6 : vector<256x1xf32>
    %c0_6 = arith.constant 0 : index
    %c0_7 = arith.constant 0 : index
    %8 = vector.load %arg8[%c0_6, %c0_7] : memref<256x1xf32, #tpu.memory_space<vmem>>, vector<256x1xf32>
    tpu.vector_store %arg8[%c0_6, %c0_7], %7 {strides = array<i32>} : memref<256x1xf32, #tpu.memory_space<vmem>>, vector<256x1xf32>,
    %c0_i32_8 = arith.constant 0 : i32
    %9 = arith.cmpi eq, %arg1, %c0_i32_8 : i32
    %10 = arith.extui %9 : i1 to i32
    %c0_i32_9 = arith.constant 0 : i32
    %11 = arith.cmpi ne, %10, %c0_i32_9 : i32
    scf.if %11 {
      %c0_10 = arith.constant 0 : index
      %c0_11 = arith.constant 0 : index
      %12 = vector.load %arg8[%c0_10, %c0_11] : memref<256x1xf32, #tpu.memory_space<vmem>>, vector<256x1xf32>
      %c0_12 = arith.constant 0 : index
      %c0_13 = arith.constant 0 : index
      %13 = vector.load %arg4[%c0_12, %c0_13] : memref<256x1xf32, #tpu.memory_space<vmem>>, vector<256x1xf32>
      %14 = arith.mulf %12, %13 : vector<256x1xf32>
      %c0_14 = arith.constant 0 : index
      %c0_15 = arith.constant 0 : index
      %15 = vector.load %arg5[%c0_14, %c0_15] : memref<1x8xf32, #tpu.memory_space<vmem>>, vector<1x8xf32>
      %16 = vector.broadcast %14 : vector<256x1xf32> to vector<256x8xf32>
      %17 = vector.broadcast %15 : vector<1x8xf32> to vector<256x8xf32>
      %18 = arith.mulf %16, %17 : vector<256x8xf32>
      %c0_16 = arith.constant 0 : index
      %c0_17 = arith.constant 0 : index
      %19 = vector.load %arg6[%c0_16, %c0_17] : memref<1x8xf32, #tpu.memory_space<vmem>>, vector<1x8xf32>
      %20 = vector.broadcast %19 : vector<1x8xf32> to vector<256x8xf32>
      %21 = arith.addf %18, %20 : vector<256x8xf32>
      %cst_18 = arith.constant 0.000000e+00 : f32
      %22 = vector.broadcast %cst_18 : f32 to vector<256x8xf32>
      %23 = arith.maximumf %21, %22 : vector<256x8xf32>
      %24 = arith.truncf %23 : vector<256x8xf32> to vector<256x8xbf16>
      %c0_19 = arith.constant 0 : index
      %c0_20 = arith.constant 0 : index
      %25 = vector.load %arg7[%c0_19, %c0_20] : memref<256x8xbf16, #tpu.memory_space<vmem>>, vector<256x8xbf16>
      tpu.vector_store %arg7[%c0_19, %c0_20], %24 {strides = array<i32>} : memref<256x8xbf16, #tpu.memory_space<vmem>>, vector<256x8xbf16>,
    } else {
    }
    return
  }
  func.func @transform_0(%arg0: i32, %arg1: i32) -> (i32, i32) {
    %c0_i32 = arith.constant 0 : i32
    return %arg0, %arg1 : i32, i32
  }
  func.func @transform_1(%arg0: i32, %arg1: i32) -> (i32, i32) {
    %c0_i32 = arith.constant 0 : i32
    %c0_i32_0 = arith.constant 0 : i32
    return %arg1, %c0_i32 : i32, i32
  }
  func.func @transform_2(%arg0: i32, %arg1: i32) -> (i32, i32) {
    %c0_i32 = arith.constant 0 : i32
    %c0_i32_0 = arith.constant 0 : i32
    return %arg0, %c0_i32 : i32, i32
  }
  func.func @transform_3(%arg0: i32, %arg1: i32) -> (i32, i32) {
    %c0_i32 = arith.constant 0 : i32
    %c0_i32_0 = arith.constant 0 : i32
    %c0_i32_1 = arith.constant 0 : i32
    return %c0_i32, %c0_i32_0 : i32, i32
  }
  func.func @transform_4(%arg0: i32, %arg1: i32) -> (i32, i32) {
    %c0_i32 = arith.constant 0 : i32
    %c0_i32_0 = arith.constant 0 : i32
    %c0_i32_1 = arith.constant 0 : i32
    return %c0_i32, %c0_i32_0 : i32, i32
  }
  func.func @transform_5(%arg0: i32, %arg1: i32) -> (i32, i32) {
    %c0_i32 = arith.constant 0 : i32
    %c0_i32_0 = arith.constant 0 : i32
    return %arg0, %c0_i32 : i32, i32
  }
}

module attributes {stable_mosaic.version = 11 : i64} {
  func.func @lstm_head_kernel(%arg0: memref<8x2xi32, #tpu.memory_space<vmem>>, %arg1: memref<256x8xbf16, #tpu.memory_space<vmem>>, %arg2: memref<8x8xbf16, #tpu.memory_space<vmem>>, %arg3: memref<4x8x16xbf16, #tpu.memory_space<vmem>>, %arg4: memref<4x8x16xbf16, #tpu.memory_space<vmem>>, %arg5: memref<4x8x16xbf16, #tpu.memory_space<vmem>>, %arg6: memref<4x16x16xbf16, #tpu.memory_space<vmem>>, %arg7: memref<4x1x16xf32, #tpu.memory_space<vmem>>, %arg8: memref<16x1xbf16, #tpu.memory_space<vmem>>, %arg9: memref<1x1xf32, #tpu.memory_space<vmem>>, %arg10: memref<8x1xf32, #tpu.memory_space<vmem>>, %arg11: memref<8x16xf32, #tpu.memory_space<vmem>>, %arg12: memref<8x16xf32, #tpu.memory_space<vmem>>, %arg13: memref<8x16xf32, #tpu.memory_space<vmem>>, %arg14: memref<8x16xf32, #tpu.memory_space<vmem>>, %arg15: memref<8x16xf32, #tpu.memory_space<vmem>>) attributes {dimension_semantics = [], scalar_prefetch = 0 : i64, scratch_operands = 5 : i64, tpu.core_type = #tpu.core_type<tc>} {
    %c0 = arith.constant 0 : index
    %c0_0 = arith.constant 0 : index
    %0 = vector.load %arg1[%c0, %c0_0] : memref<256x8xbf16, #tpu.memory_space<vmem>>, vector<256x8xbf16>
    %c0_1 = arith.constant 0 : index
    %c0_2 = arith.constant 0 : index
    %1 = vector.load %arg0[%c0_1, %c0_2] : memref<8x2xi32, #tpu.memory_space<vmem>>, vector<8x2xi32>
    %2 = tpu.iota {dimensions = array<i32: 1>} : vector<8x256xi32>
    %3 = vector.extract_strided_slice %1 {offsets = [0, 0], sizes = [8, 1], strides = [1, 1]} : vector<8x2xi32> to vector<8x1xi32>
    %4 = vector.broadcast %3 : vector<8x1xi32> to vector<8x256xi32>
    %5 = arith.cmpi eq, %2, %4 : vector<8x256xi32>
    %6 = arith.extui %5 : vector<8x256xi1> to vector<8x256xi32>
    %7 = arith.sitofp %6 : vector<8x256xi32> to vector<8x256xf32>
    %8 = arith.truncf %7 : vector<8x256xf32> to vector<8x256xbf16>
    %9 = vector.extract_strided_slice %1 {offsets = [0, 1], sizes = [8, 1], strides = [1, 1]} : vector<8x2xi32> to vector<8x1xi32>
    %10 = vector.broadcast %9 : vector<8x1xi32> to vector<8x256xi32>
    %11 = arith.cmpi eq, %2, %10 : vector<8x256xi32>
    %12 = arith.extui %11 : vector<8x256xi1> to vector<8x256xi32>
    %13 = arith.sitofp %12 : vector<8x256xi32> to vector<8x256xf32>
    %14 = arith.truncf %13 : vector<8x256xf32> to vector<8x256xbf16>
    %cst = arith.constant dense<0.000000e+00> : vector<8x8xf32>
    %15 = tpu.matmul %8, %0, %cst {dimension_numbers = #tpu.dot_dimension_numbers<[1], [0], [0], [1], [0, 0, 1, 1], [], []>} : vector<8x256xbf16>, vector<256x8xbf16>, vector<8x8xf32> -> vector<8x8xf32>
    %16 = arith.truncf %15 : vector<8x8xf32> to vector<8x8xbf16>
    %cst_3 = arith.constant dense<0.000000e+00> : vector<8x8xf32>
    %17 = tpu.matmul %14, %0, %cst_3 {dimension_numbers = #tpu.dot_dimension_numbers<[1], [0], [0], [1], [0, 0, 1, 1], [], []>} : vector<8x256xbf16>, vector<256x8xbf16>, vector<8x8xf32> -> vector<8x8xf32>
    %18 = arith.truncf %17 : vector<8x8xf32> to vector<8x8xbf16>
    %c0_4 = arith.constant 0 : index
    %c0_5 = arith.constant 0 : index
    %19 = vector.load %arg2[%c0_4, %c0_5] : memref<8x8xbf16, #tpu.memory_space<vmem>>, vector<8x8xbf16>
    %c0_6 = arith.constant 0 : index
    %c0_7 = arith.constant 0 : index
    %c0_8 = arith.constant 0 : index
    %20 = vector.load %arg3[%c0_6, %c0_7, %c0_8] : memref<4x8x16xbf16, #tpu.memory_space<vmem>>, vector<1x8x16xbf16>
    %21 = vector.shape_cast %20 : vector<1x8x16xbf16> to vector<8x16xbf16>
    %cst_9 = arith.constant dense<0.000000e+00> : vector<8x16xf32>
    %22 = tpu.matmul %16, %21, %cst_9 {dimension_numbers = #tpu.dot_dimension_numbers<[1], [0], [0], [1], [0, 0, 1, 1], [], []>} : vector<8x8xbf16>, vector<8x16xbf16>, vector<8x16xf32> -> vector<8x16xf32>
    %c0_10 = arith.constant 0 : index
    %c0_11 = arith.constant 0 : index
    %c0_12 = arith.constant 0 : index
    %23 = vector.load %arg4[%c0_10, %c0_11, %c0_12] : memref<4x8x16xbf16, #tpu.memory_space<vmem>>, vector<1x8x16xbf16>
    %24 = vector.shape_cast %23 : vector<1x8x16xbf16> to vector<8x16xbf16>
    %cst_13 = arith.constant dense<0.000000e+00> : vector<8x16xf32>
    %25 = tpu.matmul %18, %24, %cst_13 {dimension_numbers = #tpu.dot_dimension_numbers<[1], [0], [0], [1], [0, 0, 1, 1], [], []>} : vector<8x8xbf16>, vector<8x16xbf16>, vector<8x16xf32> -> vector<8x16xf32>
    %26 = arith.addf %22, %25 : vector<8x16xf32>
    %c0_14 = arith.constant 0 : index
    %c0_15 = arith.constant 0 : index
    %c0_16 = arith.constant 0 : index
    %27 = vector.load %arg5[%c0_14, %c0_15, %c0_16] : memref<4x8x16xbf16, #tpu.memory_space<vmem>>, vector<1x8x16xbf16>
    %28 = vector.shape_cast %27 : vector<1x8x16xbf16> to vector<8x16xbf16>
    %cst_17 = arith.constant dense<0.000000e+00> : vector<8x16xf32>
    %29 = tpu.matmul %19, %28, %cst_17 {dimension_numbers = #tpu.dot_dimension_numbers<[1], [0], [0], [1], [0, 0, 1, 1], [], []>} : vector<8x8xbf16>, vector<8x16xbf16>, vector<8x16xf32> -> vector<8x16xf32>
    %30 = arith.addf %26, %29 : vector<8x16xf32>
    %c0_18 = arith.constant 0 : index
    %c0_19 = arith.constant 0 : index
    %c0_20 = arith.constant 0 : index
    %31 = vector.load %arg7[%c0_18, %c0_19, %c0_20] : memref<4x1x16xf32, #tpu.memory_space<vmem>>, vector<1x1x16xf32>
    %32 = vector.shape_cast %31 : vector<1x1x16xf32> to vector<1x16xf32>
    %33 = vector.broadcast %32 : vector<1x16xf32> to vector<8x16xf32>
    %34 = arith.addf %30, %33 : vector<8x16xf32>
    %c0_21 = arith.constant 0 : index
    %c0_22 = arith.constant 0 : index
    %35 = vector.load %arg11[%c0_21, %c0_22] : memref<8x16xf32, #tpu.memory_space<vmem>>, vector<8x16xf32>
    tpu.vector_store %arg11[%c0_21, %c0_22], %34 {strides = array<i32>} : memref<8x16xf32, #tpu.memory_space<vmem>>, vector<8x16xf32>,
    %c1 = arith.constant 1 : index
    %c0_23 = arith.constant 0 : index
    %c0_24 = arith.constant 0 : index
    %36 = vector.load %arg3[%c1, %c0_23, %c0_24] : memref<4x8x16xbf16, #tpu.memory_space<vmem>>, vector<1x8x16xbf16>
    %37 = vector.shape_cast %36 : vector<1x8x16xbf16> to vector<8x16xbf16>
    %cst_25 = arith.constant dense<0.000000e+00> : vector<8x16xf32>
    %38 = tpu.matmul %16, %37, %cst_25 {dimension_numbers = #tpu.dot_dimension_numbers<[1], [0], [0], [1], [0, 0, 1, 1], [], []>} : vector<8x8xbf16>, vector<8x16xbf16>, vector<8x16xf32> -> vector<8x16xf32>
    %c1_26 = arith.constant 1 : index
    %c0_27 = arith.constant 0 : index
    %c0_28 = arith.constant 0 : index
    %39 = vector.load %arg4[%c1_26, %c0_27, %c0_28] : memref<4x8x16xbf16, #tpu.memory_space<vmem>>, vector<1x8x16xbf16>
    %40 = vector.shape_cast %39 : vector<1x8x16xbf16> to vector<8x16xbf16>
    %cst_29 = arith.constant dense<0.000000e+00> : vector<8x16xf32>
    %41 = tpu.matmul %18, %40, %cst_29 {dimension_numbers = #tpu.dot_dimension_numbers<[1], [0], [0], [1], [0, 0, 1, 1], [], []>} : vector<8x8xbf16>, vector<8x16xbf16>, vector<8x16xf32> -> vector<8x16xf32>
    %42 = arith.addf %38, %41 : vector<8x16xf32>
    %c1_30 = arith.constant 1 : index
    %c0_31 = arith.constant 0 : index
    %c0_32 = arith.constant 0 : index
    %43 = vector.load %arg5[%c1_30, %c0_31, %c0_32] : memref<4x8x16xbf16, #tpu.memory_space<vmem>>, vector<1x8x16xbf16>
    %44 = vector.shape_cast %43 : vector<1x8x16xbf16> to vector<8x16xbf16>
    %cst_33 = arith.constant dense<0.000000e+00> : vector<8x16xf32>
    %45 = tpu.matmul %19, %44, %cst_33 {dimension_numbers = #tpu.dot_dimension_numbers<[1], [0], [0], [1], [0, 0, 1, 1], [], []>} : vector<8x8xbf16>, vector<8x16xbf16>, vector<8x16xf32> -> vector<8x16xf32>
    %46 = arith.addf %42, %45 : vector<8x16xf32>
    %c1_34 = arith.constant 1 : index
    %c0_35 = arith.constant 0 : index
    %c0_36 = arith.constant 0 : index
    %47 = vector.load %arg7[%c1_34, %c0_35, %c0_36] : memref<4x1x16xf32, #tpu.memory_space<vmem>>, vector<1x1x16xf32>
    %48 = vector.shape_cast %47 : vector<1x1x16xf32> to vector<1x16xf32>
    %49 = vector.broadcast %48 : vector<1x16xf32> to vector<8x16xf32>
    %50 = arith.addf %46, %49 : vector<8x16xf32>
    %c0_37 = arith.constant 0 : index
    %c0_38 = arith.constant 0 : index
    %51 = vector.load %arg12[%c0_37, %c0_38] : memref<8x16xf32, #tpu.memory_space<vmem>>, vector<8x16xf32>
    tpu.vector_store %arg12[%c0_37, %c0_38], %50 {strides = array<i32>} : memref<8x16xf32, #tpu.memory_space<vmem>>, vector<8x16xf32>,
    %c2 = arith.constant 2 : index
    %c0_39 = arith.constant 0 : index
    %c0_40 = arith.constant 0 : index
    %52 = vector.load %arg3[%c2, %c0_39, %c0_40] : memref<4x8x16xbf16, #tpu.memory_space<vmem>>, vector<1x8x16xbf16>
    %53 = vector.shape_cast %52 : vector<1x8x16xbf16> to vector<8x16xbf16>
    %cst_41 = arith.constant dense<0.000000e+00> : vector<8x16xf32>
    %54 = tpu.matmul %16, %53, %cst_41 {dimension_numbers = #tpu.dot_dimension_numbers<[1], [0], [0], [1], [0, 0, 1, 1], [], []>} : vector<8x8xbf16>, vector<8x16xbf16>, vector<8x16xf32> -> vector<8x16xf32>
    %c2_42 = arith.constant 2 : index
    %c0_43 = arith.constant 0 : index
    %c0_44 = arith.constant 0 : index
    %55 = vector.load %arg4[%c2_42, %c0_43, %c0_44] : memref<4x8x16xbf16, #tpu.memory_space<vmem>>, vector<1x8x16xbf16>
    %56 = vector.shape_cast %55 : vector<1x8x16xbf16> to vector<8x16xbf16>
    %cst_45 = arith.constant dense<0.000000e+00> : vector<8x16xf32>
    %57 = tpu.matmul %18, %56, %cst_45 {dimension_numbers = #tpu.dot_dimension_numbers<[1], [0], [0], [1], [0, 0, 1, 1], [], []>} : vector<8x8xbf16>, vector<8x16xbf16>, vector<8x16xf32> -> vector<8x16xf32>
    %58 = arith.addf %54, %57 : vector<8x16xf32>
    %c2_46 = arith.constant 2 : index
    %c0_47 = arith.constant 0 : index
    %c0_48 = arith.constant 0 : index
    %59 = vector.load %arg5[%c2_46, %c0_47, %c0_48] : memref<4x8x16xbf16, #tpu.memory_space<vmem>>, vector<1x8x16xbf16>
    %60 = vector.shape_cast %59 : vector<1x8x16xbf16> to vector<8x16xbf16>
    %cst_49 = arith.constant dense<0.000000e+00> : vector<8x16xf32>
    %61 = tpu.matmul %19, %60, %cst_49 {dimension_numbers = #tpu.dot_dimension_numbers<[1], [0], [0], [1], [0, 0, 1, 1], [], []>} : vector<8x8xbf16>, vector<8x16xbf16>, vector<8x16xf32> -> vector<8x16xf32>
    %62 = arith.addf %58, %61 : vector<8x16xf32>
    %c2_50 = arith.constant 2 : index
    %c0_51 = arith.constant 0 : index
    %c0_52 = arith.constant 0 : index
    %63 = vector.load %arg7[%c2_50, %c0_51, %c0_52] : memref<4x1x16xf32, #tpu.memory_space<vmem>>, vector<1x1x16xf32>
    %64 = vector.shape_cast %63 : vector<1x1x16xf32> to vector<1x16xf32>
    %65 = vector.broadcast %64 : vector<1x16xf32> to vector<8x16xf32>
    %66 = arith.addf %62, %65 : vector<8x16xf32>
    %c0_53 = arith.constant 0 : index
    %c0_54 = arith.constant 0 : index
    %67 = vector.load %arg13[%c0_53, %c0_54] : memref<8x16xf32, #tpu.memory_space<vmem>>, vector<8x16xf32>
    tpu.vector_store %arg13[%c0_53, %c0_54], %66 {strides = array<i32>} : memref<8x16xf32, #tpu.memory_space<vmem>>, vector<8x16xf32>,
    %c3 = arith.constant 3 : index
    %c0_55 = arith.constant 0 : index
    %c0_56 = arith.constant 0 : index
    %68 = vector.load %arg3[%c3, %c0_55, %c0_56] : memref<4x8x16xbf16, #tpu.memory_space<vmem>>, vector<1x8x16xbf16>
    %69 = vector.shape_cast %68 : vector<1x8x16xbf16> to vector<8x16xbf16>
    %cst_57 = arith.constant dense<0.000000e+00> : vector<8x16xf32>
    %70 = tpu.matmul %16, %69, %cst_57 {dimension_numbers = #tpu.dot_dimension_numbers<[1], [0], [0], [1], [0, 0, 1, 1], [], []>} : vector<8x8xbf16>, vector<8x16xbf16>, vector<8x16xf32> -> vector<8x16xf32>
    %c3_58 = arith.constant 3 : index
    %c0_59 = arith.constant 0 : index
    %c0_60 = arith.constant 0 : index
    %71 = vector.load %arg4[%c3_58, %c0_59, %c0_60] : memref<4x8x16xbf16, #tpu.memory_space<vmem>>, vector<1x8x16xbf16>
    %72 = vector.shape_cast %71 : vector<1x8x16xbf16> to vector<8x16xbf16>
    %cst_61 = arith.constant dense<0.000000e+00> : vector<8x16xf32>
    %73 = tpu.matmul %18, %72, %cst_61 {dimension_numbers = #tpu.dot_dimension_numbers<[1], [0], [0], [1], [0, 0, 1, 1], [], []>} : vector<8x8xbf16>, vector<8x16xbf16>, vector<8x16xf32> -> vector<8x16xf32>
    %74 = arith.addf %70, %73 : vector<8x16xf32>
    %c3_62 = arith.constant 3 : index
    %c0_63 = arith.constant 0 : index
    %c0_64 = arith.constant 0 : index
    %75 = vector.load %arg5[%c3_62, %c0_63, %c0_64] : memref<4x8x16xbf16, #tpu.memory_space<vmem>>, vector<1x8x16xbf16>
    %76 = vector.shape_cast %75 : vector<1x8x16xbf16> to vector<8x16xbf16>
    %cst_65 = arith.constant dense<0.000000e+00> : vector<8x16xf32>
    %77 = tpu.matmul %19, %76, %cst_65 {dimension_numbers = #tpu.dot_dimension_numbers<[1], [0], [0], [1], [0, 0, 1, 1], [], []>} : vector<8x8xbf16>, vector<8x16xbf16>, vector<8x16xf32> -> vector<8x16xf32>
    %78 = arith.addf %74, %77 : vector<8x16xf32>
    %c3_66 = arith.constant 3 : index
    %c0_67 = arith.constant 0 : index
    %c0_68 = arith.constant 0 : index
    %79 = vector.load %arg7[%c3_66, %c0_67, %c0_68] : memref<4x1x16xf32, #tpu.memory_space<vmem>>, vector<1x1x16xf32>
    %80 = vector.shape_cast %79 : vector<1x1x16xf32> to vector<1x16xf32>
    %81 = vector.broadcast %80 : vector<1x16xf32> to vector<8x16xf32>
    %82 = arith.addf %78, %81 : vector<8x16xf32>
    %c0_69 = arith.constant 0 : index
    %c0_70 = arith.constant 0 : index
    %83 = vector.load %arg14[%c0_69, %c0_70] : memref<8x16xf32, #tpu.memory_space<vmem>>, vector<8x16xf32>
    tpu.vector_store %arg14[%c0_69, %c0_70], %82 {strides = array<i32>} : memref<8x16xf32, #tpu.memory_space<vmem>>, vector<8x16xf32>,
    %cst_71 = arith.constant 0.000000e+00 : f32
    %84 = vector.broadcast %cst_71 : f32 to vector<1x16xf32>
    %cst_72 = arith.constant 0.000000e+00 : f32
    %85 = vector.broadcast %cst_72 : f32 to vector<1x16xf32>
    %86 = arith.truncf %84 : vector<1x16xf32> to vector<1x16xbf16>
    %c0_73 = arith.constant 0 : index
    %c0_74 = arith.constant 0 : index
    %87 = vector.load %arg11[%c0_73, %c0_74] : memref<8x16xf32, #tpu.memory_space<vmem>>, vector<1x16xf32>
    %c0_75 = arith.constant 0 : index
    %c0_76 = arith.constant 0 : index
    %c0_77 = arith.constant 0 : index
    %88 = vector.load %arg6[%c0_75, %c0_76, %c0_77] : memref<4x16x16xbf16, #tpu.memory_space<vmem>>, vector<1x16x16xbf16>
    %89 = vector.shape_cast %88 : vector<1x16x16xbf16> to vector<16x16xbf16>
    %cst_78 = arith.constant dense<0.000000e+00> : vector<1x16xf32>
    %90 = tpu.matmul %86, %89, %cst_78 {dimension_numbers = #tpu.dot_dimension_numbers<[1], [0], [0], [1], [0, 0, 1, 1], [], []>} : vector<1x16xbf16>, vector<16x16xbf16>, vector<1x16xf32> -> vector<1x16xf32>
    %91 = arith.addf %87, %90 : vector<1x16xf32>
    %c0_79 = arith.constant 0 : index
    %c0_80 = arith.constant 0 : index
    %92 = vector.load %arg12[%c0_79, %c0_80] : memref<8x16xf32, #tpu.memory_space<vmem>>, vector<1x16xf32>
    %c1_81 = arith.constant 1 : index
    %c0_82 = arith.constant 0 : index
    %c0_83 = arith.constant 0 : index
    %93 = vector.load %arg6[%c1_81, %c0_82, %c0_83] : memref<4x16x16xbf16, #tpu.memory_space<vmem>>, vector<1x16x16xbf16>
    %94 = vector.shape_cast %93 : vector<1x16x16xbf16> to vector<16x16xbf16>
    %cst_84 = arith.constant dense<0.000000e+00> : vector<1x16xf32>
    %95 = tpu.matmul %86, %94, %cst_84 {dimension_numbers = #tpu.dot_dimension_numbers<[1], [0], [0], [1], [0, 0, 1, 1], [], []>} : vector<1x16xbf16>, vector<16x16xbf16>, vector<1x16xf32> -> vector<1x16xf32>
    %96 = arith.addf %92, %95 : vector<1x16xf32>
    %c0_85 = arith.constant 0 : index
    %c0_86 = arith.constant 0 : index
    %97 = vector.load %arg13[%c0_85, %c0_86] : memref<8x16xf32, #tpu.memory_space<vmem>>, vector<1x16xf32>
    %c2_87 = arith.constant 2 : index
    %c0_88 = arith.constant 0 : index
    %c0_89 = arith.constant 0 : index
    %98 = vector.load %arg6[%c2_87, %c0_88, %c0_89] : memref<4x16x16xbf16, #tpu.memory_space<vmem>>, vector<1x16x16xbf16>
    %99 = vector.shape_cast %98 : vector<1x16x16xbf16> to vector<16x16xbf16>
    %cst_90 = arith.constant dense<0.000000e+00> : vector<1x16xf32>
    %100 = tpu.matmul %86, %99, %cst_90 {dimension_numbers = #tpu.dot_dimension_numbers<[1], [0], [0], [1], [0, 0, 1, 1], [], []>} : vector<1x16xbf16>, vector<16x16xbf16>, vector<1x16xf32> -> vector<1x16xf32>
    %101 = arith.addf %97, %100 : vector<1x16xf32>
    %c0_91 = arith.constant 0 : index
    %c0_92 = arith.constant 0 : index
    %102 = vector.load %arg14[%c0_91, %c0_92] : memref<8x16xf32, #tpu.memory_space<vmem>>, vector<1x16xf32>
    %c3_93 = arith.constant 3 : index
    %c0_94 = arith.constant 0 : index
    %c0_95 = arith.constant 0 : index
    %103 = vector.load %arg6[%c3_93, %c0_94, %c0_95] : memref<4x16x16xbf16, #tpu.memory_space<vmem>>, vector<1x16x16xbf16>
    %104 = vector.shape_cast %103 : vector<1x16x16xbf16> to vector<16x16xbf16>
    %cst_96 = arith.constant dense<0.000000e+00> : vector<1x16xf32>
    %105 = tpu.matmul %86, %104, %cst_96 {dimension_numbers = #tpu.dot_dimension_numbers<[1], [0], [0], [1], [0, 0, 1, 1], [], []>} : vector<1x16xbf16>, vector<16x16xbf16>, vector<1x16xf32> -> vector<1x16xf32>
    %106 = arith.addf %102, %105 : vector<1x16xf32>
    %107 = arith.negf %91 : vector<1x16xf32>
    %108 = math.exp %107 : vector<1x16xf32>
    %cst_97 = arith.constant 1.000000e+00 : f32
    %109 = vector.broadcast %cst_97 : f32 to vector<1x16xf32>
    %110 = arith.addf %109, %108 : vector<1x16xf32>
    %111 = arith.divf %109, %110 : vector<1x16xf32>
    %112 = arith.negf %96 : vector<1x16xf32>
    %113 = math.exp %112 : vector<1x16xf32>
    %cst_98 = arith.constant 1.000000e+00 : f32
    %114 = vector.broadcast %cst_98 : f32 to vector<1x16xf32>
    %115 = arith.addf %114, %113 : vector<1x16xf32>
    %116 = arith.divf %114, %115 : vector<1x16xf32>
    %117 = math.tanh %101 : vector<1x16xf32>
    %118 = arith.negf %106 : vector<1x16xf32>
    %119 = math.exp %118 : vector<1x16xf32>
    %cst_99 = arith.constant 1.000000e+00 : f32
    %120 = vector.broadcast %cst_99 : f32 to vector<1x16xf32>
    %121 = arith.addf %120, %119 : vector<1x16xf32>
    %122 = arith.divf %120, %121 : vector<1x16xf32>
    %123 = arith.mulf %116, %85 : vector<1x16xf32>
    %124 = arith.mulf %111, %117 : vector<1x16xf32>
    %125 = arith.addf %123, %124 : vector<1x16xf32>
    %126 = math.tanh %125 : vector<1x16xf32>
    %127 = arith.mulf %122, %126 : vector<1x16xf32>
    %c0_100 = arith.constant 0 : index
    %c0_101 = arith.constant 0 : index
    %128 = vector.load %arg15[%c0_100, %c0_101] : memref<8x16xf32, #tpu.memory_space<vmem>>, vector<1x16xf32>
    tpu.vector_store %arg15[%c0_100, %c0_101], %127 {strides = array<i32>} : memref<8x16xf32, #tpu.memory_space<vmem>>, vector<1x16xf32>,
    %129 = arith.truncf %127 : vector<1x16xf32> to vector<1x16xbf16>
    %c1_102 = arith.constant 1 : index
    %c0_103 = arith.constant 0 : index
    %130 = vector.load %arg11[%c1_102, %c0_103] : memref<8x16xf32, #tpu.memory_space<vmem>>, vector<1x16xf32>
    %c0_104 = arith.constant 0 : index
    %c0_105 = arith.constant 0 : index
    %c0_106 = arith.constant 0 : index
    %131 = vector.load %arg6[%c0_104, %c0_105, %c0_106] : memref<4x16x16xbf16, #tpu.memory_space<vmem>>, vector<1x16x16xbf16>
    %132 = vector.shape_cast %131 : vector<1x16x16xbf16> to vector<16x16xbf16>
    %cst_107 = arith.constant dense<0.000000e+00> : vector<1x16xf32>
    %133 = tpu.matmul %129, %132, %cst_107 {dimension_numbers = #tpu.dot_dimension_numbers<[1], [0], [0], [1], [0, 0, 1, 1], [], []>} : vector<1x16xbf16>, vector<16x16xbf16>, vector<1x16xf32> -> vector<1x16xf32>
    %134 = arith.addf %130, %133 : vector<1x16xf32>
    %c1_108 = arith.constant 1 : index
    %c0_109 = arith.constant 0 : index
    %135 = vector.load %arg12[%c1_108, %c0_109] : memref<8x16xf32, #tpu.memory_space<vmem>>, vector<1x16xf32>
    %c1_110 = arith.constant 1 : index
    %c0_111 = arith.constant 0 : index
    %c0_112 = arith.constant 0 : index
    %136 = vector.load %arg6[%c1_110, %c0_111, %c0_112] : memref<4x16x16xbf16, #tpu.memory_space<vmem>>, vector<1x16x16xbf16>
    %137 = vector.shape_cast %136 : vector<1x16x16xbf16> to vector<16x16xbf16>
    %cst_113 = arith.constant dense<0.000000e+00> : vector<1x16xf32>
    %138 = tpu.matmul %129, %137, %cst_113 {dimension_numbers = #tpu.dot_dimension_numbers<[1], [0], [0], [1], [0, 0, 1, 1], [], []>} : vector<1x16xbf16>, vector<16x16xbf16>, vector<1x16xf32> -> vector<1x16xf32>
    %139 = arith.addf %135, %138 : vector<1x16xf32>
    %c1_114 = arith.constant 1 : index
    %c0_115 = arith.constant 0 : index
    %140 = vector.load %arg13[%c1_114, %c0_115] : memref<8x16xf32, #tpu.memory_space<vmem>>, vector<1x16xf32>
    %c2_116 = arith.constant 2 : index
    %c0_117 = arith.constant 0 : index
    %c0_118 = arith.constant 0 : index
    %141 = vector.load %arg6[%c2_116, %c0_117, %c0_118] : memref<4x16x16xbf16, #tpu.memory_space<vmem>>, vector<1x16x16xbf16>
    %142 = vector.shape_cast %141 : vector<1x16x16xbf16> to vector<16x16xbf16>
    %cst_119 = arith.constant dense<0.000000e+00> : vector<1x16xf32>
    %143 = tpu.matmul %129, %142, %cst_119 {dimension_numbers = #tpu.dot_dimension_numbers<[1], [0], [0], [1], [0, 0, 1, 1], [], []>} : vector<1x16xbf16>, vector<16x16xbf16>, vector<1x16xf32> -> vector<1x16xf32>
    %144 = arith.addf %140, %143 : vector<1x16xf32>
    %c1_120 = arith.constant 1 : index
    %c0_121 = arith.constant 0 : index
    %145 = vector.load %arg14[%c1_120, %c0_121] : memref<8x16xf32, #tpu.memory_space<vmem>>, vector<1x16xf32>
    %c3_122 = arith.constant 3 : index
    %c0_123 = arith.constant 0 : index
    %c0_124 = arith.constant 0 : index
    %146 = vector.load %arg6[%c3_122, %c0_123, %c0_124] : memref<4x16x16xbf16, #tpu.memory_space<vmem>>, vector<1x16x16xbf16>
    %147 = vector.shape_cast %146 : vector<1x16x16xbf16> to vector<16x16xbf16>
    %cst_125 = arith.constant dense<0.000000e+00> : vector<1x16xf32>
    %148 = tpu.matmul %129, %147, %cst_125 {dimension_numbers = #tpu.dot_dimension_numbers<[1], [0], [0], [1], [0, 0, 1, 1], [], []>} : vector<1x16xbf16>, vector<16x16xbf16>, vector<1x16xf32> -> vector<1x16xf32>
    %149 = arith.addf %145, %148 : vector<1x16xf32>
    %150 = arith.negf %134 : vector<1x16xf32>
    %151 = math.exp %150 : vector<1x16xf32>
    %cst_126 = arith.constant 1.000000e+00 : f32
    %152 = vector.broadcast %cst_126 : f32 to vector<1x16xf32>
    %153 = arith.addf %152, %151 : vector<1x16xf32>
    %154 = arith.divf %152, %153 : vector<1x16xf32>
    %155 = arith.negf %139 : vector<1x16xf32>
    %156 = math.exp %155 : vector<1x16xf32>
    %cst_127 = arith.constant 1.000000e+00 : f32
    %157 = vector.broadcast %cst_127 : f32 to vector<1x16xf32>
    %158 = arith.addf %157, %156 : vector<1x16xf32>
    %159 = arith.divf %157, %158 : vector<1x16xf32>
    %160 = math.tanh %144 : vector<1x16xf32>
    %161 = arith.negf %149 : vector<1x16xf32>
    %162 = math.exp %161 : vector<1x16xf32>
    %cst_128 = arith.constant 1.000000e+00 : f32
    %163 = vector.broadcast %cst_128 : f32 to vector<1x16xf32>
    %164 = arith.addf %163, %162 : vector<1x16xf32>
    %165 = arith.divf %163, %164 : vector<1x16xf32>
    %166 = arith.mulf %159, %125 : vector<1x16xf32>
    %167 = arith.mulf %154, %160 : vector<1x16xf32>
    %168 = arith.addf %166, %167 : vector<1x16xf32>
    %169 = math.tanh %168 : vector<1x16xf32>
    %170 = arith.mulf %165, %169 : vector<1x16xf32>
    %c1_129 = arith.constant 1 : index
    %c0_130 = arith.constant 0 : index
    %171 = vector.load %arg15[%c1_129, %c0_130] : memref<8x16xf32, #tpu.memory_space<vmem>>, vector<1x16xf32>
    tpu.vector_store %arg15[%c1_129, %c0_130], %170 {strides = array<i32>} : memref<8x16xf32, #tpu.memory_space<vmem>>, vector<1x16xf32>,
    %172 = arith.truncf %170 : vector<1x16xf32> to vector<1x16xbf16>
    %c2_131 = arith.constant 2 : index
    %c0_132 = arith.constant 0 : index
    %173 = vector.load %arg11[%c2_131, %c0_132] : memref<8x16xf32, #tpu.memory_space<vmem>>, vector<1x16xf32>
    %c0_133 = arith.constant 0 : index
    %c0_134 = arith.constant 0 : index
    %c0_135 = arith.constant 0 : index
    %174 = vector.load %arg6[%c0_133, %c0_134, %c0_135] : memref<4x16x16xbf16, #tpu.memory_space<vmem>>, vector<1x16x16xbf16>
    %175 = vector.shape_cast %174 : vector<1x16x16xbf16> to vector<16x16xbf16>
    %cst_136 = arith.constant dense<0.000000e+00> : vector<1x16xf32>
    %176 = tpu.matmul %172, %175, %cst_136 {dimension_numbers = #tpu.dot_dimension_numbers<[1], [0], [0], [1], [0, 0, 1, 1], [], []>} : vector<1x16xbf16>, vector<16x16xbf16>, vector<1x16xf32> -> vector<1x16xf32>
    %177 = arith.addf %173, %176 : vector<1x16xf32>
    %c2_137 = arith.constant 2 : index
    %c0_138 = arith.constant 0 : index
    %178 = vector.load %arg12[%c2_137, %c0_138] : memref<8x16xf32, #tpu.memory_space<vmem>>, vector<1x16xf32>
    %c1_139 = arith.constant 1 : index
    %c0_140 = arith.constant 0 : index
    %c0_141 = arith.constant 0 : index
    %179 = vector.load %arg6[%c1_139, %c0_140, %c0_141] : memref<4x16x16xbf16, #tpu.memory_space<vmem>>, vector<1x16x16xbf16>
    %180 = vector.shape_cast %179 : vector<1x16x16xbf16> to vector<16x16xbf16>
    %cst_142 = arith.constant dense<0.000000e+00> : vector<1x16xf32>
    %181 = tpu.matmul %172, %180, %cst_142 {dimension_numbers = #tpu.dot_dimension_numbers<[1], [0], [0], [1], [0, 0, 1, 1], [], []>} : vector<1x16xbf16>, vector<16x16xbf16>, vector<1x16xf32> -> vector<1x16xf32>
    %182 = arith.addf %178, %181 : vector<1x16xf32>
    %c2_143 = arith.constant 2 : index
    %c0_144 = arith.constant 0 : index
    %183 = vector.load %arg13[%c2_143, %c0_144] : memref<8x16xf32, #tpu.memory_space<vmem>>, vector<1x16xf32>
    %c2_145 = arith.constant 2 : index
    %c0_146 = arith.constant 0 : index
    %c0_147 = arith.constant 0 : index
    %184 = vector.load %arg6[%c2_145, %c0_146, %c0_147] : memref<4x16x16xbf16, #tpu.memory_space<vmem>>, vector<1x16x16xbf16>
    %185 = vector.shape_cast %184 : vector<1x16x16xbf16> to vector<16x16xbf16>
    %cst_148 = arith.constant dense<0.000000e+00> : vector<1x16xf32>
    %186 = tpu.matmul %172, %185, %cst_148 {dimension_numbers = #tpu.dot_dimension_numbers<[1], [0], [0], [1], [0, 0, 1, 1], [], []>} : vector<1x16xbf16>, vector<16x16xbf16>, vector<1x16xf32> -> vector<1x16xf32>
    %187 = arith.addf %183, %186 : vector<1x16xf32>
    %c2_149 = arith.constant 2 : index
    %c0_150 = arith.constant 0 : index
    %188 = vector.load %arg14[%c2_149, %c0_150] : memref<8x16xf32, #tpu.memory_space<vmem>>, vector<1x16xf32>
    %c3_151 = arith.constant 3 : index
    %c0_152 = arith.constant 0 : index
    %c0_153 = arith.constant 0 : index
    %189 = vector.load %arg6[%c3_151, %c0_152, %c0_153] : memref<4x16x16xbf16, #tpu.memory_space<vmem>>, vector<1x16x16xbf16>
    %190 = vector.shape_cast %189 : vector<1x16x16xbf16> to vector<16x16xbf16>
    %cst_154 = arith.constant dense<0.000000e+00> : vector<1x16xf32>
    %191 = tpu.matmul %172, %190, %cst_154 {dimension_numbers = #tpu.dot_dimension_numbers<[1], [0], [0], [1], [0, 0, 1, 1], [], []>} : vector<1x16xbf16>, vector<16x16xbf16>, vector<1x16xf32> -> vector<1x16xf32>
    %192 = arith.addf %188, %191 : vector<1x16xf32>
    %193 = arith.negf %177 : vector<1x16xf32>
    %194 = math.exp %193 : vector<1x16xf32>
    %cst_155 = arith.constant 1.000000e+00 : f32
    %195 = vector.broadcast %cst_155 : f32 to vector<1x16xf32>
    %196 = arith.addf %195, %194 : vector<1x16xf32>
    %197 = arith.divf %195, %196 : vector<1x16xf32>
    %198 = arith.negf %182 : vector<1x16xf32>
    %199 = math.exp %198 : vector<1x16xf32>
    %cst_156 = arith.constant 1.000000e+00 : f32
    %200 = vector.broadcast %cst_156 : f32 to vector<1x16xf32>
    %201 = arith.addf %200, %199 : vector<1x16xf32>
    %202 = arith.divf %200, %201 : vector<1x16xf32>
    %203 = math.tanh %187 : vector<1x16xf32>
    %204 = arith.negf %192 : vector<1x16xf32>
    %205 = math.exp %204 : vector<1x16xf32>
    %cst_157 = arith.constant 1.000000e+00 : f32
    %206 = vector.broadcast %cst_157 : f32 to vector<1x16xf32>
    %207 = arith.addf %206, %205 : vector<1x16xf32>
    %208 = arith.divf %206, %207 : vector<1x16xf32>
    %209 = arith.mulf %202, %168 : vector<1x16xf32>
    %210 = arith.mulf %197, %203 : vector<1x16xf32>
    %211 = arith.addf %209, %210 : vector<1x16xf32>
    %212 = math.tanh %211 : vector<1x16xf32>
    %213 = arith.mulf %208, %212 : vector<1x16xf32>
    %c2_158 = arith.constant 2 : index
    %c0_159 = arith.constant 0 : index
    %214 = vector.load %arg15[%c2_158, %c0_159] : memref<8x16xf32, #tpu.memory_space<vmem>>, vector<1x16xf32>
    tpu.vector_store %arg15[%c2_158, %c0_159], %213 {strides = array<i32>} : memref<8x16xf32, #tpu.memory_space<vmem>>, vector<1x16xf32>,
    %215 = arith.truncf %213 : vector<1x16xf32> to vector<1x16xbf16>
    %c3_160 = arith.constant 3 : index
    %c0_161 = arith.constant 0 : index
    %216 = vector.load %arg11[%c3_160, %c0_161] : memref<8x16xf32, #tpu.memory_space<vmem>>, vector<1x16xf32>
    %c0_162 = arith.constant 0 : index
    %c0_163 = arith.constant 0 : index
    %c0_164 = arith.constant 0 : index
    %217 = vector.load %arg6[%c0_162, %c0_163, %c0_164] : memref<4x16x16xbf16, #tpu.memory_space<vmem>>, vector<1x16x16xbf16>
    %218 = vector.shape_cast %217 : vector<1x16x16xbf16> to vector<16x16xbf16>
    %cst_165 = arith.constant dense<0.000000e+00> : vector<1x16xf32>
    %219 = tpu.matmul %215, %218, %cst_165 {dimension_numbers = #tpu.dot_dimension_numbers<[1], [0], [0], [1], [0, 0, 1, 1], [], []>} : vector<1x16xbf16>, vector<16x16xbf16>, vector<1x16xf32> -> vector<1x16xf32>
    %220 = arith.addf %216, %219 : vector<1x16xf32>
    %c3_166 = arith.constant 3 : index
    %c0_167 = arith.constant 0 : index
    %221 = vector.load %arg12[%c3_166, %c0_167] : memref<8x16xf32, #tpu.memory_space<vmem>>, vector<1x16xf32>
    %c1_168 = arith.constant 1 : index
    %c0_169 = arith.constant 0 : index
    %c0_170 = arith.constant 0 : index
    %222 = vector.load %arg6[%c1_168, %c0_169, %c0_170] : memref<4x16x16xbf16, #tpu.memory_space<vmem>>, vector<1x16x16xbf16>
    %223 = vector.shape_cast %222 : vector<1x16x16xbf16> to vector<16x16xbf16>
    %cst_171 = arith.constant dense<0.000000e+00> : vector<1x16xf32>
    %224 = tpu.matmul %215, %223, %cst_171 {dimension_numbers = #tpu.dot_dimension_numbers<[1], [0], [0], [1], [0, 0, 1, 1], [], []>} : vector<1x16xbf16>, vector<16x16xbf16>, vector<1x16xf32> -> vector<1x16xf32>
    %225 = arith.addf %221, %224 : vector<1x16xf32>
    %c3_172 = arith.constant 3 : index
    %c0_173 = arith.constant 0 : index
    %226 = vector.load %arg13[%c3_172, %c0_173] : memref<8x16xf32, #tpu.memory_space<vmem>>, vector<1x16xf32>
    %c2_174 = arith.constant 2 : index
    %c0_175 = arith.constant 0 : index
    %c0_176 = arith.constant 0 : index
    %227 = vector.load %arg6[%c2_174, %c0_175, %c0_176] : memref<4x16x16xbf16, #tpu.memory_space<vmem>>, vector<1x16x16xbf16>
    %228 = vector.shape_cast %227 : vector<1x16x16xbf16> to vector<16x16xbf16>
    %cst_177 = arith.constant dense<0.000000e+00> : vector<1x16xf32>
    %229 = tpu.matmul %215, %228, %cst_177 {dimension_numbers = #tpu.dot_dimension_numbers<[1], [0], [0], [1], [0, 0, 1, 1], [], []>} : vector<1x16xbf16>, vector<16x16xbf16>, vector<1x16xf32> -> vector<1x16xf32>
    %230 = arith.addf %226, %229 : vector<1x16xf32>
    %c3_178 = arith.constant 3 : index
    %c0_179 = arith.constant 0 : index
    %231 = vector.load %arg14[%c3_178, %c0_179] : memref<8x16xf32, #tpu.memory_space<vmem>>, vector<1x16xf32>
    %c3_180 = arith.constant 3 : index
    %c0_181 = arith.constant 0 : index
    %c0_182 = arith.constant 0 : index
    %232 = vector.load %arg6[%c3_180, %c0_181, %c0_182] : memref<4x16x16xbf16, #tpu.memory_space<vmem>>, vector<1x16x16xbf16>
    %233 = vector.shape_cast %232 : vector<1x16x16xbf16> to vector<16x16xbf16>
    %cst_183 = arith.constant dense<0.000000e+00> : vector<1x16xf32>
    %234 = tpu.matmul %215, %233, %cst_183 {dimension_numbers = #tpu.dot_dimension_numbers<[1], [0], [0], [1], [0, 0, 1, 1], [], []>} : vector<1x16xbf16>, vector<16x16xbf16>, vector<1x16xf32> -> vector<1x16xf32>
    %235 = arith.addf %231, %234 : vector<1x16xf32>
    %236 = arith.negf %220 : vector<1x16xf32>
    %237 = math.exp %236 : vector<1x16xf32>
    %cst_184 = arith.constant 1.000000e+00 : f32
    %238 = vector.broadcast %cst_184 : f32 to vector<1x16xf32>
    %239 = arith.addf %238, %237 : vector<1x16xf32>
    %240 = arith.divf %238, %239 : vector<1x16xf32>
    %241 = arith.negf %225 : vector<1x16xf32>
    %242 = math.exp %241 : vector<1x16xf32>
    %cst_185 = arith.constant 1.000000e+00 : f32
    %243 = vector.broadcast %cst_185 : f32 to vector<1x16xf32>
    %244 = arith.addf %243, %242 : vector<1x16xf32>
    %245 = arith.divf %243, %244 : vector<1x16xf32>
    %246 = math.tanh %230 : vector<1x16xf32>
    %247 = arith.negf %235 : vector<1x16xf32>
    %248 = math.exp %247 : vector<1x16xf32>
    %cst_186 = arith.constant 1.000000e+00 : f32
    %249 = vector.broadcast %cst_186 : f32 to vector<1x16xf32>
    %250 = arith.addf %249, %248 : vector<1x16xf32>
    %251 = arith.divf %249, %250 : vector<1x16xf32>
    %252 = arith.mulf %245, %211 : vector<1x16xf32>
    %253 = arith.mulf %240, %246 : vector<1x16xf32>
    %254 = arith.addf %252, %253 : vector<1x16xf32>
    %255 = math.tanh %254 : vector<1x16xf32>
    %256 = arith.mulf %251, %255 : vector<1x16xf32>
    %c3_187 = arith.constant 3 : index
    %c0_188 = arith.constant 0 : index
    %257 = vector.load %arg15[%c3_187, %c0_188] : memref<8x16xf32, #tpu.memory_space<vmem>>, vector<1x16xf32>
    tpu.vector_store %arg15[%c3_187, %c0_188], %256 {strides = array<i32>} : memref<8x16xf32, #tpu.memory_space<vmem>>, vector<1x16xf32>,
    %258 = arith.truncf %256 : vector<1x16xf32> to vector<1x16xbf16>
    %c4 = arith.constant 4 : index
    %c0_189 = arith.constant 0 : index
    %259 = vector.load %arg11[%c4, %c0_189] : memref<8x16xf32, #tpu.memory_space<vmem>>, vector<1x16xf32>
    %c0_190 = arith.constant 0 : index
    %c0_191 = arith.constant 0 : index
    %c0_192 = arith.constant 0 : index
    %260 = vector.load %arg6[%c0_190, %c0_191, %c0_192] : memref<4x16x16xbf16, #tpu.memory_space<vmem>>, vector<1x16x16xbf16>
    %261 = vector.shape_cast %260 : vector<1x16x16xbf16> to vector<16x16xbf16>
    %cst_193 = arith.constant dense<0.000000e+00> : vector<1x16xf32>
    %262 = tpu.matmul %258, %261, %cst_193 {dimension_numbers = #tpu.dot_dimension_numbers<[1], [0], [0], [1], [0, 0, 1, 1], [], []>} : vector<1x16xbf16>, vector<16x16xbf16>, vector<1x16xf32> -> vector<1x16xf32>
    %263 = arith.addf %259, %262 : vector<1x16xf32>
    %c4_194 = arith.constant 4 : index
    %c0_195 = arith.constant 0 : index
    %264 = vector.load %arg12[%c4_194, %c0_195] : memref<8x16xf32, #tpu.memory_space<vmem>>, vector<1x16xf32>
    %c1_196 = arith.constant 1 : index
    %c0_197 = arith.constant 0 : index
    %c0_198 = arith.constant 0 : index
    %265 = vector.load %arg6[%c1_196, %c0_197, %c0_198] : memref<4x16x16xbf16, #tpu.memory_space<vmem>>, vector<1x16x16xbf16>
    %266 = vector.shape_cast %265 : vector<1x16x16xbf16> to vector<16x16xbf16>
    %cst_199 = arith.constant dense<0.000000e+00> : vector<1x16xf32>
    %267 = tpu.matmul %258, %266, %cst_199 {dimension_numbers = #tpu.dot_dimension_numbers<[1], [0], [0], [1], [0, 0, 1, 1], [], []>} : vector<1x16xbf16>, vector<16x16xbf16>, vector<1x16xf32> -> vector<1x16xf32>
    %268 = arith.addf %264, %267 : vector<1x16xf32>
    %c4_200 = arith.constant 4 : index
    %c0_201 = arith.constant 0 : index
    %269 = vector.load %arg13[%c4_200, %c0_201] : memref<8x16xf32, #tpu.memory_space<vmem>>, vector<1x16xf32>
    %c2_202 = arith.constant 2 : index
    %c0_203 = arith.constant 0 : index
    %c0_204 = arith.constant 0 : index
    %270 = vector.load %arg6[%c2_202, %c0_203, %c0_204] : memref<4x16x16xbf16, #tpu.memory_space<vmem>>, vector<1x16x16xbf16>
    %271 = vector.shape_cast %270 : vector<1x16x16xbf16> to vector<16x16xbf16>
    %cst_205 = arith.constant dense<0.000000e+00> : vector<1x16xf32>
    %272 = tpu.matmul %258, %271, %cst_205 {dimension_numbers = #tpu.dot_dimension_numbers<[1], [0], [0], [1], [0, 0, 1, 1], [], []>} : vector<1x16xbf16>, vector<16x16xbf16>, vector<1x16xf32> -> vector<1x16xf32>
    %273 = arith.addf %269, %272 : vector<1x16xf32>
    %c4_206 = arith.constant 4 : index
    %c0_207 = arith.constant 0 : index
    %274 = vector.load %arg14[%c4_206, %c0_207] : memref<8x16xf32, #tpu.memory_space<vmem>>, vector<1x16xf32>
    %c3_208 = arith.constant 3 : index
    %c0_209 = arith.constant 0 : index
    %c0_210 = arith.constant 0 : index
    %275 = vector.load %arg6[%c3_208, %c0_209, %c0_210] : memref<4x16x16xbf16, #tpu.memory_space<vmem>>, vector<1x16x16xbf16>
    %276 = vector.shape_cast %275 : vector<1x16x16xbf16> to vector<16x16xbf16>
    %cst_211 = arith.constant dense<0.000000e+00> : vector<1x16xf32>
    %277 = tpu.matmul %258, %276, %cst_211 {dimension_numbers = #tpu.dot_dimension_numbers<[1], [0], [0], [1], [0, 0, 1, 1], [], []>} : vector<1x16xbf16>, vector<16x16xbf16>, vector<1x16xf32> -> vector<1x16xf32>
    %278 = arith.addf %274, %277 : vector<1x16xf32>
    %279 = arith.negf %263 : vector<1x16xf32>
    %280 = math.exp %279 : vector<1x16xf32>
    %cst_212 = arith.constant 1.000000e+00 : f32
    %281 = vector.broadcast %cst_212 : f32 to vector<1x16xf32>
    %282 = arith.addf %281, %280 : vector<1x16xf32>
    %283 = arith.divf %281, %282 : vector<1x16xf32>
    %284 = arith.negf %268 : vector<1x16xf32>
    %285 = math.exp %284 : vector<1x16xf32>
    %cst_213 = arith.constant 1.000000e+00 : f32
    %286 = vector.broadcast %cst_213 : f32 to vector<1x16xf32>
    %287 = arith.addf %286, %285 : vector<1x16xf32>
    %288 = arith.divf %286, %287 : vector<1x16xf32>
    %289 = math.tanh %273 : vector<1x16xf32>
    %290 = arith.negf %278 : vector<1x16xf32>
    %291 = math.exp %290 : vector<1x16xf32>
    %cst_214 = arith.constant 1.000000e+00 : f32
    %292 = vector.broadcast %cst_214 : f32 to vector<1x16xf32>
    %293 = arith.addf %292, %291 : vector<1x16xf32>
    %294 = arith.divf %292, %293 : vector<1x16xf32>
    %295 = arith.mulf %288, %254 : vector<1x16xf32>
    %296 = arith.mulf %283, %289 : vector<1x16xf32>
    %297 = arith.addf %295, %296 : vector<1x16xf32>
    %298 = math.tanh %297 : vector<1x16xf32>
    %299 = arith.mulf %294, %298 : vector<1x16xf32>
    %c4_215 = arith.constant 4 : index
    %c0_216 = arith.constant 0 : index
    %300 = vector.load %arg15[%c4_215, %c0_216] : memref<8x16xf32, #tpu.memory_space<vmem>>, vector<1x16xf32>
    tpu.vector_store %arg15[%c4_215, %c0_216], %299 {strides = array<i32>} : memref<8x16xf32, #tpu.memory_space<vmem>>, vector<1x16xf32>,
    %301 = arith.truncf %299 : vector<1x16xf32> to vector<1x16xbf16>
    %c5 = arith.constant 5 : index
    %c0_217 = arith.constant 0 : index
    %302 = vector.load %arg11[%c5, %c0_217] : memref<8x16xf32, #tpu.memory_space<vmem>>, vector<1x16xf32>
    %c0_218 = arith.constant 0 : index
    %c0_219 = arith.constant 0 : index
    %c0_220 = arith.constant 0 : index
    %303 = vector.load %arg6[%c0_218, %c0_219, %c0_220] : memref<4x16x16xbf16, #tpu.memory_space<vmem>>, vector<1x16x16xbf16>
    %304 = vector.shape_cast %303 : vector<1x16x16xbf16> to vector<16x16xbf16>
    %cst_221 = arith.constant dense<0.000000e+00> : vector<1x16xf32>
    %305 = tpu.matmul %301, %304, %cst_221 {dimension_numbers = #tpu.dot_dimension_numbers<[1], [0], [0], [1], [0, 0, 1, 1], [], []>} : vector<1x16xbf16>, vector<16x16xbf16>, vector<1x16xf32> -> vector<1x16xf32>
    %306 = arith.addf %302, %305 : vector<1x16xf32>
    %c5_222 = arith.constant 5 : index
    %c0_223 = arith.constant 0 : index
    %307 = vector.load %arg12[%c5_222, %c0_223] : memref<8x16xf32, #tpu.memory_space<vmem>>, vector<1x16xf32>
    %c1_224 = arith.constant 1 : index
    %c0_225 = arith.constant 0 : index
    %c0_226 = arith.constant 0 : index
    %308 = vector.load %arg6[%c1_224, %c0_225, %c0_226] : memref<4x16x16xbf16, #tpu.memory_space<vmem>>, vector<1x16x16xbf16>
    %309 = vector.shape_cast %308 : vector<1x16x16xbf16> to vector<16x16xbf16>
    %cst_227 = arith.constant dense<0.000000e+00> : vector<1x16xf32>
    %310 = tpu.matmul %301, %309, %cst_227 {dimension_numbers = #tpu.dot_dimension_numbers<[1], [0], [0], [1], [0, 0, 1, 1], [], []>} : vector<1x16xbf16>, vector<16x16xbf16>, vector<1x16xf32> -> vector<1x16xf32>
    %311 = arith.addf %307, %310 : vector<1x16xf32>
    %c5_228 = arith.constant 5 : index
    %c0_229 = arith.constant 0 : index
    %312 = vector.load %arg13[%c5_228, %c0_229] : memref<8x16xf32, #tpu.memory_space<vmem>>, vector<1x16xf32>
    %c2_230 = arith.constant 2 : index
    %c0_231 = arith.constant 0 : index
    %c0_232 = arith.constant 0 : index
    %313 = vector.load %arg6[%c2_230, %c0_231, %c0_232] : memref<4x16x16xbf16, #tpu.memory_space<vmem>>, vector<1x16x16xbf16>
    %314 = vector.shape_cast %313 : vector<1x16x16xbf16> to vector<16x16xbf16>
    %cst_233 = arith.constant dense<0.000000e+00> : vector<1x16xf32>
    %315 = tpu.matmul %301, %314, %cst_233 {dimension_numbers = #tpu.dot_dimension_numbers<[1], [0], [0], [1], [0, 0, 1, 1], [], []>} : vector<1x16xbf16>, vector<16x16xbf16>, vector<1x16xf32> -> vector<1x16xf32>
    %316 = arith.addf %312, %315 : vector<1x16xf32>
    %c5_234 = arith.constant 5 : index
    %c0_235 = arith.constant 0 : index
    %317 = vector.load %arg14[%c5_234, %c0_235] : memref<8x16xf32, #tpu.memory_space<vmem>>, vector<1x16xf32>
    %c3_236 = arith.constant 3 : index
    %c0_237 = arith.constant 0 : index
    %c0_238 = arith.constant 0 : index
    %318 = vector.load %arg6[%c3_236, %c0_237, %c0_238] : memref<4x16x16xbf16, #tpu.memory_space<vmem>>, vector<1x16x16xbf16>
    %319 = vector.shape_cast %318 : vector<1x16x16xbf16> to vector<16x16xbf16>
    %cst_239 = arith.constant dense<0.000000e+00> : vector<1x16xf32>
    %320 = tpu.matmul %301, %319, %cst_239 {dimension_numbers = #tpu.dot_dimension_numbers<[1], [0], [0], [1], [0, 0, 1, 1], [], []>} : vector<1x16xbf16>, vector<16x16xbf16>, vector<1x16xf32> -> vector<1x16xf32>
    %321 = arith.addf %317, %320 : vector<1x16xf32>
    %322 = arith.negf %306 : vector<1x16xf32>
    %323 = math.exp %322 : vector<1x16xf32>
    %cst_240 = arith.constant 1.000000e+00 : f32
    %324 = vector.broadcast %cst_240 : f32 to vector<1x16xf32>
    %325 = arith.addf %324, %323 : vector<1x16xf32>
    %326 = arith.divf %324, %325 : vector<1x16xf32>
    %327 = arith.negf %311 : vector<1x16xf32>
    %328 = math.exp %327 : vector<1x16xf32>
    %cst_241 = arith.constant 1.000000e+00 : f32
    %329 = vector.broadcast %cst_241 : f32 to vector<1x16xf32>
    %330 = arith.addf %329, %328 : vector<1x16xf32>
    %331 = arith.divf %329, %330 : vector<1x16xf32>
    %332 = math.tanh %316 : vector<1x16xf32>
    %333 = arith.negf %321 : vector<1x16xf32>
    %334 = math.exp %333 : vector<1x16xf32>
    %cst_242 = arith.constant 1.000000e+00 : f32
    %335 = vector.broadcast %cst_242 : f32 to vector<1x16xf32>
    %336 = arith.addf %335, %334 : vector<1x16xf32>
    %337 = arith.divf %335, %336 : vector<1x16xf32>
    %338 = arith.mulf %331, %297 : vector<1x16xf32>
    %339 = arith.mulf %326, %332 : vector<1x16xf32>
    %340 = arith.addf %338, %339 : vector<1x16xf32>
    %341 = math.tanh %340 : vector<1x16xf32>
    %342 = arith.mulf %337, %341 : vector<1x16xf32>
    %c5_243 = arith.constant 5 : index
    %c0_244 = arith.constant 0 : index
    %343 = vector.load %arg15[%c5_243, %c0_244] : memref<8x16xf32, #tpu.memory_space<vmem>>, vector<1x16xf32>
    tpu.vector_store %arg15[%c5_243, %c0_244], %342 {strides = array<i32>} : memref<8x16xf32, #tpu.memory_space<vmem>>, vector<1x16xf32>,
    %344 = arith.truncf %342 : vector<1x16xf32> to vector<1x16xbf16>
    %c6 = arith.constant 6 : index
    %c0_245 = arith.constant 0 : index
    %345 = vector.load %arg11[%c6, %c0_245] : memref<8x16xf32, #tpu.memory_space<vmem>>, vector<1x16xf32>
    %c0_246 = arith.constant 0 : index
    %c0_247 = arith.constant 0 : index
    %c0_248 = arith.constant 0 : index
    %346 = vector.load %arg6[%c0_246, %c0_247, %c0_248] : memref<4x16x16xbf16, #tpu.memory_space<vmem>>, vector<1x16x16xbf16>
    %347 = vector.shape_cast %346 : vector<1x16x16xbf16> to vector<16x16xbf16>
    %cst_249 = arith.constant dense<0.000000e+00> : vector<1x16xf32>
    %348 = tpu.matmul %344, %347, %cst_249 {dimension_numbers = #tpu.dot_dimension_numbers<[1], [0], [0], [1], [0, 0, 1, 1], [], []>} : vector<1x16xbf16>, vector<16x16xbf16>, vector<1x16xf32> -> vector<1x16xf32>
    %349 = arith.addf %345, %348 : vector<1x16xf32>
    %c6_250 = arith.constant 6 : index
    %c0_251 = arith.constant 0 : index
    %350 = vector.load %arg12[%c6_250, %c0_251] : memref<8x16xf32, #tpu.memory_space<vmem>>, vector<1x16xf32>
    %c1_252 = arith.constant 1 : index
    %c0_253 = arith.constant 0 : index
    %c0_254 = arith.constant 0 : index
    %351 = vector.load %arg6[%c1_252, %c0_253, %c0_254] : memref<4x16x16xbf16, #tpu.memory_space<vmem>>, vector<1x16x16xbf16>
    %352 = vector.shape_cast %351 : vector<1x16x16xbf16> to vector<16x16xbf16>
    %cst_255 = arith.constant dense<0.000000e+00> : vector<1x16xf32>
    %353 = tpu.matmul %344, %352, %cst_255 {dimension_numbers = #tpu.dot_dimension_numbers<[1], [0], [0], [1], [0, 0, 1, 1], [], []>} : vector<1x16xbf16>, vector<16x16xbf16>, vector<1x16xf32> -> vector<1x16xf32>
    %354 = arith.addf %350, %353 : vector<1x16xf32>
    %c6_256 = arith.constant 6 : index
    %c0_257 = arith.constant 0 : index
    %355 = vector.load %arg13[%c6_256, %c0_257] : memref<8x16xf32, #tpu.memory_space<vmem>>, vector<1x16xf32>
    %c2_258 = arith.constant 2 : index
    %c0_259 = arith.constant 0 : index
    %c0_260 = arith.constant 0 : index
    %356 = vector.load %arg6[%c2_258, %c0_259, %c0_260] : memref<4x16x16xbf16, #tpu.memory_space<vmem>>, vector<1x16x16xbf16>
    %357 = vector.shape_cast %356 : vector<1x16x16xbf16> to vector<16x16xbf16>
    %cst_261 = arith.constant dense<0.000000e+00> : vector<1x16xf32>
    %358 = tpu.matmul %344, %357, %cst_261 {dimension_numbers = #tpu.dot_dimension_numbers<[1], [0], [0], [1], [0, 0, 1, 1], [], []>} : vector<1x16xbf16>, vector<16x16xbf16>, vector<1x16xf32> -> vector<1x16xf32>
    %359 = arith.addf %355, %358 : vector<1x16xf32>
    %c6_262 = arith.constant 6 : index
    %c0_263 = arith.constant 0 : index
    %360 = vector.load %arg14[%c6_262, %c0_263] : memref<8x16xf32, #tpu.memory_space<vmem>>, vector<1x16xf32>
    %c3_264 = arith.constant 3 : index
    %c0_265 = arith.constant 0 : index
    %c0_266 = arith.constant 0 : index
    %361 = vector.load %arg6[%c3_264, %c0_265, %c0_266] : memref<4x16x16xbf16, #tpu.memory_space<vmem>>, vector<1x16x16xbf16>
    %362 = vector.shape_cast %361 : vector<1x16x16xbf16> to vector<16x16xbf16>
    %cst_267 = arith.constant dense<0.000000e+00> : vector<1x16xf32>
    %363 = tpu.matmul %344, %362, %cst_267 {dimension_numbers = #tpu.dot_dimension_numbers<[1], [0], [0], [1], [0, 0, 1, 1], [], []>} : vector<1x16xbf16>, vector<16x16xbf16>, vector<1x16xf32> -> vector<1x16xf32>
    %364 = arith.addf %360, %363 : vector<1x16xf32>
    %365 = arith.negf %349 : vector<1x16xf32>
    %366 = math.exp %365 : vector<1x16xf32>
    %cst_268 = arith.constant 1.000000e+00 : f32
    %367 = vector.broadcast %cst_268 : f32 to vector<1x16xf32>
    %368 = arith.addf %367, %366 : vector<1x16xf32>
    %369 = arith.divf %367, %368 : vector<1x16xf32>
    %370 = arith.negf %354 : vector<1x16xf32>
    %371 = math.exp %370 : vector<1x16xf32>
    %cst_269 = arith.constant 1.000000e+00 : f32
    %372 = vector.broadcast %cst_269 : f32 to vector<1x16xf32>
    %373 = arith.addf %372, %371 : vector<1x16xf32>
    %374 = arith.divf %372, %373 : vector<1x16xf32>
    %375 = math.tanh %359 : vector<1x16xf32>
    %376 = arith.negf %364 : vector<1x16xf32>
    %377 = math.exp %376 : vector<1x16xf32>
    %cst_270 = arith.constant 1.000000e+00 : f32
    %378 = vector.broadcast %cst_270 : f32 to vector<1x16xf32>
    %379 = arith.addf %378, %377 : vector<1x16xf32>
    %380 = arith.divf %378, %379 : vector<1x16xf32>
    %381 = arith.mulf %374, %340 : vector<1x16xf32>
    %382 = arith.mulf %369, %375 : vector<1x16xf32>
    %383 = arith.addf %381, %382 : vector<1x16xf32>
    %384 = math.tanh %383 : vector<1x16xf32>
    %385 = arith.mulf %380, %384 : vector<1x16xf32>
    %c6_271 = arith.constant 6 : index
    %c0_272 = arith.constant 0 : index
    %386 = vector.load %arg15[%c6_271, %c0_272] : memref<8x16xf32, #tpu.memory_space<vmem>>, vector<1x16xf32>
    tpu.vector_store %arg15[%c6_271, %c0_272], %385 {strides = array<i32>} : memref<8x16xf32, #tpu.memory_space<vmem>>, vector<1x16xf32>,
    %387 = arith.truncf %385 : vector<1x16xf32> to vector<1x16xbf16>
    %c7 = arith.constant 7 : index
    %c0_273 = arith.constant 0 : index
    %388 = vector.load %arg11[%c7, %c0_273] : memref<8x16xf32, #tpu.memory_space<vmem>>, vector<1x16xf32>
    %c0_274 = arith.constant 0 : index
    %c0_275 = arith.constant 0 : index
    %c0_276 = arith.constant 0 : index
    %389 = vector.load %arg6[%c0_274, %c0_275, %c0_276] : memref<4x16x16xbf16, #tpu.memory_space<vmem>>, vector<1x16x16xbf16>
    %390 = vector.shape_cast %389 : vector<1x16x16xbf16> to vector<16x16xbf16>
    %cst_277 = arith.constant dense<0.000000e+00> : vector<1x16xf32>
    %391 = tpu.matmul %387, %390, %cst_277 {dimension_numbers = #tpu.dot_dimension_numbers<[1], [0], [0], [1], [0, 0, 1, 1], [], []>} : vector<1x16xbf16>, vector<16x16xbf16>, vector<1x16xf32> -> vector<1x16xf32>
    %392 = arith.addf %388, %391 : vector<1x16xf32>
    %c7_278 = arith.constant 7 : index
    %c0_279 = arith.constant 0 : index
    %393 = vector.load %arg12[%c7_278, %c0_279] : memref<8x16xf32, #tpu.memory_space<vmem>>, vector<1x16xf32>
    %c1_280 = arith.constant 1 : index
    %c0_281 = arith.constant 0 : index
    %c0_282 = arith.constant 0 : index
    %394 = vector.load %arg6[%c1_280, %c0_281, %c0_282] : memref<4x16x16xbf16, #tpu.memory_space<vmem>>, vector<1x16x16xbf16>
    %395 = vector.shape_cast %394 : vector<1x16x16xbf16> to vector<16x16xbf16>
    %cst_283 = arith.constant dense<0.000000e+00> : vector<1x16xf32>
    %396 = tpu.matmul %387, %395, %cst_283 {dimension_numbers = #tpu.dot_dimension_numbers<[1], [0], [0], [1], [0, 0, 1, 1], [], []>} : vector<1x16xbf16>, vector<16x16xbf16>, vector<1x16xf32> -> vector<1x16xf32>
    %397 = arith.addf %393, %396 : vector<1x16xf32>
    %c7_284 = arith.constant 7 : index
    %c0_285 = arith.constant 0 : index
    %398 = vector.load %arg13[%c7_284, %c0_285] : memref<8x16xf32, #tpu.memory_space<vmem>>, vector<1x16xf32>
    %c2_286 = arith.constant 2 : index
    %c0_287 = arith.constant 0 : index
    %c0_288 = arith.constant 0 : index
    %399 = vector.load %arg6[%c2_286, %c0_287, %c0_288] : memref<4x16x16xbf16, #tpu.memory_space<vmem>>, vector<1x16x16xbf16>
    %400 = vector.shape_cast %399 : vector<1x16x16xbf16> to vector<16x16xbf16>
    %cst_289 = arith.constant dense<0.000000e+00> : vector<1x16xf32>
    %401 = tpu.matmul %387, %400, %cst_289 {dimension_numbers = #tpu.dot_dimension_numbers<[1], [0], [0], [1], [0, 0, 1, 1], [], []>} : vector<1x16xbf16>, vector<16x16xbf16>, vector<1x16xf32> -> vector<1x16xf32>
    %402 = arith.addf %398, %401 : vector<1x16xf32>
    %c7_290 = arith.constant 7 : index
    %c0_291 = arith.constant 0 : index
    %403 = vector.load %arg14[%c7_290, %c0_291] : memref<8x16xf32, #tpu.memory_space<vmem>>, vector<1x16xf32>
    %c3_292 = arith.constant 3 : index
    %c0_293 = arith.constant 0 : index
    %c0_294 = arith.constant 0 : index
    %404 = vector.load %arg6[%c3_292, %c0_293, %c0_294] : memref<4x16x16xbf16, #tpu.memory_space<vmem>>, vector<1x16x16xbf16>
    %405 = vector.shape_cast %404 : vector<1x16x16xbf16> to vector<16x16xbf16>
    %cst_295 = arith.constant dense<0.000000e+00> : vector<1x16xf32>
    %406 = tpu.matmul %387, %405, %cst_295 {dimension_numbers = #tpu.dot_dimension_numbers<[1], [0], [0], [1], [0, 0, 1, 1], [], []>} : vector<1x16xbf16>, vector<16x16xbf16>, vector<1x16xf32> -> vector<1x16xf32>
    %407 = arith.addf %403, %406 : vector<1x16xf32>
    %408 = arith.negf %392 : vector<1x16xf32>
    %409 = math.exp %408 : vector<1x16xf32>
    %cst_296 = arith.constant 1.000000e+00 : f32
    %410 = vector.broadcast %cst_296 : f32 to vector<1x16xf32>
    %411 = arith.addf %410, %409 : vector<1x16xf32>
    %412 = arith.divf %410, %411 : vector<1x16xf32>
    %413 = arith.negf %397 : vector<1x16xf32>
    %414 = math.exp %413 : vector<1x16xf32>
    %cst_297 = arith.constant 1.000000e+00 : f32
    %415 = vector.broadcast %cst_297 : f32 to vector<1x16xf32>
    %416 = arith.addf %415, %414 : vector<1x16xf32>
    %417 = arith.divf %415, %416 : vector<1x16xf32>
    %418 = math.tanh %402 : vector<1x16xf32>
    %419 = arith.negf %407 : vector<1x16xf32>
    %420 = math.exp %419 : vector<1x16xf32>
    %cst_298 = arith.constant 1.000000e+00 : f32
    %421 = vector.broadcast %cst_298 : f32 to vector<1x16xf32>
    %422 = arith.addf %421, %420 : vector<1x16xf32>
    %423 = arith.divf %421, %422 : vector<1x16xf32>
    %424 = arith.mulf %417, %383 : vector<1x16xf32>
    %425 = arith.mulf %412, %418 : vector<1x16xf32>
    %426 = arith.addf %424, %425 : vector<1x16xf32>
    %427 = math.tanh %426 : vector<1x16xf32>
    %428 = arith.mulf %423, %427 : vector<1x16xf32>
    %c7_299 = arith.constant 7 : index
    %c0_300 = arith.constant 0 : index
    %429 = vector.load %arg15[%c7_299, %c0_300] : memref<8x16xf32, #tpu.memory_space<vmem>>, vector<1x16xf32>
    tpu.vector_store %arg15[%c7_299, %c0_300], %428 {strides = array<i32>} : memref<8x16xf32, #tpu.memory_space<vmem>>, vector<1x16xf32>,
    %c0_301 = arith.constant 0 : index
    %c0_302 = arith.constant 0 : index
    %430 = vector.load %arg15[%c0_301, %c0_302] : memref<8x16xf32, #tpu.memory_space<vmem>>, vector<8x16xf32>
    %431 = arith.truncf %430 : vector<8x16xf32> to vector<8x16xbf16>
    %c0_303 = arith.constant 0 : index
    %c0_304 = arith.constant 0 : index
    %432 = vector.load %arg8[%c0_303, %c0_304] : memref<16x1xbf16, #tpu.memory_space<vmem>>, vector<16x1xbf16>
    %cst_305 = arith.constant dense<0.000000e+00> : vector<8x1xf32>
    %433 = tpu.matmul %431, %432, %cst_305 {dimension_numbers = #tpu.dot_dimension_numbers<[1], [0], [0], [1], [0, 0, 1, 1], [], []>} : vector<8x16xbf16>, vector<16x1xbf16>, vector<8x1xf32> -> vector<8x1xf32>
    %c0_306 = arith.constant 0 : index
    %c0_307 = arith.constant 0 : index
    %434 = vector.load %arg9[%c0_306, %c0_307] : memref<1x1xf32, #tpu.memory_space<vmem>>, vector<1x1xf32>
    %435 = vector.broadcast %434 : vector<1x1xf32> to vector<8x1xf32>
    %436 = arith.addf %433, %435 : vector<8x1xf32>
    %c0_308 = arith.constant 0 : index
    %c0_309 = arith.constant 0 : index
    %437 = vector.load %arg10[%c0_308, %c0_309] : memref<8x1xf32, #tpu.memory_space<vmem>>, vector<8x1xf32>
    tpu.vector_store %arg10[%c0_308, %c0_309], %436 {strides = array<i32>} : memref<8x1xf32, #tpu.memory_space<vmem>>, vector<8x1xf32>,
    return
  }
}

</mosaic_0001>

<llo_original>
// kernel: edge_gcn_lstm_forward.2
$region0: #{edge_gcn_lstm_forward.2}
  #allocation0 [shape = 'u32[]', space=smem, size = 0x4, offset = 0x4, fixed_abs, tag = 'smem constant byte address 0x4 - core index']
  #allocation1 [shape = 'u32[144,128]{1,0:T(1,128)}', space=vmem, size = 0x12000, scoped, tag = 'internal scratch']
  #allocation2 [shape = 'f32[256,1]{1,0:T(8,128)}', space=vmem, size = 0x20000, scoped, tag = 'scratch operand']
  %s0 = inlined_call_operand.vmem [shape: bf16[256,256], index: 0, kind: input, shape index: {}]
  %s1 = inlined_call_operand.vmem [shape: bf16[256,1], index: 1, kind: input, shape index: {}]
  %s2 = inlined_call_operand.vmem [shape: f32[256,1], index: 2, kind: input, shape index: {}]
  %s3 = inlined_call_operand.vmem [shape: f32[1,8], index: 3, kind: input, shape index: {}]
  %s4 = inlined_call_operand.vmem [shape: f32[1,8], index: 4, kind: input, shape index: {}]
  %s5 = inlined_call_operand.vmem [shape: bf16[256,8], index: 5, kind: output, shape index: {}]
  %s6 = sld [smem:[#allocation0]]
  $region38: #{edge_gcn_lstm_forward.2} parent=0
    _
  %s8 = ssub.s32 1, %s6
  %s9 = scalar_select 0, %s8, %s6
  // Predicated region
  $region2: #{edge_gcn_lstm_forward.2} parent=0 // pred_check
    _
  $region3: #{edge_gcn_lstm_forward.2} parent=0 // pred_check_branch
    %11 = sbr.rel (0) target = $region5
  $region4: #{edge_gcn_lstm_forward.2} parent=0 // pred_region
    _
  $region5: #{edge_gcn_lstm_forward.2} parent=0 // pred_fallthru
    _
  // Predicated region
  $region6: #{edge_gcn_lstm_forward.2} parent=0 // pred_check
    _
  $region7: #{edge_gcn_lstm_forward.2} parent=0 // pred_check_branch
    %13 = sbr.rel (0) target = $region9
  $region8: #{edge_gcn_lstm_forward.2} parent=0 // pred_region
    _
  $region9: #{edge_gcn_lstm_forward.2} parent=0 // pred_fallthru
    _
  // Predicated region
  $region10: #{edge_gcn_lstm_forward.2} parent=0 // pred_check
    _
  $region11: #{edge_gcn_lstm_forward.2} parent=0 // pred_check_branch
    %15 = sbr.rel (0) target = $region13
  $region12: #{edge_gcn_lstm_forward.2} parent=0 // pred_region
    _
  $region13: #{edge_gcn_lstm_forward.2} parent=0 // pred_fallthru
    _
  // Predicated region
  $region14: #{edge_gcn_lstm_forward.2} parent=0 // pred_check
    _
  $region15: #{edge_gcn_lstm_forward.2} parent=0 // pred_check_branch
    %17 = sbr.rel (0) target = $region17
  $region16: #{edge_gcn_lstm_forward.2} parent=0 // pred_region
    _
  $region17: #{edge_gcn_lstm_forward.2} parent=0 // pred_fallthru
    _
  // Predicated region
  $region18: #{edge_gcn_lstm_forward.2} parent=0 // pred_check
    _
  $region19: #{edge_gcn_lstm_forward.2} parent=0 // pred_check_branch
    %19 = sbr.rel (0) target = $region21
  $region20: #{edge_gcn_lstm_forward.2} parent=0 // pred_region
    _
  $region21: #{edge_gcn_lstm_forward.2} parent=0 // pred_fallthru
    _
  %p21 = scmp.eq.s32.totalorder 0, 0
  // Predicated region
  $region22: #{edge_gcn_lstm_forward.2} parent=0 // pred_check
    %p22 = pneg %p21
  $region23: #{edge_gcn_lstm_forward.2} parent=0 // pred_check_branch
    %24 = sbr.rel (%p22) target = $region25
  $region24: #{edge_gcn_lstm_forward.2} parent=0 // pred_region
    %vm25 = vcmask 7168
    %26 = vst.msk [vmem:[#allocation2] sm:$0xff] %vm25, 0.0
    %27 = vst.msk [vmem:[#allocation2 + $0x8] sm:$0xff] %vm25, 0.0
    %28 = vst.msk [vmem:[#allocation2 + $0x10] sm:$0xff] %vm25, 0.0
    %29 = vst.msk [vmem:[#allocation2 + $0x18] sm:$0xff] %vm25, 0.0
    %30 = vst.msk [vmem:[#allocation2 + $0x20] sm:$0xff] %vm25, 0.0
    %31 = vst.msk [vmem:[#allocation2 + $0x28] sm:$0xff] %vm25, 0.0
    %32 = vst.msk [vmem:[#allocation2 + $0x30] sm:$0xff] %vm25, 0.0
    %33 = vst.msk [vmem:[#allocation2 + $0x38] sm:$0xff] %vm25, 0.0
    %34 = vst.msk [vmem:[#allocation2 + $0x40] sm:$0xff] %vm25, 0.0
    %35 = vst.msk [vmem:[#allocation2 + $0x48] sm:$0xff] %vm25, 0.0
    %36 = vst.msk [vmem:[#allocation2 + $0x50] sm:$0xff] %vm25, 0.0
    %37 = vst.msk [vmem:[#allocation2 + $0x58] sm:$0xff] %vm25, 0.0
    %38 = vst.msk [vmem:[#allocation2 + $0x60] sm:$0xff] %vm25, 0.0
    %39 = vst.msk [vmem:[#allocation2 + $0x68] sm:$0xff] %vm25, 0.0
    %40 = vst.msk [vmem:[#allocation2 + $0x70] sm:$0xff] %vm25, 0.0
    %41 = vst.msk [vmem:[#allocation2 + $0x78] sm:$0xff] %vm25, 0.0
    %42 = vst.msk [vmem:[#allocation2 + $0x80] sm:$0xff] %vm25, 0.0
    %43 = vst.msk [vmem:[#allocation2 + $0x88] sm:$0xff] %vm25, 0.0
    %44 = vst.msk [vmem:[#allocation2 + $0x90] sm:$0xff] %vm25, 0.0
    %45 = vst.msk [vmem:[#allocation2 + $0x98] sm:$0xff] %vm25, 0.0
    %46 = vst.msk [vmem:[#allocation2 + $0xa0] sm:$0xff] %vm25, 0.0
    %47 = vst.msk [vmem:[#allocation2 + $0xa8] sm:$0xff] %vm25, 0.0
    %48 = vst.msk [vmem:[#allocation2 + $0xb0] sm:$0xff] %vm25, 0.0
    %49 = vst.msk [vmem:[#allocation2 + $0xb8] sm:$0xff] %vm25, 0.0
    %50 = vst.msk [vmem:[#allocation2 + $0xc0] sm:$0xff] %vm25, 0.0
    %51 = vst.msk [vmem:[#allocation2 + $0xc8] sm:$0xff] %vm25, 0.0
    %52 = vst.msk [vmem:[#allocation2 + $0xd0] sm:$0xff] %vm25, 0.0
    %53 = vst.msk [vmem:[#allocation2 + $0xd8] sm:$0xff] %vm25, 0.0
    %54 = vst.msk [vmem:[#allocation2 + $0xe0] sm:$0xff] %vm25, 0.0
    %55 = vst.msk [vmem:[#allocation2 + $0xe8] sm:$0xff] %vm25, 0.0
    %56 = vst.msk [vmem:[#allocation2 + $0xf0] sm:$0xff] %vm25, 0.0
    %57 = vst.msk [vmem:[#allocation2 + $0xf8] sm:$0xff] %vm25, 0.0
  $region25: #{edge_gcn_lstm_forward.2} parent=0 // pred_fallthru
    _
  %v58 = vld [vmem:[#allocation2] sm:$0xff]
  %v59 = vld [vmem:[#allocation2 + $0x8] sm:$0xff]
  %v60 = vld [vmem:[#allocation2 + $0x10] sm:$0xff]
  %v61 = vld [vmem:[#allocation2 + $0x18] sm:$0xff]
  %v62 = vld [vmem:[#allocation2 + $0x20] sm:$0xff]
  %v63 = vld [vmem:[#allocation2 + $0x28] sm:$0xff]
  %v64 = vld [vmem:[#allocation2 + $0x30] sm:$0xff]
  %v65 = vld [vmem:[#allocation2 + $0x38] sm:$0xff]
  %v66 = vld [vmem:[#allocation2 + $0x40] sm:$0xff]
  %v67 = vld [vmem:[#allocation2 + $0x48] sm:$0xff]
  %v68 = vld [vmem:[#allocation2 + $0x50] sm:$0xff]
  %v69 = vld [vmem:[#allocation2 + $0x58] sm:$0xff]
  %v70 = vld [vmem:[#allocation2 + $0x60] sm:$0xff]
  %v71 = vld [vmem:[#allocation2 + $0x68] sm:$0xff]
  %v72 = vld [vmem:[#allocation2 + $0x70] sm:$0xff]
  %v73 = vld [vmem:[#allocation2 + $0x78] sm:$0xff]
  %v74 = vld [vmem:[#allocation2 + $0x80] sm:$0xff]
  %v75 = vld [vmem:[#allocation2 + $0x88] sm:$0xff]
  %v76 = vld [vmem:[#allocation2 + $0x90] sm:$0xff]
  %v77 = vld [vmem:[#allocation2 + $0x98] sm:$0xff]
  %v78 = vld [vmem:[#allocation2 + $0xa0] sm:$0xff]
  %v79 = vld [vmem:[#allocation2 + $0xa8] sm:$0xff]
  %v80 = vld [vmem:[#allocation2 + $0xb0] sm:$0xff]
  %v81 = vld [vmem:[#allocation2 + $0xb8] sm:$0xff]
  %v82 = vld [vmem:[#allocation2 + $0xc0] sm:$0xff]
  %v83 = vld [vmem:[#allocation2 + $0xc8] sm:$0xff]
  %v84 = vld [vmem:[#allocation2 + $0xd0] sm:$0xff]
  %v85 = vld [vmem:[#allocation2 + $0xd8] sm:$0xff]
  %v86 = vld [vmem:[#allocation2 + $0xe0] sm:$0xff]
  %v87 = vld [vmem:[#allocation2 + $0xe8] sm:$0xff]
  %v88 = vld [vmem:[#allocation2 + $0xf0] sm:$0xff]
  %v89 = vld [vmem:[#allocation2 + $0xf8] sm:$0xff]
  %v90 = vld [vmem:[%s0] sm:$0xff]
  %v91 = vld [vmem:[%s0 + $0x8] sm:$0xff]
  %v92 = vld [vmem:[%s0 + $0x10] sm:$0xff]
  %v93 = vld [vmem:[%s0 + $0x18] sm:$0xff]
  %v94 = vld [vmem:[%s0 + $0x20] sm:$0xff]
  %v95 = vld [vmem:[%s0 + $0x28] sm:$0xff]
  %v96 = vld [vmem:[%s0 + $0x30] sm:$0xff]
  %v97 = vld [vmem:[%s0 + $0x38] sm:$0xff]
  %v98 = vld [vmem:[%s0 + $0x40] sm:$0xff]
  %v99 = vld [vmem:[%s0 + $0x48] sm:$0xff]
  %v100 = vld [vmem:[%s0 + $0x50] sm:$0xff]
  %v101 = vld [vmem:[%s0 + $0x58] sm:$0xff]
  %v102 = vld [vmem:[%s0 + $0x60] sm:$0xff]
  %v103 = vld [vmem:[%s0 + $0x68] sm:$0xff]
  %v104 = vld [vmem:[%s0 + $0x70] sm:$0xff]
  %v105 = vld [vmem:[%s0 + $0x78] sm:$0xff]
  %v106 = vld [vmem:[%s0 + $0x80] sm:$0xff]
  %v107 = vld [vmem:[%s0 + $0x88] sm:$0xff]
  %v108 = vld [vmem:[%s0 + $0x90] sm:$0xff]
  %v109 = vld [vmem:[%s0 + $0x98] sm:$0xff]
  %v110 = vld [vmem:[%s0 + $0xa0] sm:$0xff]
  %v111 = vld [vmem:[%s0 + $0xa8] sm:$0xff]
  %v112 = vld [vmem:[%s0 + $0xb0] sm:$0xff]
  %v113 = vld [vmem:[%s0 + $0xb8] sm:$0xff]
  %v114 = vld [vmem:[%s0 + $0xc0] sm:$0xff]
  %v115 = vld [vmem:[%s0 + $0xc8] sm:$0xff]
  %v116 = vld [vmem:[%s0 + $0xd0] sm:$0xff]
  %v117 = vld [vmem:[%s0 + $0xd8] sm:$0xff]
  %v118 = vld [vmem:[%s0 + $0xe0] sm:$0xff]
  %v119 = vld [vmem:[%s0 + $0xe8] sm:$0xff]
  %v120 = vld [vmem:[%s0 + $0xf0] sm:$0xff]
  %v121 = vld [vmem:[%s0 + $0xf8] sm:$0xff]
  %v122 = vld [vmem:[%s1] sm:$0xf]
  %v123 = vld [vmem:[%s1 + $0x4] sm:$0xf]
  %v124 = vld [vmem:[%s1 + $0x8] sm:$0xf]
  %v125 = vld [vmem:[%s1 + $0xc] sm:$0xf]
  %v126 = vld [vmem:[%s1 + $0x10] sm:$0xf]
  %v127 = vld [vmem:[%s1 + $0x14] sm:$0xf]
  %v128 = vld [vmem:[%s1 + $0x18] sm:$0xf]
  %v129 = vld [vmem:[%s1 + $0x1c] sm:$0xf]
  %v130 = vld [vmem:[%s1 + $0x20] sm:$0xf]
  %v131 = vld [vmem:[%s1 + $0x24] sm:$0xf]
  %v132 = vld [vmem:[%s1 + $0x28] sm:$0xf]
  %v133 = vld [vmem:[%s1 + $0x2c] sm:$0xf]
  %v134 = vld [vmem:[%s1 + $0x30] sm:$0xf]
  %v135 = vld [vmem:[%s1 + $0x34] sm:$0xf]
  %v136 = vld [vmem:[%s1 + $0x38] sm:$0xf]
  %v137 = vld [vmem:[%s1 + $0x3c] sm:$0xf]
  %v138 = vld [vmem:[%s1 + $0x40] sm:$0xf]
  %v139 = vld [vmem:[%s1 + $0x44] sm:$0xf]
  %v140 = vld [vmem:[%s1 + $0x48] sm:$0xf]
  %v141 = vld [vmem:[%s1 + $0x4c] sm:$0xf]
  %v142 = vld [vmem:[%s1 + $0x50] sm:$0xf]
  %v143 = vld [vmem:[%s1 + $0x54] sm:$0xf]
  %v144 = vld [vmem:[%s1 + $0x58] sm:$0xf]
  %v145 = vld [vmem:[%s1 + $0x5c] sm:$0xf]
  %v146 = vld [vmem:[%s1 + $0x60] sm:$0xf]
  %v147 = vld [vmem:[%s1 + $0x64] sm:$0xf]
  %v148 = vld [vmem:[%s1 + $0x68] sm:$0xf]
  %v149 = vld [vmem:[%s1 + $0x6c] sm:$0xf]
  %v150 = vld [vmem:[%s1 + $0x70] sm:$0xf]
  %v151 = vld [vmem:[%s1 + $0x74] sm:$0xf]
  %v152 = vld [vmem:[%s1 + $0x78] sm:$0xf]
  %v153 = vld [vmem:[%s1 + $0x7c] sm:$0xf]
  %v186 = vunpack.c.l.b16 %v90
  %v187 = vunpack.c.h.b16 %v90
  %v188 = vunpack.c.l.b16 %v91
  %v189 = vunpack.c.h.b16 %v91
  %v190 = vunpack.c.l.b16 %v92
  %v191 = vunpack.c.h.b16 %v92
  %v192 = vunpack.c.l.b16 %v93
  %v193 = vunpack.c.h.b16 %v93
  %v194 = vunpack.c.l.b16 %v94
  %v195 = vunpack.c.h.b16 %v94
  %v196 = vunpack.c.l.b16 %v95
  %v197 = vunpack.c.h.b16 %v95
  %v198 = vunpack.c.l.b16 %v96
  %v199 = vunpack.c.h.b16 %v96
  %v200 = vunpack.c.l.b16 %v97
  %v201 = vunpack.c.h.b16 %v97
  %v202 = vunpack.c.l.b16 %v98
  %v203 = vunpack.c.h.b16 %v98
  %v204 = vunpack.c.l.b16 %v99
  %v205 = vunpack.c.h.b16 %v99
  %v206 = vunpack.c.l.b16 %v100
  %v207 = vunpack.c.h.b16 %v100
  %v208 = vunpack.c.l.b16 %v101
  %v209 = vunpack.c.h.b16 %v101
  %v210 = vunpack.c.l.b16 %v102
  %v211 = vunpack.c.h.b16 %v102
  %v212 = vunpack.c.l.b16 %v103
  %v213 = vunpack.c.h.b16 %v103
  %v214 = vunpack.c.l.b16 %v104
  %v215 = vunpack.c.h.b16 %v104
  %v216 = vunpack.c.l.b16 %v105
  %v217 = vunpack.c.h.b16 %v105
  %v218 = vunpack.c.l.b16 %v106
  %v219 = vunpack.c.h.b16 %v106
  %v220 = vunpack.c.l.b16 %v107
  %v221 = vunpack.c.h.b16 %v107
  %v222 = vunpack.c.l.b16 %v108
  %v223 = vunpack.c.h.b16 %v108
  %v224 = vunpack.c.l.b16 %v109
  %v225 = vunpack.c.h.b16 %v109
  %v226 = vunpack.c.l.b16 %v110
  %v227 = vunpack.c.h.b16 %v110
  %v228 = vunpack.c.l.b16 %v111
  %v229 = vunpack.c.h.b16 %v111
  %v230 = vunpack.c.l.b16 %v112
  %v231 = vunpack.c.h.b16 %v112
  %v232 = vunpack.c.l.b16 %v113
  %v233 = vunpack.c.h.b16 %v113
  %v234 = vunpack.c.l.b16 %v114
  %v235 = vunpack.c.h.b16 %v114
  %v236 = vunpack.c.l.b16 %v115
  %v237 = vunpack.c.h.b16 %v115
  %v238 = vunpack.c.l.b16 %v116
  %v239 = vunpack.c.h.b16 %v116
  %v240 = vunpack.c.l.b16 %v117
  %v241 = vunpack.c.h.b16 %v117
  %v242 = vunpack.c.l.b16 %v118
  %v243 = vunpack.c.h.b16 %v118
  %v244 = vunpack.c.l.b16 %v119
  %v245 = vunpack.c.h.b16 %v119
  %v246 = vunpack.c.l.b16 %v120
  %v247 = vunpack.c.h.b16 %v120
  %v248 = vunpack.c.l.b16 %v121
  %v249 = vunpack.c.h.b16 %v121
  %v250 = vpack.c.b16 %v188, %v186
  %v251 = vpack.c.b16 %v189, %v187
  %v252 = vpack.c.b16 %v192, %v190
  %v253 = vpack.c.b16 %v193, %v191
  %v254 = vpack.c.b16 %v196, %v194
  %v255 = vpack.c.b16 %v197, %v195
  %v256 = vpack.c.b16 %v200, %v198
  %v257 = vpack.c.b16 %v201, %v199
  %v258 = vpack.c.b16 %v204, %v202
  %v259 = vpack.c.b16 %v205, %v203
  %v260 = vpack.c.b16 %v208, %v206
  %v261 = vpack.c.b16 %v209, %v207
  %v262 = vpack.c.b16 %v212, %v210
  %v263 = vpack.c.b16 %v213, %v211
  %v264 = vpack.c.b16 %v216, %v214
  %v265 = vpack.c.b16 %v217, %v215
  %v266 = vpack.c.b16 %v220, %v218
  %v267 = vpack.c.b16 %v221, %v219
  %v268 = vpack.c.b16 %v224, %v222
  %v269 = vpack.c.b16 %v225, %v223
  %v270 = vpack.c.b16 %v228, %v226
  %v271 = vpack.c.b16 %v229, %v227
  %v272 = vpack.c.b16 %v232, %v230
  %v273 = vpack.c.b16 %v233, %v231
  %v274 = vpack.c.b16 %v236, %v234
  %v275 = vpack.c.b16 %v237, %v235
  %v276 = vpack.c.b16 %v240, %v238
  %v277 = vpack.c.b16 %v241, %v239
  %v278 = vpack.c.b16 %v244, %v242
  %v279 = vpack.c.b16 %v245, %v243
  %v280 = vpack.c.b16 %v248, %v246
  %v281 = vpack.c.b16 %v249, %v247
  %v346 = vunpack.c.l.b16 %v122
  %v347 = vunpack.c.l.b16 %v123
  %v348 = vunpack.c.l.b16 %v124
  %v349 = vunpack.c.l.b16 %v125
  %v350 = vunpack.c.l.b16 %v126
  %v351 = vunpack.c.l.b16 %v127
  %v352 = vunpack.c.l.b16 %v128
  %v353 = vunpack.c.l.b16 %v129
  %v354 = vunpack.c.l.b16 %v130
  %v355 = vunpack.c.l.b16 %v131
  %v356 = vunpack.c.l.b16 %v132
  %v357 = vunpack.c.l.b16 %v133
  %v358 = vunpack.c.l.b16 %v134
  %v359 = vunpack.c.l.b16 %v135
  %v360 = vunpack.c.l.b16 %v136
  %v361 = vunpack.c.l.b16 %v137
  %v362 = vunpack.c.l.b16 %v138
  %v363 = vunpack.c.l.b16 %v139
  %v364 = vunpack.c.l.b16 %v140
  %v365 = vunpack.c.l.b16 %v141
  %v366 = vunpack.c.l.b16 %v142
  %v367 = vunpack.c.l.b16 %v143
  %v368 = vunpack.c.l.b16 %v144
  %v369 = vunpack.c.l.b16 %v145
  %v370 = vunpack.c.l.b16 %v146
  %v371 = vunpack.c.l.b16 %v147
  %v372 = vunpack.c.l.b16 %v148
  %v373 = vunpack.c.l.b16 %v149
  %v374 = vunpack.c.l.b16 %v150
  %v375 = vunpack.c.l.b16 %v151
  %v376 = vunpack.c.l.b16 %v152
  %v377 = vunpack.c.l.b16 %v153
  %v378 = vpack.c.b16 %v347, %v346
  %v379 = vpack.c.b16 %v349, %v348
  %v380 = vpack.c.b16 %v351, %v350
  %v381 = vpack.c.b16 %v353, %v352
  %v382 = vpack.c.b16 %v355, %v354
  %v383 = vpack.c.b16 %v357, %v356
  %v384 = vpack.c.b16 %v359, %v358
  %v385 = vpack.c.b16 %v361, %v360
  %v386 = vpack.c.b16 %v363, %v362
  %v387 = vpack.c.b16 %v365, %v364
  %v388 = vpack.c.b16 %v367, %v366
  %v389 = vpack.c.b16 %v369, %v368
  %v390 = vpack.c.b16 %v371, %v370
  %v391 = vpack.c.b16 %v373, %v372
  %v392 = vpack.c.b16 %v375, %v374
  %v393 = vpack.c.b16 %v377, %v376
  %410 = vmatprep.subr.bf16.mxu0 0
  %411 = vmatpush1.bf16.msra.mxu0 %v385
  %412 = vmatprep.subr.bf16.mxu0 0
  %413 = vmatpush1.bf16.msra.mxu0 %v384
  %414 = vmatprep.subr.bf16.mxu0 0
  %415 = vmatpush1.bf16.msra.mxu0 %v383
  %416 = vmatprep.subr.bf16.mxu0 0
  %417 = vmatpush1.bf16.msra.mxu0 %v382
  %418 = vmatprep.subr.bf16.mxu0 0
  %419 = vmatpush1.bf16.msra.mxu0 %v381
  %420 = vmatprep.subr.bf16.mxu0 0
  %421 = vmatpush1.bf16.msra.mxu0 %v380
  %422 = vmatprep.subr.bf16.mxu0 0
  %423 = vmatpush1.bf16.msra.mxu0 %v379
  %424 = vmatprep.subr.bf16.mxu0 0
  %425 = vmatpush1.bf16.msra.mxu0 %v378
  %426 = vmatprep.subr.bf16.mxu0 0
  %427 = vmatpush2.bf16.msra.mxu0 %v393
  %428 = vmatprep.subr.bf16.mxu0 0
  %429 = vmatpush2.bf16.msra.mxu0 %v392
  %430 = vmatprep.subr.bf16.mxu0 0
  %431 = vmatpush2.bf16.msra.mxu0 %v391
  %432 = vmatprep.subr.bf16.mxu0 0
  %433 = vmatpush2.bf16.msra.mxu0 %v390
  %434 = vmatprep.subr.bf16.mxu0 0
  %435 = vmatpush2.bf16.msra.mxu0 %v389
  %436 = vmatprep.subr.bf16.mxu0 0
  %437 = vmatpush2.bf16.msra.mxu0 %v388
  %438 = vmatprep.subr.bf16.mxu0 0
  %439 = vmatpush2.bf16.msra.mxu0 %v387
  %440 = vmatprep.subr.bf16.mxu0 0
  %441 = vmatpush2.bf16.msra.mxu0 %v386
  %442 = vmatprep.mubr.bf16.mxu0 %v251
  %443 = vmatmul.mubr.bf16.gmra.mxu0 %v250
  %v444 = vpop.f32.mrf.mxu0
  %v445 = vadd.f32 0.0, %v444
  %v446 = vpop.f32.mrf.mxu0
  %v447 = vpop.f32.mrf.mxu0
  %v448 = vadd.f32 0.0, %v447
  %v449 = vpop.f32.mrf.mxu0
  %450 = vmatprep.mubr.bf16.mxu0 %v253
  %451 = vmatmul.mubr.bf16.gmra.mxu0 %v252
  %v452 = vpop.f32.mrf.mxu0
  %v453 = vadd.f32 0.0, %v452
  %v454 = vpop.f32.mrf.mxu0
  %v455 = vpop.f32.mrf.mxu0
  %v456 = vadd.f32 0.0, %v455
  %v457 = vpop.f32.mrf.mxu0
  %458 = vmatprep.mubr.bf16.mxu0 %v255
  %459 = vmatmul.mubr.bf16.gmra.mxu0 %v254
  %v460 = vpop.f32.mrf.mxu0
  %v461 = vadd.f32 0.0, %v460
  %v462 = vpop.f32.mrf.mxu0
  %v463 = vpop.f32.mrf.mxu0
  %v464 = vadd.f32 0.0, %v463
  %v465 = vpop.f32.mrf.mxu0
  %466 = vmatprep.mubr.bf16.mxu0 %v257
  %467 = vmatmul.mubr.bf16.gmra.mxu0 %v256
  %v468 = vpop.f32.mrf.mxu0
  %v469 = vadd.f32 0.0, %v468
  %v470 = vpop.f32.mrf.mxu0
  %v471 = vpop.f32.mrf.mxu0
  %v472 = vadd.f32 0.0, %v471
  %v473 = vpop.f32.mrf.mxu0
  %474 = vmatprep.mubr.bf16.mxu0 %v259
  %475 = vmatmul.mubr.bf16.gmra.mxu0 %v258
  %v476 = vpop.f32.mrf.mxu0
  %v477 = vadd.f32 0.0, %v476
  %v478 = vpop.f32.mrf.mxu0
  %v479 = vpop.f32.mrf.mxu0
  %v480 = vadd.f32 0.0, %v479
  %v481 = vpop.f32.mrf.mxu0
  %482 = vmatprep.mubr.bf16.mxu0 %v261
  %483 = vmatmul.mubr.bf16.gmra.mxu0 %v260
  %v484 = vpop.f32.mrf.mxu0
  %v485 = vadd.f32 0.0, %v484
  %v486 = vpop.f32.mrf.mxu0
  %v487 = vpop.f32.mrf.mxu0
  %v488 = vadd.f32 0.0, %v487
  %v489 = vpop.f32.mrf.mxu0
  %490 = vmatprep.mubr.bf16.mxu0 %v263
  %491 = vmatmul.mubr.bf16.gmra.mxu0 %v262
  %v492 = vpop.f32.mrf.mxu0
  %v493 = vadd.f32 0.0, %v492
  %v494 = vpop.f32.mrf.mxu0
  %v495 = vpop.f32.mrf.mxu0
  %v496 = vadd.f32 0.0, %v495
  %v497 = vpop.f32.mrf.mxu0
  %498 = vmatprep.mubr.bf16.mxu0 %v265
  %499 = vmatmul.mubr.bf16.gmra.mxu0 %v264
  %v500 = vpop.f32.mrf.mxu0
  %v501 = vadd.f32 0.0, %v500
  %v502 = vpop.f32.mrf.mxu0
  %v503 = vpop.f32.mrf.mxu0
  %v504 = vadd.f32 0.0, %v503
  %v505 = vpop.f32.mrf.mxu0
  %506 = vmatprep.mubr.bf16.mxu0 %v267
  %507 = vmatmul.mubr.bf16.gmra.mxu0 %v266
  %v508 = vpop.f32.mrf.mxu0
  %v509 = vadd.f32 0.0, %v508
  %v510 = vpop.f32.mrf.mxu0
  %v511 = vpop.f32.mrf.mxu0
  %v512 = vadd.f32 0.0, %v511
  %v513 = vpop.f32.mrf.mxu0
  %514 = vmatprep.mubr.bf16.mxu0 %v269
  %515 = vmatmul.mubr.bf16.gmra.mxu0 %v268
  %v516 = vpop.f32.mrf.mxu0
  %v517 = vadd.f32 0.0, %v516
  %v518 = vpop.f32.mrf.mxu0
  %v519 = vpop.f32.mrf.mxu0
  %v520 = vadd.f32 0.0, %v519
  %v521 = vpop.f32.mrf.mxu0
  %522 = vmatprep.mubr.bf16.mxu0 %v271
  %523 = vmatmul.mubr.bf16.gmra.mxu0 %v270
  %v524 = vpop.f32.mrf.mxu0
  %v525 = vadd.f32 0.0, %v524
  %v526 = vpop.f32.mrf.mxu0
  %v527 = vpop.f32.mrf.mxu0
  %v528 = vadd.f32 0.0, %v527
  %v529 = vpop.f32.mrf.mxu0
  %530 = vmatprep.mubr.bf16.mxu0 %v273
  %531 = vmatmul.mubr.bf16.gmra.mxu0 %v272
  %v532 = vpop.f32.mrf.mxu0
  %v533 = vadd.f32 0.0, %v532
  %v534 = vpop.f32.mrf.mxu0
  %v535 = vpop.f32.mrf.mxu0
  %v536 = vadd.f32 0.0, %v535
  %v537 = vpop.f32.mrf.mxu0
  %538 = vmatprep.mubr.bf16.mxu0 %v275
  %539 = vmatmul.mubr.bf16.gmra.mxu0 %v274
  %v540 = vpop.f32.mrf.mxu0
  %v541 = vadd.f32 0.0, %v540
  %v542 = vpop.f32.mrf.mxu0
  %v543 = vpop.f32.mrf.mxu0
  %v544 = vadd.f32 0.0, %v543
  %v545 = vpop.f32.mrf.mxu0
  %546 = vmatprep.mubr.bf16.mxu0 %v277
  %547 = vmatmul.mubr.bf16.gmra.mxu0 %v276
  %v548 = vpop.f32.mrf.mxu0
  %v549 = vadd.f32 0.0, %v548
  %v550 = vpop.f32.mrf.mxu0
  %v551 = vpop.f32.mrf.mxu0
  %v552 = vadd.f32 0.0, %v551
  %v553 = vpop.f32.mrf.mxu0
  %554 = vmatprep.mubr.bf16.mxu0 %v279
  %555 = vmatmul.mubr.bf16.gmra.mxu0 %v278
  %v556 = vpop.f32.mrf.mxu0
  %v557 = vadd.f32 0.0, %v556
  %v558 = vpop.f32.mrf.mxu0
  %v559 = vpop.f32.mrf.mxu0
  %v560 = vadd.f32 0.0, %v559
  %v561 = vpop.f32.mrf.mxu0
  %562 = vmatprep.mubr.bf16.mxu0 %v281
  %563 = vmatmul.mubr.bf16.gmra.mxu0 %v280
  %v564 = vpop.f32.mrf.mxu0
  %v565 = vadd.f32 0.0, %v564
  %v566 = vpop.f32.mrf.mxu0
  %v567 = vpop.f32.mrf.mxu0
  %v568 = vadd.f32 0.0, %v567
  %v569 = vpop.f32.mrf.mxu0
  %570 = vdwg.mxu0
  %v571 = vadd.f32 %v58, %v445
  %v572 = vadd.f32 %v59, %v448
  %v573 = vadd.f32 %v60, %v453
  %v574 = vadd.f32 %v61, %v456
  %v575 = vadd.f32 %v62, %v461
  %v576 = vadd.f32 %v63, %v464
  %v577 = vadd.f32 %v64, %v469
  %v578 = vadd.f32 %v65, %v472
  %v579 = vadd.f32 %v66, %v477
  %v580 = vadd.f32 %v67, %v480
  %v581 = vadd.f32 %v68, %v485
  %v582 = vadd.f32 %v69, %v488
  %v583 = vadd.f32 %v70, %v493
  %v584 = vadd.f32 %v71, %v496
  %v585 = vadd.f32 %v72, %v501
  %v586 = vadd.f32 %v73, %v504
  %v587 = vadd.f32 %v74, %v509
  %v588 = vadd.f32 %v75, %v512
  %v589 = vadd.f32 %v76, %v517
  %v590 = vadd.f32 %v77, %v520
  %v591 = vadd.f32 %v78, %v525
  %v592 = vadd.f32 %v79, %v528
  %v593 = vadd.f32 %v80, %v533
  %v594 = vadd.f32 %v81, %v536
  %v595 = vadd.f32 %v82, %v541
  %v596 = vadd.f32 %v83, %v544
  %v597 = vadd.f32 %v84, %v549
  %v598 = vadd.f32 %v85, %v552
  %v599 = vadd.f32 %v86, %v557
  %v600 = vadd.f32 %v87, %v560
  %v601 = vadd.f32 %v88, %v565
  %v602 = vadd.f32 %v89, %v568
  %vm603 = vcmask 7168
  %604 = vst.msk [vmem:[#allocation2] sm:$0xff] %vm603, %v571
  %605 = vst.msk [vmem:[#allocation2 + $0x8] sm:$0xff] %vm603, %v572
  %606 = vst.msk [vmem:[#allocation2 + $0x10] sm:$0xff] %vm603, %v573
  %607 = vst.msk [vmem:[#allocation2 + $0x18] sm:$0xff] %vm603, %v574
  %608 = vst.msk [vmem:[#allocation2 + $0x20] sm:$0xff] %vm603, %v575
  %609 = vst.msk [vmem:[#allocation2 + $0x28] sm:$0xff] %vm603, %v576
  %610 = vst.msk [vmem:[#allocation2 + $0x30] sm:$0xff] %vm603, %v577
  %611 = vst.msk [vmem:[#allocation2 + $0x38] sm:$0xff] %vm603, %v578
  %612 = vst.msk [vmem:[#allocation2 + $0x40] sm:$0xff] %vm603, %v579
  %613 = vst.msk [vmem:[#allocation2 + $0x48] sm:$0xff] %vm603, %v580
  %614 = vst.msk [vmem:[#allocation2 + $0x50] sm:$0xff] %vm603, %v581
  %615 = vst.msk [vmem:[#allocation2 + $0x58] sm:$0xff] %vm603, %v582
  %616 = vst.msk [vmem:[#allocation2 + $0x60] sm:$0xff] %vm603, %v583
  %617 = vst.msk [vmem:[#allocation2 + $0x68] sm:$0xff] %vm603, %v584
  %618 = vst.msk [vmem:[#allocation2 + $0x70] sm:$0xff] %vm603, %v585
  %619 = vst.msk [vmem:[#allocation2 + $0x78] sm:$0xff] %vm603, %v586
  %620 = vst.msk [vmem:[#allocation2 + $0x80] sm:$0xff] %vm603, %v587
  %621 = vst.msk [vmem:[#allocation2 + $0x88] sm:$0xff] %vm603, %v588
  %622 = vst.msk [vmem:[#allocation2 + $0x90] sm:$0xff] %vm603, %v589
  %623 = vst.msk [vmem:[#allocation2 + $0x98] sm:$0xff] %vm603, %v590
  %624 = vst.msk [vmem:[#allocation2 + $0xa0] sm:$0xff] %vm603, %v591
  %625 = vst.msk [vmem:[#allocation2 + $0xa8] sm:$0xff] %vm603, %v592
  %626 = vst.msk [vmem:[#allocation2 + $0xb0] sm:$0xff] %vm603, %v593
  %627 = vst.msk [vmem:[#allocation2 + $0xb8] sm:$0xff] %vm603, %v594
  %628 = vst.msk [vmem:[#allocation2 + $0xc0] sm:$0xff] %vm603, %v595
  %629 = vst.msk [vmem:[#allocation2 + $0xc8] sm:$0xff] %vm603, %v596
  %630 = vst.msk [vmem:[#allocation2 + $0xd0] sm:$0xff] %vm603, %v597
  %631 = vst.msk [vmem:[#allocation2 + $0xd8] sm:$0xff] %vm603, %v598
  %632 = vst.msk [vmem:[#allocation2 + $0xe0] sm:$0xff] %vm603, %v599
  %633 = vst.msk [vmem:[#allocation2 + $0xe8] sm:$0xff] %vm603, %v600
  %634 = vst.msk [vmem:[#allocation2 + $0xf0] sm:$0xff] %vm603, %v601
  %635 = vst.msk [vmem:[#allocation2 + $0xf8] sm:$0xff] %vm603, %v602
  // Predicated region
  $region26: #{edge_gcn_lstm_forward.2} parent=0 // pred_check
    %p636 = pneg %p21
  $region27: #{edge_gcn_lstm_forward.2} parent=0 // pred_check_branch
    %638 = sbr.rel (%p636) target = $region29
  $region28: #{edge_gcn_lstm_forward.2} parent=0 // pred_region
    %v639 = vld [vmem:[#allocation2] sm:$0xff]
    %v640 = vld [vmem:[#allocation2 + $0x8] sm:$0xff]
    %v641 = vld [vmem:[#allocation2 + $0x10] sm:$0xff]
    %v642 = vld [vmem:[#allocation2 + $0x18] sm:$0xff]
    %v643 = vld [vmem:[#allocation2 + $0x20] sm:$0xff]
    %v644 = vld [vmem:[#allocation2 + $0x28] sm:$0xff]
    %v645 = vld [vmem:[#allocation2 + $0x30] sm:$0xff]
    %v646 = vld [vmem:[#allocation2 + $0x38] sm:$0xff]
    %v647 = vld [vmem:[#allocation2 + $0x40] sm:$0xff]
    %v648 = vld [vmem:[#allocation2 + $0x48] sm:$0xff]
    %v649 = vld [vmem:[#allocation2 + $0x50] sm:$0xff]
    %v650 = vld [vmem:[#allocation2 + $0x58] sm:$0xff]
    %v651 = vld [vmem:[#allocation2 + $0x60] sm:$0xff]
    %v652 = vld [vmem:[#allocation2 + $0x68] sm:$0xff]
    %v653 = vld [vmem:[#allocation2 + $0x70] sm:$0xff]
    %v654 = vld [vmem:[#allocation2 + $0x78] sm:$0xff]
    %v655 = vld [vmem:[#allocation2 + $0x80] sm:$0xff]
    %v656 = vld [vmem:[#allocation2 + $0x88] sm:$0xff]
    %v657 = vld [vmem:[#allocation2 + $0x90] sm:$0xff]
    %v658 = vld [vmem:[#allocation2 + $0x98] sm:$0xff]
    %v659 = vld [vmem:[#allocation2 + $0xa0] sm:$0xff]
    %v660 = vld [vmem:[#allocation2 + $0xa8] sm:$0xff]
    %v661 = vld [vmem:[#allocation2 + $0xb0] sm:$0xff]
    %v662 = vld [vmem:[#allocation2 + $0xb8] sm:$0xff]
    %v663 = vld [vmem:[#allocation2 + $0xc0] sm:$0xff]
    %v664 = vld [vmem:[#allocation2 + $0xc8] sm:$0xff]
    %v665 = vld [vmem:[#allocation2 + $0xd0] sm:$0xff]
    %v666 = vld [vmem:[#allocation2 + $0xd8] sm:$0xff]
    %v667 = vld [vmem:[#allocation2 + $0xe0] sm:$0xff]
    %v668 = vld [vmem:[#allocation2 + $0xe8] sm:$0xff]
    %v669 = vld [vmem:[#allocation2 + $0xf0] sm:$0xff]
    %v670 = vld [vmem:[#allocation2 + $0xf8] sm:$0xff]
    %v671 = vld [vmem:[%s2] sm:$0xff]
    %v672 = vld [vmem:[%s2 + $0x8] sm:$0xff]
    %v673 = vld [vmem:[%s2 + $0x10] sm:$0xff]
    %v674 = vld [vmem:[%s2 + $0x18] sm:$0xff]
    %v675 = vld [vmem:[%s2 + $0x20] sm:$0xff]
    %v676 = vld [vmem:[%s2 + $0x28] sm:$0xff]
    %v677 = vld [vmem:[%s2 + $0x30] sm:$0xff]
    %v678 = vld [vmem:[%s2 + $0x38] sm:$0xff]
    %v679 = vld [vmem:[%s2 + $0x40] sm:$0xff]
    %v680 = vld [vmem:[%s2 + $0x48] sm:$0xff]
    %v681 = vld [vmem:[%s2 + $0x50] sm:$0xff]
    %v682 = vld [vmem:[%s2 + $0x58] sm:$0xff]
    %v683 = vld [vmem:[%s2 + $0x60] sm:$0xff]
    %v684 = vld [vmem:[%s2 + $0x68] sm:$0xff]
    %v685 = vld [vmem:[%s2 + $0x70] sm:$0xff]
    %v686 = vld [vmem:[%s2 + $0x78] sm:$0xff]
    %v687 = vld [vmem:[%s2 + $0x80] sm:$0xff]
    %v688 = vld [vmem:[%s2 + $0x88] sm:$0xff]
    %v689 = vld [vmem:[%s2 + $0x90] sm:$0xff]
    %v690 = vld [vmem:[%s2 + $0x98] sm:$0xff]
    %v691 = vld [vmem:[%s2 + $0xa0] sm:$0xff]
    %v692 = vld [vmem:[%s2 + $0xa8] sm:$0xff]
    %v693 = vld [vmem:[%s2 + $0xb0] sm:$0xff]
    %v694 = vld [vmem:[%s2 + $0xb8] sm:$0xff]
    %v695 = vld [vmem:[%s2 + $0xc0] sm:$0xff]
    %v696 = vld [vmem:[%s2 + $0xc8] sm:$0xff]
    %v697 = vld [vmem:[%s2 + $0xd0] sm:$0xff]
    %v698 = vld [vmem:[%s2 + $0xd8] sm:$0xff]
    %v699 = vld [vmem:[%s2 + $0xe0] sm:$0xff]
    %v700 = vld [vmem:[%s2 + $0xe8] sm:$0xff]
    %v701 = vld [vmem:[%s2 + $0xf0] sm:$0xff]
    %v702 = vld [vmem:[%s2 + $0xf8] sm:$0xff]
    %v703 = vmul.f32 %v639, %v671
    %v704 = vmul.f32 %v640, %v672
    %v705 = vmul.f32 %v641, %v673
    %v706 = vmul.f32 %v642, %v674
    %v707 = vmul.f32 %v643, %v675
    %v708 = vmul.f32 %v644, %v676
    %v709 = vmul.f32 %v645, %v677
    %v710 = vmul.f32 %v646, %v678
    %v711 = vmul.f32 %v647, %v679
    %v712 = vmul.f32 %v648, %v680
    %v713 = vmul.f32 %v649, %v681
    %v714 = vmul.f32 %v650, %v682
    %v715 = vmul.f32 %v651, %v683
    %v716 = vmul.f32 %v652, %v684
    %v717 = vmul.f32 %v653, %v685
    %v718 = vmul.f32 %v654, %v686
    %v719 = vmul.f32 %v655, %v687
    %v720 = vmul.f32 %v656, %v688
    %v721 = vmul.f32 %v657, %v689
    %v722 = vmul.f32 %v658, %v690
    %v723 = vmul.f32 %v659, %v691
    %v724 = vmul.f32 %v660, %v692
    %v725 = vmul.f32 %v661, %v693
    %v726 = vmul.f32 %v662, %v694
    %v727 = vmul.f32 %v663, %v695
    %v728 = vmul.f32 %v664, %v696
    %v729 = vmul.f32 %v665, %v697
    %v730 = vmul.f32 %v666, %v698
    %v731 = vmul.f32 %v667, %v699
    %v732 = vmul.f32 %v668, %v700
    %v733 = vmul.f32 %v669, %v701
    %v734 = vmul.f32 %v670, %v702
    %v735 = vld [vmem:[%s3] sm:$0x1]
    %737 = vset.pattern.permute.xlu0 0
    %738 = vperm.xlu0 %737, %v703
    %v739 = vpop.permute.xlu0 %738
    %742 = vset.pattern.permute.xlu0 0
    %743 = vperm.xlu0 %742, %v704
    %v744 = vpop.permute.xlu0 %743
    %747 = vset.pattern.permute.xlu0 0
    %748 = vperm.xlu0 %747, %v705
    %v749 = vpop.permute.xlu0 %748
    %752 = vset.pattern.permute.xlu0 0
    %753 = vperm.xlu0 %752, %v706
    %v754 = vpop.permute.xlu0 %753
    %757 = vset.pattern.permute.xlu0 0
    %758 = vperm.xlu0 %757, %v707
    %v759 = vpop.permute.xlu0 %758
    %762 = vset.pattern.permute.xlu0 0
    %763 = vperm.xlu0 %762, %v708
    %v764 = vpop.permute.xlu0 %763
    %767 = vset.pattern.permute.xlu0 0
    %768 = vperm.xlu0 %767, %v709
    %v769 = vpop.permute.xlu0 %768
    %772 = vset.pattern.permute.xlu0 0
    %773 = vperm.xlu0 %772, %v710
    %v774 = vpop.permute.xlu0 %773
    %777 = vset.pattern.permute.xlu0 0
    %778 = vperm.xlu0 %777, %v711
    %v779 = vpop.permute.xlu0 %778
    %782 = vset.pattern.permute.xlu0 0
    %783 = vperm.xlu0 %782, %v712
    %v784 = vpop.permute.xlu0 %783
    %787 = vset.pattern.permute.xlu0 0
    %788 = vperm.xlu0 %787, %v713
    %v789 = vpop.permute.xlu0 %788
    %792 = vset.pattern.permute.xlu0 0
    %793 = vperm.xlu0 %792, %v714
    %v794 = vpop.permute.xlu0 %793
    %797 = vset.pattern.permute.xlu0 0
    %798 = vperm.xlu0 %797, %v715
    %v799 = vpop.permute.xlu0 %798
    %802 = vset.pattern.permute.xlu0 0
    %803 = vperm.xlu0 %802, %v716
    %v804 = vpop.permute.xlu0 %803
    %807 = vset.pattern.permute.xlu0 0
    %808 = vperm.xlu0 %807, %v717
    %v809 = vpop.permute.xlu0 %808
    %812 = vset.pattern.permute.xlu0 0
    %813 = vperm.xlu0 %812, %v718
    %v814 = vpop.permute.xlu0 %813
    %817 = vset.pattern.permute.xlu0 0
    %818 = vperm.xlu0 %817, %v719
    %v819 = vpop.permute.xlu0 %818
    %822 = vset.pattern.permute.xlu0 0
    %823 = vperm.xlu0 %822, %v720
    %v824 = vpop.permute.xlu0 %823
    %827 = vset.pattern.permute.xlu0 0
    %828 = vperm.xlu0 %827, %v721
    %v829 = vpop.permute.xlu0 %828
    %832 = vset.pattern.permute.xlu0 0
    %833 = vperm.xlu0 %832, %v722
    %v834 = vpop.permute.xlu0 %833
    %837 = vset.pattern.permute.xlu0 0
    %838 = vperm.xlu0 %837, %v723
    %v839 = vpop.permute.xlu0 %838
    %842 = vset.pattern.permute.xlu0 0
    %843 = vperm.xlu0 %842, %v724
    %v844 = vpop.permute.xlu0 %843
    %847 = vset.pattern.permute.xlu0 0
    %848 = vperm.xlu0 %847, %v725
    %v849 = vpop.permute.xlu0 %848
    %852 = vset.pattern.permute.xlu0 0
    %853 = vperm.xlu0 %852, %v726
    %v854 = vpop.permute.xlu0 %853
    %857 = vset.pattern.permute.xlu0 0
    %858 = vperm.xlu0 %857, %v727
    %v859 = vpop.permute.xlu0 %858
    %862 = vset.pattern.permute.xlu0 0
    %863 = vperm.xlu0 %862, %v728
    %v864 = vpop.permute.xlu0 %863
    %867 = vset.pattern.permute.xlu0 0
    %868 = vperm.xlu0 %867, %v729
    %v869 = vpop.permute.xlu0 %868
    %872 = vset.pattern.permute.xlu0 0
    %873 = vperm.xlu0 %872, %v730
    %v874 = vpop.permute.xlu0 %873
    %877 = vset.pattern.permute.xlu0 0
    %878 = vperm.xlu0 %877, %v731
    %v879 = vpop.permute.xlu0 %878
    %882 = vset.pattern.permute.xlu0 0
    %883 = vperm.xlu0 %882, %v732
    %v884 = vpop.permute.xlu0 %883
    %887 = vset.pattern.permute.xlu0 0
    %888 = vperm.xlu0 %887, %v733
    %v889 = vpop.permute.xlu0 %888
    %892 = vset.pattern.permute.xlu0 0
    %893 = vperm.xlu0 %892, %v734
    %v894 = vpop.permute.xlu0 %893
    %v897 = vlaneseq
    %v898 = vshrl.u32 %v897, 7
    %v899 = vsub.s32 0, %v898
    %v900 = vrot.slane %v735, %v899
    %v902 = vmul.f32 %v739, %v900
    %v903 = vmul.f32 %v744, %v900
    %v904 = vmul.f32 %v749, %v900
    %v905 = vmul.f32 %v754, %v900
    %v906 = vmul.f32 %v759, %v900
    %v907 = vmul.f32 %v764, %v900
    %v908 = vmul.f32 %v769, %v900
    %v909 = vmul.f32 %v774, %v900
    %v910 = vmul.f32 %v779, %v900
    %v911 = vmul.f32 %v784, %v900
    %v912 = vmul.f32 %v789, %v900
    %v913 = vmul.f32 %v794, %v900
    %v914 = vmul.f32 %v799, %v900
    %v915 = vmul.f32 %v804, %v900
    %v916 = vmul.f32 %v809, %v900
    %v917 = vmul.f32 %v814, %v900
    %v918 = vmul.f32 %v819, %v900
    %v919 = vmul.f32 %v824, %v900
    %v920 = vmul.f32 %v829, %v900
    %v921 = vmul.f32 %v834, %v900
    %v922 = vmul.f32 %v839, %v900
    %v923 = vmul.f32 %v844, %v900
    %v924 = vmul.f32 %v849, %v900
    %v925 = vmul.f32 %v854, %v900
    %v926 = vmul.f32 %v859, %v900
    %v927 = vmul.f32 %v864, %v900
    %v928 = vmul.f32 %v869, %v900
    %v929 = vmul.f32 %v874, %v900
    %v930 = vmul.f32 %v879, %v900
    %v931 = vmul.f32 %v884, %v900
    %v932 = vmul.f32 %v889, %v900
    %v933 = vmul.f32 %v894, %v900
    %v934 = vld [vmem:[%s4] sm:$0x1]
    %v936 = vlaneseq
    %v937 = vshrl.u32 %v936, 7
    %v938 = vsub.s32 0, %v937
    %v939 = vrot.slane %v934, %v938
    %v941 = vadd.f32 %v902, %v939
    %v942 = vadd.f32 %v903, %v939
    %v943 = vadd.f32 %v904, %v939
    %v944 = vadd.f32 %v905, %v939
    %v945 = vadd.f32 %v906, %v939
    %v946 = vadd.f32 %v907, %v939
    %v947 = vadd.f32 %v908, %v939
    %v948 = vadd.f32 %v909, %v939
    %v949 = vadd.f32 %v910, %v939
    %v950 = vadd.f32 %v911, %v939
    %v951 = vadd.f32 %v912, %v939
    %v952 = vadd.f32 %v913, %v939
    %v953 = vadd.f32 %v914, %v939
    %v954 = vadd.f32 %v915, %v939
    %v955 = vadd.f32 %v916, %v939
    %v956 = vadd.f32 %v917, %v939
    %v957 = vadd.f32 %v918, %v939
    %v958 = vadd.f32 %v919, %v939
    %v959 = vadd.f32 %v920, %v939
    %v960 = vadd.f32 %v921, %v939
    %v961 = vadd.f32 %v922, %v939
    %v962 = vadd.f32 %v923, %v939
    %v963 = vadd.f32 %v924, %v939
    %v964 = vadd.f32 %v925, %v939
    %v965 = vadd.f32 %v926, %v939
    %v966 = vadd.f32 %v927, %v939
    %v967 = vadd.f32 %v928, %v939
    %v968 = vadd.f32 %v929, %v939
    %v969 = vadd.f32 %v930, %v939
    %v970 = vadd.f32 %v931, %v939
    %v971 = vadd.f32 %v932, %v939
    %v972 = vadd.f32 %v933, %v939
    %v973 = vmax.f32 %v941, 0.0
    %v974 = vmax.f32 %v942, 0.0
    %v975 = vmax.f32 %v943, 0.0
    %v976 = vmax.f32 %v944, 0.0
    %v977 = vmax.f32 %v945, 0.0
    %v978 = vmax.f32 %v946, 0.0
    %v979 = vmax.f32 %v947, 0.0
    %v980 = vmax.f32 %v948, 0.0
    %v981 = vmax.f32 %v949, 0.0
    %v982 = vmax.f32 %v950, 0.0
    %v983 = vmax.f32 %v951, 0.0
    %v984 = vmax.f32 %v952, 0.0
    %v985 = vmax.f32 %v953, 0.0
    %v986 = vmax.f32 %v954, 0.0
    %v987 = vmax.f32 %v955, 0.0
    %v988 = vmax.f32 %v956, 0.0
    %v989 = vmax.f32 %v957, 0.0
    %v990 = vmax.f32 %v958, 0.0
    %v991 = vmax.f32 %v959, 0.0
    %v992 = vmax.f32 %v960, 0.0
    %v993 = vmax.f32 %v961, 0.0
    %v994 = vmax.f32 %v962, 0.0
    %v995 = vmax.f32 %v963, 0.0
    %v996 = vmax.f32 %v964, 0.0
    %v997 = vmax.f32 %v965, 0.0
    %v998 = vmax.f32 %v966, 0.0
    %v999 = vmax.f32 %v967, 0.0
    %v1000 = vmax.f32 %v968, 0.0
    %v1001 = vmax.f32 %v969, 0.0
    %v1002 = vmax.f32 %v970, 0.0
    %v1003 = vmax.f32 %v971, 0.0
    %v1004 = vmax.f32 %v972, 0.0
    %v1005 = vpack.c.bf16 %v974, %v973
    %v1006 = vpack.c.bf16 %v976, %v975
    %v1007 = vpack.c.bf16 %v978, %v977
    %v1008 = vpack.c.bf16 %v980, %v979
    %v1009 = vpack.c.bf16 %v982, %v981
    %v1010 = vpack.c.bf16 %v984, %v983
    %v1011 = vpack.c.bf16 %v986, %v985
    %v1012 = vpack.c.bf16 %v988, %v987
    %v1013 = vpack.c.bf16 %v990, %v989
    %v1014 = vpack.c.bf16 %v992, %v991
    %v1015 = vpack.c.bf16 %v994, %v993
    %v1016 = vpack.c.bf16 %v996, %v995
    %v1017 = vpack.c.bf16 %v998, %v997
    %v1018 = vpack.c.bf16 %v1000, %v999
    %v1019 = vpack.c.bf16 %v1002, %v1001
    %v1020 = vpack.c.bf16 %v1004, %v1003
    %v1037 = vunpack.c.l.b16 %v1005
    %v1038 = vunpack.c.h.b16 %v1005
    %v1039 = vunpack.c.l.b16 %v1006
    %v1040 = vunpack.c.h.b16 %v1006
    %v1041 = vunpack.c.l.b16 %v1007
    %v1042 = vunpack.c.h.b16 %v1007
    %v1043 = vunpack.c.l.b16 %v1008
    %v1044 = vunpack.c.h.b16 %v1008
    %v1045 = vunpack.c.l.b16 %v1009
    %v1046 = vunpack.c.h.b16 %v1009
    %v1047 = vunpack.c.l.b16 %v1010
    %v1048 = vunpack.c.h.b16 %v1010
    %v1049 = vunpack.c.l.b16 %v1011
    %v1050 = vunpack.c.h.b16 %v1011
    %v1051 = vunpack.c.l.b16 %v1012
    %v1052 = vunpack.c.h.b16 %v1012
    %v1053 = vunpack.c.l.b16 %v1013
    %v1054 = vunpack.c.h.b16 %v1013
    %v1055 = vunpack.c.l.b16 %v1014
    %v1056 = vunpack.c.h.b16 %v1014
    %v1057 = vunpack.c.l.b16 %v1015
    %v1058 = vunpack.c.h.b16 %v1015
    %v1059 = vunpack.c.l.b16 %v1016
    %v1060 = vunpack.c.h.b16 %v1016
    %v1061 = vunpack.c.l.b16 %v1017
    %v1062 = vunpack.c.h.b16 %v1017
    %v1063 = vunpack.c.l.b16 %v1018
    %v1064 = vunpack.c.h.b16 %v1018
    %v1065 = vunpack.c.l.b16 %v1019
    %v1066 = vunpack.c.h.b16 %v1019
    %v1067 = vunpack.c.l.b16 %v1020
    %v1068 = vunpack.c.h.b16 %v1020
    %v1069 = vpack.c.b16 %v1037, %v1037
    %v1070 = vpack.c.b16 %v1038, %v1038
    %v1071 = vpack.c.b16 %v1039, %v1039
    %v1072 = vpack.c.b16 %v1040, %v1040
    %v1073 = vpack.c.b16 %v1041, %v1041
    %v1074 = vpack.c.b16 %v1042, %v1042
    %v1075 = vpack.c.b16 %v1043, %v1043
    %v1076 = vpack.c.b16 %v1044, %v1044
    %v1077 = vpack.c.b16 %v1045, %v1045
    %v1078 = vpack.c.b16 %v1046, %v1046
    %v1079 = vpack.c.b16 %v1047, %v1047
    %v1080 = vpack.c.b16 %v1048, %v1048
    %v1081 = vpack.c.b16 %v1049, %v1049
    %v1082 = vpack.c.b16 %v1050, %v1050
    %v1083 = vpack.c.b16 %v1051, %v1051
    %v1084 = vpack.c.b16 %v1052, %v1052
    %v1085 = vpack.c.b16 %v1053, %v1053
    %v1086 = vpack.c.b16 %v1054, %v1054
    %v1087 = vpack.c.b16 %v1055, %v1055
    %v1088 = vpack.c.b16 %v1056, %v1056
    %v1089 = vpack.c.b16 %v1057, %v1057
    %v1090 = vpack.c.b16 %v1058, %v1058
    %v1091 = vpack.c.b16 %v1059, %v1059
    %v1092 = vpack.c.b16 %v1060, %v1060
    %v1093 = vpack.c.b16 %v1061, %v1061
    %v1094 = vpack.c.b16 %v1062, %v1062
    %v1095 = vpack.c.b16 %v1063, %v1063
    %v1096 = vpack.c.b16 %v1064, %v1064
    %v1097 = vpack.c.b16 %v1065, %v1065
    %v1098 = vpack.c.b16 %v1066, %v1066
    %v1099 = vpack.c.b16 %v1067, %v1067
    %v1100 = vpack.c.b16 %v1068, %v1068
    %vm1133 = vcmask 60416
    %1134 = vst.msk [vmem:[%s5] sm:$0xf] %vm1133, %v1069
    %1135 = vst.msk [vmem:[%s5 + $0x4] sm:$0xf] %vm1133, %v1070
    %1136 = vst.msk [vmem:[%s5 + $0x8] sm:$0xf] %vm1133, %v1071
    %1137 = vst.msk [vmem:[%s5 + $0xc] sm:$0xf] %vm1133, %v1072
    %1138 = vst.msk [vmem:[%s5 + $0x10] sm:$0xf] %vm1133, %v1073
    %1139 = vst.msk [vmem:[%s5 + $0x14] sm:$0xf] %vm1133, %v1074
    %1140 = vst.msk [vmem:[%s5 + $0x18] sm:$0xf] %vm1133, %v1075
    %1141 = vst.msk [vmem:[%s5 + $0x1c] sm:$0xf] %vm1133, %v1076
    %1142 = vst.msk [vmem:[%s5 + $0x20] sm:$0xf] %vm1133, %v1077
    %1143 = vst.msk [vmem:[%s5 + $0x24] sm:$0xf] %vm1133, %v1078
    %1144 = vst.msk [vmem:[%s5 + $0x28] sm:$0xf] %vm1133, %v1079
    %1145 = vst.msk [vmem:[%s5 + $0x2c] sm:$0xf] %vm1133, %v1080
    %1146 = vst.msk [vmem:[%s5 + $0x30] sm:$0xf] %vm1133, %v1081
    %1147 = vst.msk [vmem:[%s5 + $0x34] sm:$0xf] %vm1133, %v1082
    %1148 = vst.msk [vmem:[%s5 + $0x38] sm:$0xf] %vm1133, %v1083
    %1149 = vst.msk [vmem:[%s5 + $0x3c] sm:$0xf] %vm1133, %v1084
    %1150 = vst.msk [vmem:[%s5 + $0x40] sm:$0xf] %vm1133, %v1085
    %1151 = vst.msk [vmem:[%s5 + $0x44] sm:$0xf] %vm1133, %v1086
    %1152 = vst.msk [vmem:[%s5 + $0x48] sm:$0xf] %vm1133, %v1087
    %1153 = vst.msk [vmem:[%s5 + $0x4c] sm:$0xf] %vm1133, %v1088
    %1154 = vst.msk [vmem:[%s5 + $0x50] sm:$0xf] %vm1133, %v1089
    %1155 = vst.msk [vmem:[%s5 + $0x54] sm:$0xf] %vm1133, %v1090
    %1156 = vst.msk [vmem:[%s5 + $0x58] sm:$0xf] %vm1133, %v1091
    %1157 = vst.msk [vmem:[%s5 + $0x5c] sm:$0xf] %vm1133, %v1092
    %1158 = vst.msk [vmem:[%s5 + $0x60] sm:$0xf] %vm1133, %v1093
    %1159 = vst.msk [vmem:[%s5 + $0x64] sm:$0xf] %vm1133, %v1094
    %1160 = vst.msk [vmem:[%s5 + $0x68] sm:$0xf] %vm1133, %v1095
    %1161 = vst.msk [vmem:[%s5 + $0x6c] sm:$0xf] %vm1133, %v1096
    %1162 = vst.msk [vmem:[%s5 + $0x70] sm:$0xf] %vm1133, %v1097
    %1163 = vst.msk [vmem:[%s5 + $0x74] sm:$0xf] %vm1133, %v1098
    %1164 = vst.msk [vmem:[%s5 + $0x78] sm:$0xf] %vm1133, %v1099
    %1165 = vst.msk [vmem:[%s5 + $0x7c] sm:$0xf] %vm1133, %v1100
  $region29: #{edge_gcn_lstm_forward.2} parent=0 // pred_fallthru
    _
  // Predicated region
  $region30: #{edge_gcn_lstm_forward.2} parent=0 // pred_check
    _
  $region31: #{edge_gcn_lstm_forward.2} parent=0 // pred_check_branch
    %1167 = sbr.rel (0) target = $region33
  $region32: #{edge_gcn_lstm_forward.2} parent=0 // pred_region
    _
  $region33: #{edge_gcn_lstm_forward.2} parent=0 // pred_fallthru
    _
  // Predicated region
  $region34: #{edge_gcn_lstm_forward.2} parent=0 // pred_check
    _
  $region35: #{edge_gcn_lstm_forward.2} parent=0 // pred_check_branch
    %1169 = sbr.rel (0) target = $region37
  $region36: #{edge_gcn_lstm_forward.2} parent=0 // pred_region
    _
  $region37: #{edge_gcn_lstm_forward.2} parent=0 // pred_fallthru
    _

// kernel: edge_gcn_lstm_forward.3
$region0: #{edge_gcn_lstm_forward.3}
  #allocation0 [shape = 'u32[]', space=smem, size = 0x4, offset = 0x4, fixed_abs, tag = 'smem constant byte address 0x4 - core index']
  #allocation1 [shape = 'u32[144,128]{1,0:T(1,128)}', space=vmem, size = 0x12000, scoped, tag = 'internal scratch']
  #allocation2 [shape = 'f32[8,16]{1,0:T(8,128)}', space=vmem, size = 0x1000, scoped, tag = 'scratch operand']
  #allocation3 [shape = 'f32[8,16]{1,0:T(8,128)}', space=vmem, size = 0x1000, scoped, tag = 'scratch operand']
  #allocation4 [shape = 'f32[8,16]{1,0:T(8,128)}', space=vmem, size = 0x1000, scoped, tag = 'scratch operand']
  #allocation5 [shape = 'f32[8,16]{1,0:T(8,128)}', space=vmem, size = 0x1000, scoped, tag = 'scratch operand']
  #allocation6 [shape = 'f32[8,16]{1,0:T(8,128)}', space=vmem, size = 0x1000, scoped, tag = 'scratch operand']
  #allocation7 [shape = 'f32[1,1]{1,0:T(1,128)S(1)}', space=vmem, size = 0x200, scoped, tag = 'scoped memory for edge_gcn_lstm_forward.3']
  %s0 = inlined_call_operand.vmem [shape: s32[8,2], index: 0, kind: input, shape index: {}]
  %s1 = inlined_call_operand.vmem [shape: bf16[256,8], index: 1, kind: input, shape index: {}]
  %s2 = inlined_call_operand.vmem [shape: bf16[8,8], index: 2, kind: input, shape index: {}]
  %s3 = inlined_call_operand.vmem [shape: bf16[4,8,16], index: 3, kind: input, shape index: {}]
  %s4 = inlined_call_operand.vmem [shape: bf16[4,8,16], index: 4, kind: input, shape index: {}]
  %s5 = inlined_call_operand.vmem [shape: bf16[4,8,16], index: 5, kind: input, shape index: {}]
  %s6 = inlined_call_operand.vmem [shape: bf16[4,16,16], index: 6, kind: input, shape index: {}]
  %s7 = inlined_call_operand.vmem [shape: f32[4,1,16], index: 7, kind: input, shape index: {}]
  %s8 = inlined_call_operand.vmem [shape: bf16[16,1], index: 8, kind: input, shape index: {}]
  %s9 = inlined_call_operand.<no memory space> [shape: f32[1,1], index: 9, kind: input, shape index: {}]
  %s10 = inlined_call_operand.vmem [shape: f32[8,1], index: 10, kind: output, shape index: {}]
  %s11 = sld [smem:[#allocation0]]
  $region50: #{edge_gcn_lstm_forward.3} parent=0
    _
  %s13 = ssub.s32 1, %s11
  %s14 = scalar_select 0, %s13, %s11
  %v15 = vstv %s9
  %16 = vst [vmem:[#allocation7] sm:$0x1] %v15
  // Predicated region
  $region2: #{edge_gcn_lstm_forward.3} parent=0 // pred_check
    _
  $region3: #{edge_gcn_lstm_forward.3} parent=0 // pred_check_branch
    %18 = sbr.rel (0) target = $region5
  $region4: #{edge_gcn_lstm_forward.3} parent=0 // pred_region
    _
  $region5: #{edge_gcn_lstm_forward.3} parent=0 // pred_fallthru
    _
  // Predicated region
  $region6: #{edge_gcn_lstm_forward.3} parent=0 // pred_check
    _
  $region7: #{edge_gcn_lstm_forward.3} parent=0 // pred_check_branch
    %20 = sbr.rel (0) target = $region9
  $region8: #{edge_gcn_lstm_forward.3} parent=0 // pred_region
    _
  $region9: #{edge_gcn_lstm_forward.3} parent=0 // pred_fallthru
    _
  // Predicated region
  $region10: #{edge_gcn_lstm_forward.3} parent=0 // pred_check
    _
  $region11: #{edge_gcn_lstm_forward.3} parent=0 // pred_check_branch
    %22 = sbr.rel (0) target = $region13
  $region12: #{edge_gcn_lstm_forward.3} parent=0 // pred_region
    _
  $region13: #{edge_gcn_lstm_forward.3} parent=0 // pred_fallthru
    _
  // Predicated region
  $region14: #{edge_gcn_lstm_forward.3} parent=0 // pred_check
    _
  $region15: #{edge_gcn_lstm_forward.3} parent=0 // pred_check_branch
    %24 = sbr.rel (0) target = $region17
  $region16: #{edge_gcn_lstm_forward.3} parent=0 // pred_region
    _
  $region17: #{edge_gcn_lstm_forward.3} parent=0 // pred_fallthru
    _
  // Predicated region
  $region18: #{edge_gcn_lstm_forward.3} parent=0 // pred_check
    _
  $region19: #{edge_gcn_lstm_forward.3} parent=0 // pred_check_branch
    %26 = sbr.rel (0) target = $region21
  $region20: #{edge_gcn_lstm_forward.3} parent=0 // pred_region
    _
  $region21: #{edge_gcn_lstm_forward.3} parent=0 // pred_fallthru
    _
  // Predicated region
  $region22: #{edge_gcn_lstm_forward.3} parent=0 // pred_check
    _
  $region23: #{edge_gcn_lstm_forward.3} parent=0 // pred_check_branch
    %28 = sbr.rel (0) target = $region25
  $region24: #{edge_gcn_lstm_forward.3} parent=0 // pred_region
    _
  $region25: #{edge_gcn_lstm_forward.3} parent=0 // pred_fallthru
    _
  // Predicated region
  $region26: #{edge_gcn_lstm_forward.3} parent=0 // pred_check
    _
  $region27: #{edge_gcn_lstm_forward.3} parent=0 // pred_check_branch
    %30 = sbr.rel (0) target = $region29
  $region28: #{edge_gcn_lstm_forward.3} parent=0 // pred_region
    _
  $region29: #{edge_gcn_lstm_forward.3} parent=0 // pred_fallthru
    _
  // Predicated region
  $region30: #{edge_gcn_lstm_forward.3} parent=0 // pred_check
    _
  $region31: #{edge_gcn_lstm_forward.3} parent=0 // pred_check_branch
    %32 = sbr.rel (0) target = $region33
  $region32: #{edge_gcn_lstm_forward.3} parent=0 // pred_region
    _
  $region33: #{edge_gcn_lstm_forward.3} parent=0 // pred_fallthru
    _
  // Predicated region
  $region34: #{edge_gcn_lstm_forward.3} parent=0 // pred_check
    _
  $region35: #{edge_gcn_lstm_forward.3} parent=0 // pred_check_branch
    %34 = sbr.rel (0) target = $region37
  $region36: #{edge_gcn_lstm_forward.3} parent=0 // pred_region
    _
  $region37: #{edge_gcn_lstm_forward.3} parent=0 // pred_fallthru
    _
  // Predicated region
  $region38: #{edge_gcn_lstm_forward.3} parent=0 // pred_check
    _
  $region39: #{edge_gcn_lstm_forward.3} parent=0 // pred_check_branch
    %36 = sbr.rel (0) target = $region41
  $region40: #{edge_gcn_lstm_forward.3} parent=0 // pred_region
    _
  $region41: #{edge_gcn_lstm_forward.3} parent=0 // pred_fallthru
    _
  %v38 = vld [vmem:[%s1] sm:$0xf]
  %v39 = vld [vmem:[%s1 + $0x4] sm:$0xf]
  %v40 = vld [vmem:[%s1 + $0x8] sm:$0xf]
  %v41 = vld [vmem:[%s1 + $0xc] sm:$0xf]
  %v42 = vld [vmem:[%s1 + $0x10] sm:$0xf]
  %v43 = vld [vmem:[%s1 + $0x14] sm:$0xf]
  %v44 = vld [vmem:[%s1 + $0x18] sm:$0xf]
  %v45 = vld [vmem:[%s1 + $0x1c] sm:$0xf]
  %v46 = vld [vmem:[%s1 + $0x20] sm:$0xf]
  %v47 = vld [vmem:[%s1 + $0x24] sm:$0xf]
  %v48 = vld [vmem:[%s1 + $0x28] sm:$0xf]
  %v49 = vld [vmem:[%s1 + $0x2c] sm:$0xf]
  %v50 = vld [vmem:[%s1 + $0x30] sm:$0xf]
  %v51 = vld [vmem:[%s1 + $0x34] sm:$0xf]
  %v52 = vld [vmem:[%s1 + $0x38] sm:$0xf]
  %v53 = vld [vmem:[%s1 + $0x3c] sm:$0xf]
  %v54 = vld [vmem:[%s1 + $0x40] sm:$0xf]
  %v55 = vld [vmem:[%s1 + $0x44] sm:$0xf]
  %v56 = vld [vmem:[%s1 + $0x48] sm:$0xf]
  %v57 = vld [vmem:[%s1 + $0x4c] sm:$0xf]
  %v58 = vld [vmem:[%s1 + $0x50] sm:$0xf]
  %v59 = vld [vmem:[%s1 + $0x54] sm:$0xf]
  %v60 = vld [vmem:[%s1 + $0x58] sm:$0xf]
  %v61 = vld [vmem:[%s1 + $0x5c] sm:$0xf]
  %v62 = vld [vmem:[%s1 + $0x60] sm:$0xf]
  %v63 = vld [vmem:[%s1 + $0x64] sm:$0xf]
  %v64 = vld [vmem:[%s1 + $0x68] sm:$0xf]
  %v65 = vld [vmem:[%s1 + $0x6c] sm:$0xf]
  %v66 = vld [vmem:[%s1 + $0x70] sm:$0xf]
  %v67 = vld [vmem:[%s1 + $0x74] sm:$0xf]
  %v68 = vld [vmem:[%s1 + $0x78] sm:$0xf]
  %v69 = vld [vmem:[%s1 + $0x7c] sm:$0xf]
  %v70 = vld [vmem:[%s0] sm:$0xff]
  %v71 = vlaneseq
  %v72 = vand.u32 %v71, 127
  %v73 = vadd.s32 %v72, 128
  %74 = vset.pattern.permute.xlu0 0
  %75 = vperm.xlu0 %74, %v70
  %v76 = vpop.permute.xlu0 %75
  %vm77 = vcmp.eq.s32.totalorder %v72, %v76
  %vm78 = vcmp.eq.s32.totalorder %v73, %v76
  %v79 = vsel %vm77, 1, 0
  %v80 = vsel %vm78, 1, 0
  %v81 = vcvt.s32.f32 %v79
  %v82 = vcvt.s32.f32 %v80
  %v83 = vpack.c.bf16 %v81, %v81
  %v84 = vpack.c.bf16 %v82, %v82
  %85 = vset.pattern.permute.xlu0 1
  %86 = vperm.xlu0 %85, %v70
  %v87 = vpop.permute.xlu0 %86
  %vm88 = vcmp.eq.s32.totalorder %v72, %v87
  %vm89 = vcmp.eq.s32.totalorder %v73, %v87
  %v90 = vsel %vm88, 1, 0
  %v91 = vsel %vm89, 1, 0
  %v92 = vcvt.s32.f32 %v90
  %v93 = vcvt.s32.f32 %v91
  %v94 = vpack.c.bf16 %v92, %v92
  %v95 = vpack.c.bf16 %v93, %v93
  %v128 = vunpack.c.l.b16 %v38
  %v129 = vunpack.c.l.b16 %v39
  %v130 = vunpack.c.l.b16 %v40
  %v131 = vunpack.c.l.b16 %v41
  %v132 = vunpack.c.l.b16 %v42
  %v133 = vunpack.c.l.b16 %v43
  %v134 = vunpack.c.l.b16 %v44
  %v135 = vunpack.c.l.b16 %v45
  %v136 = vunpack.c.l.b16 %v46
  %v137 = vunpack.c.l.b16 %v47
  %v138 = vunpack.c.l.b16 %v48
  %v139 = vunpack.c.l.b16 %v49
  %v140 = vunpack.c.l.b16 %v50
  %v141 = vunpack.c.l.b16 %v51
  %v142 = vunpack.c.l.b16 %v52
  %v143 = vunpack.c.l.b16 %v53
  %v144 = vunpack.c.l.b16 %v54
  %v145 = vunpack.c.l.b16 %v55
  %v146 = vunpack.c.l.b16 %v56
  %v147 = vunpack.c.l.b16 %v57
  %v148 = vunpack.c.l.b16 %v58
  %v149 = vunpack.c.l.b16 %v59
  %v150 = vunpack.c.l.b16 %v60
  %v151 = vunpack.c.l.b16 %v61
  %v152 = vunpack.c.l.b16 %v62
  %v153 = vunpack.c.l.b16 %v63
  %v154 = vunpack.c.l.b16 %v64
  %v155 = vunpack.c.l.b16 %v65
  %v156 = vunpack.c.l.b16 %v66
  %v157 = vunpack.c.l.b16 %v67
  %v158 = vunpack.c.l.b16 %v68
  %v159 = vunpack.c.l.b16 %v69
  %v160 = vpack.c.b16 %v129, %v128
  %v161 = vpack.c.b16 %v131, %v130
  %v162 = vpack.c.b16 %v133, %v132
  %v163 = vpack.c.b16 %v135, %v134
  %v164 = vpack.c.b16 %v137, %v136
  %v165 = vpack.c.b16 %v139, %v138
  %v166 = vpack.c.b16 %v141, %v140
  %v167 = vpack.c.b16 %v143, %v142
  %v168 = vpack.c.b16 %v145, %v144
  %v169 = vpack.c.b16 %v147, %v146
  %v170 = vpack.c.b16 %v149, %v148
  %v171 = vpack.c.b16 %v151, %v150
  %v172 = vpack.c.b16 %v153, %v152
  %v173 = vpack.c.b16 %v155, %v154
  %v174 = vpack.c.b16 %v157, %v156
  %v175 = vpack.c.b16 %v159, %v158
  %192 = vmatprep.subr.bf16.mxu0 0
  %193 = vmatpush1.bf16.msra.mxu0 %v167
  %194 = vmatprep.subr.bf16.mxu0 0
  %195 = vmatpush1.bf16.msra.mxu0 %v166
  %196 = vmatprep.subr.bf16.mxu0 0
  %197 = vmatpush1.bf16.msra.mxu0 %v165
  %198 = vmatprep.subr.bf16.mxu0 0
  %199 = vmatpush1.bf16.msra.mxu0 %v164
  %200 = vmatprep.subr.bf16.mxu0 0
  %201 = vmatpush1.bf16.msra.mxu0 %v163
  %202 = vmatprep.subr.bf16.mxu0 0
  %203 = vmatpush1.bf16.msra.mxu0 %v162
  %204 = vmatprep.subr.bf16.mxu0 0
  %205 = vmatpush1.bf16.msra.mxu0 %v161
  %206 = vmatprep.subr.bf16.mxu0 0
  %207 = vmatpush1.bf16.msra.mxu0 %v160
  %208 = vmatprep.subr.bf16.mxu0 0
  %209 = vmatpush2.bf16.msra.mxu0 %v175
  %210 = vmatprep.subr.bf16.mxu0 0
  %211 = vmatpush2.bf16.msra.mxu0 %v174
  %212 = vmatprep.subr.bf16.mxu0 0
  %213 = vmatpush2.bf16.msra.mxu0 %v173
  %214 = vmatprep.subr.bf16.mxu0 0
  %215 = vmatpush2.bf16.msra.mxu0 %v172
  %216 = vmatprep.subr.bf16.mxu0 0
  %217 = vmatpush2.bf16.msra.mxu0 %v171
  %218 = vmatprep.subr.bf16.mxu0 0
  %219 = vmatpush2.bf16.msra.mxu0 %v170
  %220 = vmatprep.subr.bf16.mxu0 0
  %221 = vmatpush2.bf16.msra.mxu0 %v169
  %222 = vmatprep.subr.bf16.mxu0 0
  %223 = vmatpush2.bf16.msra.mxu0 %v168
  %224 = vmatprep.mubr.bf16.mxu0 %v84
  %225 = vmatmul.mubr.bf16.gmra.mxu0 %v83
  %v226 = vpop.f32.mrf.mxu0
  %v227 = vadd.f32 0.0, %v226
  %v228 = vpop.f32.mrf.mxu0
  %v229 = vpop.f32.mrf.mxu0
  %v230 = vpop.f32.mrf.mxu0
  %231 = vdwg.mxu0
  %v232 = vpack.c.bf16 %v227, %v227
  %233 = vmatprep.subr.bf16.mxu0 0
  %234 = vmatpush1.bf16.msra.mxu0 %v167
  %235 = vmatprep.subr.bf16.mxu0 0
  %236 = vmatpush1.bf16.msra.mxu0 %v166
  %237 = vmatprep.subr.bf16.mxu0 0
  %238 = vmatpush1.bf16.msra.mxu0 %v165
  %239 = vmatprep.subr.bf16.mxu0 0
  %240 = vmatpush1.bf16.msra.mxu0 %v164
  %241 = vmatprep.subr.bf16.mxu0 0
  %242 = vmatpush1.bf16.msra.mxu0 %v163
  %243 = vmatprep.subr.bf16.mxu0 0
  %244 = vmatpush1.bf16.msra.mxu0 %v162
  %245 = vmatprep.subr.bf16.mxu0 0
  %246 = vmatpush1.bf16.msra.mxu0 %v161
  %247 = vmatprep.subr.bf16.mxu0 0
  %248 = vmatpush1.bf16.msra.mxu0 %v160
  %249 = vmatprep.subr.bf16.mxu0 0
  %250 = vmatpush2.bf16.msra.mxu0 %v175
  %251 = vmatprep.subr.bf16.mxu0 0
  %252 = vmatpush2.bf16.msra.mxu0 %v174
  %253 = vmatprep.subr.bf16.mxu0 0
  %254 = vmatpush2.bf16.msra.mxu0 %v173
  %255 = vmatprep.subr.bf16.mxu0 0
  %256 = vmatpush2.bf16.msra.mxu0 %v172
  %257 = vmatprep.subr.bf16.mxu0 0
  %258 = vmatpush2.bf16.msra.mxu0 %v171
  %259 = vmatprep.subr.bf16.mxu0 0
  %260 = vmatpush2.bf16.msra.mxu0 %v170
  %261 = vmatprep.subr.bf16.mxu0 0
  %262 = vmatpush2.bf16.msra.mxu0 %v169
  %263 = vmatprep.subr.bf16.mxu0 0
  %264 = vmatpush2.bf16.msra.mxu0 %v168
  %265 = vmatprep.mubr.bf16.mxu0 %v95
  %266 = vmatmul.mubr.bf16.gmra.mxu0 %v94
  %v267 = vpop.f32.mrf.mxu0
  %v268 = vadd.f32 0.0, %v267
  %v269 = vpop.f32.mrf.mxu0
  %v270 = vpop.f32.mrf.mxu0
  %v271 = vpop.f32.mrf.mxu0
  %272 = vdwg.mxu0
  %v273 = vpack.c.bf16 %v268, %v268
  %v274 = vld [vmem:[%s2] sm:$0xf]
  %v275 = vld [vmem:[%s3] sm:$0xf]
  %v276 = vld [vmem:[%s4] sm:$0xf]
  %vm277 = vcmask 64512
  %v279 = vsel %vm277, %v273, 0
  %vm281 = vcmask 1043456
  %v283 = vsel %vm281, %v276, 0
  %285 = vmatprep.subr.bf16.mxu0 0
  %286 = vmatpush1.bf16.msra.mxu0 0
  %287 = vmatprep.subr.bf16.mxu0 0
  %288 = vmatpush1.bf16.msra.mxu0 0
  %289 = vmatprep.subr.bf16.mxu0 0
  %290 = vmatpush1.bf16.msra.mxu0 0
  %291 = vmatprep.subr.bf16.mxu0 0
  %292 = vmatpush1.bf16.msra.mxu0 0
  %293 = vmatprep.subr.bf16.mxu0 0
  %294 = vmatpush1.bf16.msra.mxu0 0
  %295 = vmatprep.subr.bf16.mxu0 0
  %296 = vmatpush1.bf16.msra.mxu0 0
  %297 = vmatprep.subr.bf16.mxu0 0
  %298 = vmatpush1.bf16.msra.mxu0 0
  %299 = vmatprep.subr.bf16.mxu0 0
  %300 = vmatpush1.bf16.msra.mxu0 %v283
  %301 = vmatprep.subr.bf16.mxu0 0
  %302 = vmatpush2.bf16.msra.mxu0 0
  %303 = vmatprep.subr.bf16.mxu0 0
  %304 = vmatpush2.bf16.msra.mxu0 0
  %305 = vmatprep.subr.bf16.mxu0 0
  %306 = vmatpush2.bf16.msra.mxu0 0
  %307 = vmatprep.subr.bf16.mxu0 0
  %308 = vmatpush2.bf16.msra.mxu0 0
  %309 = vmatprep.subr.bf16.mxu0 0
  %310 = vmatpush2.bf16.msra.mxu0 0
  %311 = vmatprep.subr.bf16.mxu0 0
  %312 = vmatpush2.bf16.msra.mxu0 0
  %313 = vmatprep.subr.bf16.mxu0 0
  %314 = vmatpush2.bf16.msra.mxu0 0
  %315 = vmatprep.subr.bf16.mxu0 0
  %316 = vmatpush2.bf16.msra.mxu0 0
  %317 = vmatprep.mubr.bf16.mxu0 0
  %318 = vmatmul.mubr.bf16.gmra.mxu0 %v279
  %v319 = vpop.f32.mrf.mxu0
  %v320 = vadd.f32 0.0, %v319
  %v321 = vpop.f32.mrf.mxu0
  %v322 = vpop.f32.mrf.mxu0
  %v323 = vpop.f32.mrf.mxu0
  %324 = vdwg.mxu0
  %v326 = vsel %vm277, %v232, 0
  %v329 = vsel %vm281, %v275, 0
  %331 = vmatprep.subr.bf16.mxu0 0
  %332 = vmatpush1.bf16.msra.mxu0 0
  %333 = vmatprep.subr.bf16.mxu0 0
  %334 = vmatpush1.bf16.msra.mxu0 0
  %335 = vmatprep.subr.bf16.mxu0 0
  %336 = vmatpush1.bf16.msra.mxu0 0
  %337 = vmatprep.subr.bf16.mxu0 0
  %338 = vmatpush1.bf16.msra.mxu0 0
  %339 = vmatprep.subr.bf16.mxu0 0
  %340 = vmatpush1.bf16.msra.mxu0 0
  %341 = vmatprep.subr.bf16.mxu0 0
  %342 = vmatpush1.bf16.msra.mxu0 0
  %343 = vmatprep.subr.bf16.mxu0 0
  %344 = vmatpush1.bf16.msra.mxu0 0
  %345 = vmatprep.subr.bf16.mxu0 0
  %346 = vmatpush1.bf16.msra.mxu0 %v329
  %347 = vmatprep.subr.bf16.mxu0 0
  %348 = vmatpush2.bf16.msra.mxu0 0
  %349 = vmatprep.subr.bf16.mxu0 0
  %350 = vmatpush2.bf16.msra.mxu0 0
  %351 = vmatprep.subr.bf16.mxu0 0
  %352 = vmatpush2.bf16.msra.mxu0 0
  %353 = vmatprep.subr.bf16.mxu0 0
  %354 = vmatpush2.bf16.msra.mxu0 0
  %355 = vmatprep.subr.bf16.mxu0 0
  %356 = vmatpush2.bf16.msra.mxu0 0
  %357 = vmatprep.subr.bf16.mxu0 0
  %358 = vmatpush2.bf16.msra.mxu0 0
  %359 = vmatprep.subr.bf16.mxu0 0
  %360 = vmatpush2.bf16.msra.mxu0 0
  %361 = vmatprep.subr.bf16.mxu0 0
  %362 = vmatpush2.bf16.msra.mxu0 0
  %363 = vmatprep.mubr.bf16.mxu0 0
  %364 = vmatmul.mubr.bf16.gmra.mxu0 %v326
  %v365 = vpop.f32.mrf.mxu0
  %v366 = vadd.f32 %v320, %v365
  %v367 = vpop.f32.mrf.mxu0
  %v368 = vpop.f32.mrf.mxu0
  %v369 = vpop.f32.mrf.mxu0
  %370 = vdwg.mxu0
  %v371 = vld [vmem:[%s5] sm:$0xf]
  %v373 = vsel %vm277, %v274, 0
  %v376 = vsel %vm281, %v371, 0
  %378 = vmatprep.subr.bf16.mxu0 0
  %379 = vmatpush1.bf16.msra.mxu0 0
  %380 = vmatprep.subr.bf16.mxu0 0
  %381 = vmatpush1.bf16.msra.mxu0 0
  %382 = vmatprep.subr.bf16.mxu0 0
  %383 = vmatpush1.bf16.msra.mxu0 0
  %384 = vmatprep.subr.bf16.mxu0 0
  %385 = vmatpush1.bf16.msra.mxu0 0
  %386 = vmatprep.subr.bf16.mxu0 0
  %387 = vmatpush1.bf16.msra.mxu0 0
  %388 = vmatprep.subr.bf16.mxu0 0
  %389 = vmatpush1.bf16.msra.mxu0 0
  %390 = vmatprep.subr.bf16.mxu0 0
  %391 = vmatpush1.bf16.msra.mxu0 0
  %392 = vmatprep.subr.bf16.mxu0 0
  %393 = vmatpush1.bf16.msra.mxu0 %v376
  %394 = vmatprep.subr.bf16.mxu0 0
  %395 = vmatpush2.bf16.msra.mxu0 0
  %396 = vmatprep.subr.bf16.mxu0 0
  %397 = vmatpush2.bf16.msra.mxu0 0
  %398 = vmatprep.subr.bf16.mxu0 0
  %399 = vmatpush2.bf16.msra.mxu0 0
  %400 = vmatprep.subr.bf16.mxu0 0
  %401 = vmatpush2.bf16.msra.mxu0 0
  %402 = vmatprep.subr.bf16.mxu0 0
  %403 = vmatpush2.bf16.msra.mxu0 0
  %404 = vmatprep.subr.bf16.mxu0 0
  %405 = vmatpush2.bf16.msra.mxu0 0
  %406 = vmatprep.subr.bf16.mxu0 0
  %407 = vmatpush2.bf16.msra.mxu0 0
  %408 = vmatprep.subr.bf16.mxu0 0
  %409 = vmatpush2.bf16.msra.mxu0 0
  %410 = vmatprep.mubr.bf16.mxu0 0
  %411 = vmatmul.mubr.bf16.gmra.mxu0 %v373
  %v412 = vpop.f32.mrf.mxu0
  %v413 = vadd.f32 0.0, %v412
  %v414 = vpop.f32.mrf.mxu0
  %v415 = vpop.f32.mrf.mxu0
  %v416 = vpop.f32.mrf.mxu0
  %417 = vdwg.mxu0
  %v418 = vadd.f32 %v366, %v413
  %v419 = vld [vmem:[%s7] sm:$0x1]
  %v421 = vlaneseq
  %v422 = vshrl.u32 %v421, 7
  %v423 = vsub.s32 0, %v422
  %v424 = vrot.slane %v419, %v423
  %v426 = vadd.f32 %v418, %v424
  %vm427 = vcmask 130048
  %428 = vst.msk [vmem:[#allocation2] sm:$0xff] %vm427, %v426
  %s429 = scalar_lea.vmem %s3, 4
  %v430 = vld [vmem:[%s429] sm:$0xf]
  %s431 = scalar_lea.vmem %s4, 4
  %v432 = vld [vmem:[%s431] sm:$0xf]
  %v434 = vsel %vm281, %v432, 0
  %436 = vmatprep.subr.bf16.mxu0 0
  %437 = vmatpush1.bf16.msra.mxu0 0
  %438 = vmatprep.subr.bf16.mxu0 0
  %439 = vmatpush1.bf16.msra.mxu0 0
  %440 = vmatprep.subr.bf16.mxu0 0
  %441 = vmatpush1.bf16.msra.mxu0 0
  %442 = vmatprep.subr.bf16.mxu0 0
  %443 = vmatpush1.bf16.msra.mxu0 0
  %444 = vmatprep.subr.bf16.mxu0 0
  %445 = vmatpush1.bf16.msra.mxu0 0
  %446 = vmatprep.subr.bf16.mxu0 0
  %447 = vmatpush1.bf16.msra.mxu0 0
  %448 = vmatprep.subr.bf16.mxu0 0
  %449 = vmatpush1.bf16.msra.mxu0 0
  %450 = vmatprep.subr.bf16.mxu0 0
  %451 = vmatpush1.bf16.msra.mxu0 %v434
  %452 = vmatprep.subr.bf16.mxu0 0
  %453 = vmatpush2.bf16.msra.mxu0 0
  %454 = vmatprep.subr.bf16.mxu0 0
  %455 = vmatpush2.bf16.msra.mxu0 0
  %456 = vmatprep.subr.bf16.mxu0 0
  %457 = vmatpush2.bf16.msra.mxu0 0
  %458 = vmatprep.subr.bf16.mxu0 0
  %459 = vmatpush2.bf16.msra.mxu0 0
  %460 = vmatprep.subr.bf16.mxu0 0
  %461 = vmatpush2.bf16.msra.mxu0 0
  %462 = vmatprep.subr.bf16.mxu0 0
  %463 = vmatpush2.bf16.msra.mxu0 0
  %464 = vmatprep.subr.bf16.mxu0 0
  %465 = vmatpush2.bf16.msra.mxu0 0
  %466 = vmatprep.subr.bf16.mxu0 0
  %467 = vmatpush2.bf16.msra.mxu0 0
  %468 = vmatprep.mubr.bf16.mxu0 0
  %469 = vmatmul.mubr.bf16.gmra.mxu0 %v279
  %v470 = vpop.f32.mrf.mxu0
  %v471 = vadd.f32 0.0, %v470
  %v472 = vpop.f32.mrf.mxu0
  %v473 = vpop.f32.mrf.mxu0
  %v474 = vpop.f32.mrf.mxu0
  %475 = vdwg.mxu0
  %v477 = vsel %vm281, %v430, 0
  %479 = vmatprep.subr.bf16.mxu0 0
  %480 = vmatpush1.bf16.msra.mxu0 0
  %481 = vmatprep.subr.bf16.mxu0 0
  %482 = vmatpush1.bf16.msra.mxu0 0
  %483 = vmatprep.subr.bf16.mxu0 0
  %484 = vmatpush1.bf16.msra.mxu0 0
  %485 = vmatprep.subr.bf16.mxu0 0
  %486 = vmatpush1.bf16.msra.mxu0 0
  %487 = vmatprep.subr.bf16.mxu0 0
  %488 = vmatpush1.bf16.msra.mxu0 0
  %489 = vmatprep.subr.bf16.mxu0 0
  %490 = vmatpush1.bf16.msra.mxu0 0
  %491 = vmatprep.subr.bf16.mxu0 0
  %492 = vmatpush1.bf16.msra.mxu0 0
  %493 = vmatprep.subr.bf16.mxu0 0
  %494 = vmatpush1.bf16.msra.mxu0 %v477
  %495 = vmatprep.subr.bf16.mxu0 0
  %496 = vmatpush2.bf16.msra.mxu0 0
  %497 = vmatprep.subr.bf16.mxu0 0
  %498 = vmatpush2.bf16.msra.mxu0 0
  %499 = vmatprep.subr.bf16.mxu0 0
  %500 = vmatpush2.bf16.msra.mxu0 0
  %501 = vmatprep.subr.bf16.mxu0 0
  %502 = vmatpush2.bf16.msra.mxu0 0
  %503 = vmatprep.subr.bf16.mxu0 0
  %504 = vmatpush2.bf16.msra.mxu0 0
  %505 = vmatprep.subr.bf16.mxu0 0
  %506 = vmatpush2.bf16.msra.mxu0 0
  %507 = vmatprep.subr.bf16.mxu0 0
  %508 = vmatpush2.bf16.msra.mxu0 0
  %509 = vmatprep.subr.bf16.mxu0 0
  %510 = vmatpush2.bf16.msra.mxu0 0
  %511 = vmatprep.mubr.bf16.mxu0 0
  %512 = vmatmul.mubr.bf16.gmra.mxu0 %v326
  %v513 = vpop.f32.mrf.mxu0
  %v514 = vadd.f32 %v471, %v513
  %v515 = vpop.f32.mrf.mxu0
  %v516 = vpop.f32.mrf.mxu0
  %v517 = vpop.f32.mrf.mxu0
  %518 = vdwg.mxu0
  %s519 = scalar_lea.vmem %s5, 4
  %v520 = vld [vmem:[%s519] sm:$0xf]
  %v522 = vsel %vm281, %v520, 0
  %524 = vmatprep.subr.bf16.mxu0 0
  %525 = vmatpush1.bf16.msra.mxu0 0
  %526 = vmatprep.subr.bf16.mxu0 0
  %527 = vmatpush1.bf16.msra.mxu0 0
  %528 = vmatprep.subr.bf16.mxu0 0
  %529 = vmatpush1.bf16.msra.mxu0 0
  %530 = vmatprep.subr.bf16.mxu0 0
  %531 = vmatpush1.bf16.msra.mxu0 0
  %532 = vmatprep.subr.bf16.mxu0 0
  %533 = vmatpush1.bf16.msra.mxu0 0
  %534 = vmatprep.subr.bf16.mxu0 0
  %535 = vmatpush1.bf16.msra.mxu0 0
  %536 = vmatprep.subr.bf16.mxu0 0
  %537 = vmatpush1.bf16.msra.mxu0 0
  %538 = vmatprep.subr.bf16.mxu0 0
  %539 = vmatpush1.bf16.msra.mxu0 %v522
  %540 = vmatprep.subr.bf16.mxu0 0
  %541 = vmatpush2.bf16.msra.mxu0 0
  %542 = vmatprep.subr.bf16.mxu0 0
  %543 = vmatpush2.bf16.msra.mxu0 0
  %544 = vmatprep.subr.bf16.mxu0 0
  %545 = vmatpush2.bf16.msra.mxu0 0
  %546 = vmatprep.subr.bf16.mxu0 0
  %547 = vmatpush2.bf16.msra.mxu0 0
  %548 = vmatprep.subr.bf16.mxu0 0
  %549 = vmatpush2.bf16.msra.mxu0 0
  %550 = vmatprep.subr.bf16.mxu0 0
  %551 = vmatpush2.bf16.msra.mxu0 0
  %552 = vmatprep.subr.bf16.mxu0 0
  %553 = vmatpush2.bf16.msra.mxu0 0
  %554 = vmatprep.subr.bf16.mxu0 0
  %555 = vmatpush2.bf16.msra.mxu0 0
  %556 = vmatprep.mubr.bf16.mxu0 0
  %557 = vmatmul.mubr.bf16.gmra.mxu0 %v373
  %v558 = vpop.f32.mrf.mxu0
  %v559 = vadd.f32 0.0, %v558
  %v560 = vpop.f32.mrf.mxu0
  %v561 = vpop.f32.mrf.mxu0
  %v562 = vpop.f32.mrf.mxu0
  %563 = vdwg.mxu0
  %v564 = vadd.f32 %v514, %v559
  %s565 = scalar_lea.vmem %s7, 1
  %v566 = vld [vmem:[%s565] sm:$0x1]
  %v568 = vlaneseq
  %v569 = vshrl.u32 %v568, 7
  %v570 = vsub.s32 0, %v569
  %v571 = vrot.slane %v566, %v570
  %v573 = vadd.f32 %v564, %v571
  %574 = vst.msk [vmem:[#allocation3] sm:$0xff] %vm427, %v573
  %s575 = scalar_lea.vmem %s3, 8
  %v576 = vld [vmem:[%s575] sm:$0xf]
  %s577 = scalar_lea.vmem %s4, 8
  %v578 = vld [vmem:[%s577] sm:$0xf]
  %v580 = vsel %vm281, %v578, 0
  %582 = vmatprep.subr.bf16.mxu0 0
  %583 = vmatpush1.bf16.msra.mxu0 0
  %584 = vmatprep.subr.bf16.mxu0 0
  %585 = vmatpush1.bf16.msra.mxu0 0
  %586 = vmatprep.subr.bf16.mxu0 0
  %587 = vmatpush1.bf16.msra.mxu0 0
  %588 = vmatprep.subr.bf16.mxu0 0
  %589 = vmatpush1.bf16.msra.mxu0 0
  %590 = vmatprep.subr.bf16.mxu0 0
  %591 = vmatpush1.bf16.msra.mxu0 0
  %592 = vmatprep.subr.bf16.mxu0 0
  %593 = vmatpush1.bf16.msra.mxu0 0
  %594 = vmatprep.subr.bf16.mxu0 0
  %595 = vmatpush1.bf16.msra.mxu0 0
  %596 = vmatprep.subr.bf16.mxu0 0
  %597 = vmatpush1.bf16.msra.mxu0 %v580
  %598 = vmatprep.subr.bf16.mxu0 0
  %599 = vmatpush2.bf16.msra.mxu0 0
  %600 = vmatprep.subr.bf16.mxu0 0
  %601 = vmatpush2.bf16.msra.mxu0 0
  %602 = vmatprep.subr.bf16.mxu0 0
  %603 = vmatpush2.bf16.msra.mxu0 0
  %604 = vmatprep.subr.bf16.mxu0 0
  %605 = vmatpush2.bf16.msra.mxu0 0
  %606 = vmatprep.subr.bf16.mxu0 0
  %607 = vmatpush2.bf16.msra.mxu0 0
  %608 = vmatprep.subr.bf16.mxu0 0
  %609 = vmatpush2.bf16.msra.mxu0 0
  %610 = vmatprep.subr.bf16.mxu0 0
  %611 = vmatpush2.bf16.msra.mxu0 0
  %612 = vmatprep.subr.bf16.mxu0 0
  %613 = vmatpush2.bf16.msra.mxu0 0
  %614 = vmatprep.mubr.bf16.mxu0 0
  %615 = vmatmul.mubr.bf16.gmra.mxu0 %v279
  %v616 = vpop.f32.mrf.mxu0
  %v617 = vadd.f32 0.0, %v616
  %v618 = vpop.f32.mrf.mxu0
  %v619 = vpop.f32.mrf.mxu0
  %v620 = vpop.f32.mrf.mxu0
  %621 = vdwg.mxu0
  %v623 = vsel %vm281, %v576, 0
  %625 = vmatprep.subr.bf16.mxu0 0
  %626 = vmatpush1.bf16.msra.mxu0 0
  %627 = vmatprep.subr.bf16.mxu0 0
  %628 = vmatpush1.bf16.msra.mxu0 0
  %629 = vmatprep.subr.bf16.mxu0 0
  %630 = vmatpush1.bf16.msra.mxu0 0
  %631 = vmatprep.subr.bf16.mxu0 0
  %632 = vmatpush1.bf16.msra.mxu0 0
  %633 = vmatprep.subr.bf16.mxu0 0
  %634 = vmatpush1.bf16.msra.mxu0 0
  %635 = vmatprep.subr.bf16.mxu0 0
  %636 = vmatpush1.bf16.msra.mxu0 0
  %637 = vmatprep.subr.bf16.mxu0 0
  %638 = vmatpush1.bf16.msra.mxu0 0
  %639 = vmatprep.subr.bf16.mxu0 0
  %640 = vmatpush1.bf16.msra.mxu0 %v623
  %641 = vmatprep.subr.bf16.mxu0 0
  %642 = vmatpush2.bf16.msra.mxu0 0
  %643 = vmatprep.subr.bf16.mxu0 0
  %644 = vmatpush2.bf16.msra.mxu0 0
  %645 = vmatprep.subr.bf16.mxu0 0
  %646 = vmatpush2.bf16.msra.mxu0 0
  %647 = vmatprep.subr.bf16.mxu0 0
  %648 = vmatpush2.bf16.msra.mxu0 0
  %649 = vmatprep.subr.bf16.mxu0 0
  %650 = vmatpush2.bf16.msra.mxu0 0
  %651 = vmatprep.subr.bf16.mxu0 0
  %652 = vmatpush2.bf16.msra.mxu0 0
  %653 = vmatprep.subr.bf16.mxu0 0
  %654 = vmatpush2.bf16.msra.mxu0 0
  %655 = vmatprep.subr.bf16.mxu0 0
  %656 = vmatpush2.bf16.msra.mxu0 0
  %657 = vmatprep.mubr.bf16.mxu0 0
  %658 = vmatmul.mubr.bf16.gmra.mxu0 %v326
  %v659 = vpop.f32.mrf.mxu0
  %v660 = vadd.f32 %v617, %v659
  %v661 = vpop.f32.mrf.mxu0
  %v662 = vpop.f32.mrf.mxu0
  %v663 = vpop.f32.mrf.mxu0
  %664 = vdwg.mxu0
  %s665 = scalar_lea.vmem %s5, 8
  %v666 = vld [vmem:[%s665] sm:$0xf]
  %v668 = vsel %vm281, %v666, 0
  %670 = vmatprep.subr.bf16.mxu0 0
  %671 = vmatpush1.bf16.msra.mxu0 0
  %672 = vmatprep.subr.bf16.mxu0 0
  %673 = vmatpush1.bf16.msra.mxu0 0
  %674 = vmatprep.subr.bf16.mxu0 0
  %675 = vmatpush1.bf16.msra.mxu0 0
  %676 = vmatprep.subr.bf16.mxu0 0
  %677 = vmatpush1.bf16.msra.mxu0 0
  %678 = vmatprep.subr.bf16.mxu0 0
  %679 = vmatpush1.bf16.msra.mxu0 0
  %680 = vmatprep.subr.bf16.mxu0 0
  %681 = vmatpush1.bf16.msra.mxu0 0
  %682 = vmatprep.subr.bf16.mxu0 0
  %683 = vmatpush1.bf16.msra.mxu0 0
  %684 = vmatprep.subr.bf16.mxu0 0
  %685 = vmatpush1.bf16.msra.mxu0 %v668
  %686 = vmatprep.subr.bf16.mxu0 0
  %687 = vmatpush2.bf16.msra.mxu0 0
  %688 = vmatprep.subr.bf16.mxu0 0
  %689 = vmatpush2.bf16.msra.mxu0 0
  %690 = vmatprep.subr.bf16.mxu0 0
  %691 = vmatpush2.bf16.msra.mxu0 0
  %692 = vmatprep.subr.bf16.mxu0 0
  %693 = vmatpush2.bf16.msra.mxu0 0
  %694 = vmatprep.subr.bf16.mxu0 0
  %695 = vmatpush2.bf16.msra.mxu0 0
  %696 = vmatprep.subr.bf16.mxu0 0
  %697 = vmatpush2.bf16.msra.mxu0 0
  %698 = vmatprep.subr.bf16.mxu0 0
  %699 = vmatpush2.bf16.msra.mxu0 0
  %700 = vmatprep.subr.bf16.mxu0 0
  %701 = vmatpush2.bf16.msra.mxu0 0
  %702 = vmatprep.mubr.bf16.mxu0 0
  %703 = vmatmul.mubr.bf16.gmra.mxu0 %v373
  %v704 = vpop.f32.mrf.mxu0
  %v705 = vadd.f32 0.0, %v704
  %v706 = vpop.f32.mrf.mxu0
  %v707 = vpop.f32.mrf.mxu0
  %v708 = vpop.f32.mrf.mxu0
  %709 = vdwg.mxu0
  %v710 = vadd.f32 %v660, %v705
  %s711 = scalar_lea.vmem %s7, 2
  %v712 = vld [vmem:[%s711] sm:$0x1]
  %v714 = vlaneseq
  %v715 = vshrl.u32 %v714, 7
  %v716 = vsub.s32 0, %v715
  %v717 = vrot.slane %v712, %v716
  %v719 = vadd.f32 %v710, %v717
  %720 = vst.msk [vmem:[#allocation4] sm:$0xff] %vm427, %v719
  %s721 = scalar_lea.vmem %s3, 12
  %v722 = vld [vmem:[%s721] sm:$0xf]
  %s723 = scalar_lea.vmem %s4, 12
  %v724 = vld [vmem:[%s723] sm:$0xf]
  %v726 = vsel %vm281, %v724, 0
  %728 = vmatprep.subr.bf16.mxu0 0
  %729 = vmatpush1.bf16.msra.mxu0 0
  %730 = vmatprep.subr.bf16.mxu0 0
  %731 = vmatpush1.bf16.msra.mxu0 0
  %732 = vmatprep.subr.bf16.mxu0 0
  %733 = vmatpush1.bf16.msra.mxu0 0
  %734 = vmatprep.subr.bf16.mxu0 0
  %735 = vmatpush1.bf16.msra.mxu0 0
  %736 = vmatprep.subr.bf16.mxu0 0
  %737 = vmatpush1.bf16.msra.mxu0 0
  %738 = vmatprep.subr.bf16.mxu0 0
  %739 = vmatpush1.bf16.msra.mxu0 0
  %740 = vmatprep.subr.bf16.mxu0 0
  %741 = vmatpush1.bf16.msra.mxu0 0
  %742 = vmatprep.subr.bf16.mxu0 0
  %743 = vmatpush1.bf16.msra.mxu0 %v726
  %744 = vmatprep.subr.bf16.mxu0 0
  %745 = vmatpush2.bf16.msra.mxu0 0
  %746 = vmatprep.subr.bf16.mxu0 0
  %747 = vmatpush2.bf16.msra.mxu0 0
  %748 = vmatprep.subr.bf16.mxu0 0
  %749 = vmatpush2.bf16.msra.mxu0 0
  %750 = vmatprep.subr.bf16.mxu0 0
  %751 = vmatpush2.bf16.msra.mxu0 0
  %752 = vmatprep.subr.bf16.mxu0 0
  %753 = vmatpush2.bf16.msra.mxu0 0
  %754 = vmatprep.subr.bf16.mxu0 0
  %755 = vmatpush2.bf16.msra.mxu0 0
  %756 = vmatprep.subr.bf16.mxu0 0
  %757 = vmatpush2.bf16.msra.mxu0 0
  %758 = vmatprep.subr.bf16.mxu0 0
  %759 = vmatpush2.bf16.msra.mxu0 0
  %760 = vmatprep.mubr.bf16.mxu0 0
  %761 = vmatmul.mubr.bf16.gmra.mxu0 %v279
  %v762 = vpop.f32.mrf.mxu0
  %v763 = vadd.f32 0.0, %v762
  %v764 = vpop.f32.mrf.mxu0
  %v765 = vpop.f32.mrf.mxu0
  %v766 = vpop.f32.mrf.mxu0
  %767 = vdwg.mxu0
  %v769 = vsel %vm281, %v722, 0
  %771 = vmatprep.subr.bf16.mxu0 0
  %772 = vmatpush1.bf16.msra.mxu0 0
  %773 = vmatprep.subr.bf16.mxu0 0
  %774 = vmatpush1.bf16.msra.mxu0 0
  %775 = vmatprep.subr.bf16.mxu0 0
  %776 = vmatpush1.bf16.msra.mxu0 0
  %777 = vmatprep.subr.bf16.mxu0 0
  %778 = vmatpush1.bf16.msra.mxu0 0
  %779 = vmatprep.subr.bf16.mxu0 0
  %780 = vmatpush1.bf16.msra.mxu0 0
  %781 = vmatprep.subr.bf16.mxu0 0
  %782 = vmatpush1.bf16.msra.mxu0 0
  %783 = vmatprep.subr.bf16.mxu0 0
  %784 = vmatpush1.bf16.msra.mxu0 0
  %785 = vmatprep.subr.bf16.mxu0 0
  %786 = vmatpush1.bf16.msra.mxu0 %v769
  %787 = vmatprep.subr.bf16.mxu0 0
  %788 = vmatpush2.bf16.msra.mxu0 0
  %789 = vmatprep.subr.bf16.mxu0 0
  %790 = vmatpush2.bf16.msra.mxu0 0
  %791 = vmatprep.subr.bf16.mxu0 0
  %792 = vmatpush2.bf16.msra.mxu0 0
  %793 = vmatprep.subr.bf16.mxu0 0
  %794 = vmatpush2.bf16.msra.mxu0 0
  %795 = vmatprep.subr.bf16.mxu0 0
  %796 = vmatpush2.bf16.msra.mxu0 0
  %797 = vmatprep.subr.bf16.mxu0 0
  %798 = vmatpush2.bf16.msra.mxu0 0
  %799 = vmatprep.subr.bf16.mxu0 0
  %800 = vmatpush2.bf16.msra.mxu0 0
  %801 = vmatprep.subr.bf16.mxu0 0
  %802 = vmatpush2.bf16.msra.mxu0 0
  %803 = vmatprep.mubr.bf16.mxu0 0
  %804 = vmatmul.mubr.bf16.gmra.mxu0 %v326
  %v805 = vpop.f32.mrf.mxu0
  %v806 = vadd.f32 %v763, %v805
  %v807 = vpop.f32.mrf.mxu0
  %v808 = vpop.f32.mrf.mxu0
  %v809 = vpop.f32.mrf.mxu0
  %810 = vdwg.mxu0
  %s811 = scalar_lea.vmem %s5, 12
  %v812 = vld [vmem:[%s811] sm:$0xf]
  %v814 = vsel %vm281, %v812, 0
  %816 = vmatprep.subr.bf16.mxu0 0
  %817 = vmatpush1.bf16.msra.mxu0 0
  %818 = vmatprep.subr.bf16.mxu0 0
  %819 = vmatpush1.bf16.msra.mxu0 0
  %820 = vmatprep.subr.bf16.mxu0 0
  %821 = vmatpush1.bf16.msra.mxu0 0
  %822 = vmatprep.subr.bf16.mxu0 0
  %823 = vmatpush1.bf16.msra.mxu0 0
  %824 = vmatprep.subr.bf16.mxu0 0
  %825 = vmatpush1.bf16.msra.mxu0 0
  %826 = vmatprep.subr.bf16.mxu0 0
  %827 = vmatpush1.bf16.msra.mxu0 0
  %828 = vmatprep.subr.bf16.mxu0 0
  %829 = vmatpush1.bf16.msra.mxu0 0
  %830 = vmatprep.subr.bf16.mxu0 0
  %831 = vmatpush1.bf16.msra.mxu0 %v814
  %832 = vmatprep.subr.bf16.mxu0 0
  %833 = vmatpush2.bf16.msra.mxu0 0
  %834 = vmatprep.subr.bf16.mxu0 0
  %835 = vmatpush2.bf16.msra.mxu0 0
  %836 = vmatprep.subr.bf16.mxu0 0
  %837 = vmatpush2.bf16.msra.mxu0 0
  %838 = vmatprep.subr.bf16.mxu0 0
  %839 = vmatpush2.bf16.msra.mxu0 0
  %840 = vmatprep.subr.bf16.mxu0 0
  %841 = vmatpush2.bf16.msra.mxu0 0
  %842 = vmatprep.subr.bf16.mxu0 0
  %843 = vmatpush2.bf16.msra.mxu0 0
  %844 = vmatprep.subr.bf16.mxu0 0
  %845 = vmatpush2.bf16.msra.mxu0 0
  %846 = vmatprep.subr.bf16.mxu0 0
  %847 = vmatpush2.bf16.msra.mxu0 0
  %848 = vmatprep.mubr.bf16.mxu0 0
  %849 = vmatmul.mubr.bf16.gmra.mxu0 %v373
  %v850 = vpop.f32.mrf.mxu0
  %v851 = vadd.f32 0.0, %v850
  %v852 = vpop.f32.mrf.mxu0
  %v853 = vpop.f32.mrf.mxu0
  %v854 = vpop.f32.mrf.mxu0
  %855 = vdwg.mxu0
  %v856 = vadd.f32 %v806, %v851
  %s857 = scalar_lea.vmem %s7, 3
  %v858 = vld [vmem:[%s857] sm:$0x1]
  %v860 = vlaneseq
  %v861 = vshrl.u32 %v860, 7
  %v862 = vsub.s32 0, %v861
  %v863 = vrot.slane %v858, %v862
  %v865 = vadd.f32 %v856, %v863
  %866 = vst.msk [vmem:[#allocation5] sm:$0xff] %vm427, %v865
  %v867 = vld [vmem:[#allocation2] sm:$0x1]
  %v868 = vld [vmem:[%s6] sm:$0xf]
  %v869 = vld [vmem:[%s6 + $0x4] sm:$0xf]
  %v872 = vunpack.c.l.b16 %v868
  %v873 = vunpack.c.l.b16 %v869
  %v874 = vpack.c.b16 %v873, %v872
  %v877 = vsel %vm427, 0, 0
  %879 = vmatprep.subr.bf16.mxu0 0
  %880 = vmatpush1.bf16.msra.mxu0 0
  %881 = vmatprep.subr.bf16.mxu0 0
  %882 = vmatpush1.bf16.msra.mxu0 0
  %883 = vmatprep.subr.bf16.mxu0 0
  %884 = vmatpush1.bf16.msra.mxu0 0
  %885 = vmatprep.subr.bf16.mxu0 0
  %886 = vmatpush1.bf16.msra.mxu0 0
  %887 = vmatprep.subr.bf16.mxu0 0
  %888 = vmatpush1.bf16.msra.mxu0 0
  %889 = vmatprep.subr.bf16.mxu0 0
  %890 = vmatpush1.bf16.msra.mxu0 0
  %891 = vmatprep.subr.bf16.mxu0 0
  %892 = vmatpush1.bf16.msra.mxu0 0
  %893 = vmatprep.subr.bf16.mxu0 0
  %894 = vmatpush1.bf16.msra.mxu0 %v874
  %895 = vmatprep.subr.bf16.mxu0 0
  %896 = vmatpush2.bf16.msra.mxu0 0
  %897 = vmatprep.subr.bf16.mxu0 0
  %898 = vmatpush2.bf16.msra.mxu0 0
  %899 = vmatprep.subr.bf16.mxu0 0
  %900 = vmatpush2.bf16.msra.mxu0 0
  %901 = vmatprep.subr.bf16.mxu0 0
  %902 = vmatpush2.bf16.msra.mxu0 0
  %903 = vmatprep.subr.bf16.mxu0 0
  %904 = vmatpush2.bf16.msra.mxu0 0
  %905 = vmatprep.subr.bf16.mxu0 0
  %906 = vmatpush2.bf16.msra.mxu0 0
  %907 = vmatprep.subr.bf16.mxu0 0
  %908 = vmatpush2.bf16.msra.mxu0 0
  %909 = vmatprep.subr.bf16.mxu0 0
  %910 = vmatpush2.bf16.msra.mxu0 0
  %911 = vmatprep.mubr.bf16.mxu0 0
  %912 = vmatmul.mubr.bf16.gmra.mxu0 %v877
  %v913 = vpop.f32.mrf.mxu0
  %v914 = vadd.f32 0.0, %v913
  %v915 = vpop.f32.mrf.mxu0
  %v916 = vpop.f32.mrf.mxu0
  %v917 = vpop.f32.mrf.mxu0
  %918 = vdwg.mxu0
  %v919 = vadd.f32 %v867, %v914
  %v920 = vld [vmem:[#allocation3] sm:$0x1]
  %s921 = scalar_lea.vmem %s6, 8
  %v922 = vld [vmem:[%s921] sm:$0xf]
  %v923 = vld [vmem:[%s921 + $0x4] sm:$0xf]
  %v926 = vunpack.c.l.b16 %v922
  %v927 = vunpack.c.l.b16 %v923
  %v928 = vpack.c.b16 %v927, %v926
  %930 = vmatprep.subr.bf16.mxu0 0
  %931 = vmatpush1.bf16.msra.mxu0 0
  %932 = vmatprep.subr.bf16.mxu0 0
  %933 = vmatpush1.bf16.msra.mxu0 0
  %934 = vmatprep.subr.bf16.mxu0 0
  %935 = vmatpush1.bf16.msra.mxu0 0
  %936 = vmatprep.subr.bf16.mxu0 0
  %937 = vmatpush1.bf16.msra.mxu0 0
  %938 = vmatprep.subr.bf16.mxu0 0
  %939 = vmatpush1.bf16.msra.mxu0 0
  %940 = vmatprep.subr.bf16.mxu0 0
  %941 = vmatpush1.bf16.msra.mxu0 0
  %942 = vmatprep.subr.bf16.mxu0 0
  %943 = vmatpush1.bf16.msra.mxu0 0
  %944 = vmatprep.subr.bf16.mxu0 0
  %945 = vmatpush1.bf16.msra.mxu0 %v928
  %946 = vmatprep.subr.bf16.mxu0 0
  %947 = vmatpush2.bf16.msra.mxu0 0
  %948 = vmatprep.subr.bf16.mxu0 0
  %949 = vmatpush2.bf16.msra.mxu0 0
  %950 = vmatprep.subr.bf16.mxu0 0
  %951 = vmatpush2.bf16.msra.mxu0 0
  %952 = vmatprep.subr.bf16.mxu0 0
  %953 = vmatpush2.bf16.msra.mxu0 0
  %954 = vmatprep.subr.bf16.mxu0 0
  %955 = vmatpush2.bf16.msra.mxu0 0
  %956 = vmatprep.subr.bf16.mxu0 0
  %957 = vmatpush2.bf16.msra.mxu0 0
  %958 = vmatprep.subr.bf16.mxu0 0
  %959 = vmatpush2.bf16.msra.mxu0 0
  %960 = vmatprep.subr.bf16.mxu0 0
  %961 = vmatpush2.bf16.msra.mxu0 0
  %962 = vmatprep.mubr.bf16.mxu0 0
  %963 = vmatmul.mubr.bf16.gmra.mxu0 %v877
  %v964 = vpop.f32.mrf.mxu0
  %v965 = vadd.f32 0.0, %v964
  %v966 = vpop.f32.mrf.mxu0
  %v967 = vpop.f32.mrf.mxu0
  %v968 = vpop.f32.mrf.mxu0
  %969 = vdwg.mxu0
  %v970 = vadd.f32 %v920, %v965
  %v971 = vld [vmem:[#allocation4] sm:$0x1]
  %s972 = scalar_lea.vmem %s6, 16
  %v973 = vld [vmem:[%s972] sm:$0xf]
  %v974 = vld [vmem:[%s972 + $0x4] sm:$0xf]
  %v977 = vunpack.c.l.b16 %v973
  %v978 = vunpack.c.l.b16 %v974
  %v979 = vpack.c.b16 %v978, %v977
  %981 = vmatprep.subr.bf16.mxu0 0
  %982 = vmatpush1.bf16.msra.mxu0 0
  %983 = vmatprep.subr.bf16.mxu0 0
  %984 = vmatpush1.bf16.msra.mxu0 0
  %985 = vmatprep.subr.bf16.mxu0 0
  %986 = vmatpush1.bf16.msra.mxu0 0
  %987 = vmatprep.subr.bf16.mxu0 0
  %988 = vmatpush1.bf16.msra.mxu0 0
  %989 = vmatprep.subr.bf16.mxu0 0
  %990 = vmatpush1.bf16.msra.mxu0 0
  %991 = vmatprep.subr.bf16.mxu0 0
  %992 = vmatpush1.bf16.msra.mxu0 0
  %993 = vmatprep.subr.bf16.mxu0 0
  %994 = vmatpush1.bf16.msra.mxu0 0
  %995 = vmatprep.subr.bf16.mxu0 0
  %996 = vmatpush1.bf16.msra.mxu0 %v979
  %997 = vmatprep.subr.bf16.mxu0 0
  %998 = vmatpush2.bf16.msra.mxu0 0
  %999 = vmatprep.subr.bf16.mxu0 0
  %1000 = vmatpush2.bf16.msra.mxu0 0
  %1001 = vmatprep.subr.bf16.mxu0 0
  %1002 = vmatpush2.bf16.msra.mxu0 0
  %1003 = vmatprep.subr.bf16.mxu0 0
  %1004 = vmatpush2.bf16.msra.mxu0 0
  %1005 = vmatprep.subr.bf16.mxu0 0
  %1006 = vmatpush2.bf16.msra.mxu0 0
  %1007 = vmatprep.subr.bf16.mxu0 0
  %1008 = vmatpush2.bf16.msra.mxu0 0
  %1009 = vmatprep.subr.bf16.mxu0 0
  %1010 = vmatpush2.bf16.msra.mxu0 0
  %1011 = vmatprep.subr.bf16.mxu0 0
  %1012 = vmatpush2.bf16.msra.mxu0 0
  %1013 = vmatprep.mubr.bf16.mxu0 0
  %1014 = vmatmul.mubr.bf16.gmra.mxu0 %v877
  %v1015 = vpop.f32.mrf.mxu0
  %v1016 = vadd.f32 0.0, %v1015
  %v1017 = vpop.f32.mrf.mxu0
  %v1018 = vpop.f32.mrf.mxu0
  %v1019 = vpop.f32.mrf.mxu0
  %1020 = vdwg.mxu0
  %v1021 = vadd.f32 %v971, %v1016
  %v1022 = vld [vmem:[#allocation5] sm:$0x1]
  %s1023 = scalar_lea.vmem %s6, 24
  %v1024 = vld [vmem:[%s1023] sm:$0xf]
  %v1025 = vld [vmem:[%s1023 + $0x4] sm:$0xf]
  %v1028 = vunpack.c.l.b16 %v1024
  %v1029 = vunpack.c.l.b16 %v1025
  %v1030 = vpack.c.b16 %v1029, %v1028
  %1032 = vmatprep.subr.bf16.mxu0 0
  %1033 = vmatpush1.bf16.msra.mxu0 0
  %1034 = vmatprep.subr.bf16.mxu0 0
  %1035 = vmatpush1.bf16.msra.mxu0 0
  %1036 = vmatprep.subr.bf16.mxu0 0
  %1037 = vmatpush1.bf16.msra.mxu0 0
  %1038 = vmatprep.subr.bf16.mxu0 0
  %1039 = vmatpush1.bf16.msra.mxu0 0
  %1040 = vmatprep.subr.bf16.mxu0 0
  %1041 = vmatpush1.bf16.msra.mxu0 0
  %1042 = vmatprep.subr.bf16.mxu0 0
  %1043 = vmatpush1.bf16.msra.mxu0 0
  %1044 = vmatprep.subr.bf16.mxu0 0
  %1045 = vmatpush1.bf16.msra.mxu0 0
  %1046 = vmatprep.subr.bf16.mxu0 0
  %1047 = vmatpush1.bf16.msra.mxu0 %v1030
  %1048 = vmatprep.subr.bf16.mxu0 0
  %1049 = vmatpush2.bf16.msra.mxu0 0
  %1050 = vmatprep.subr.bf16.mxu0 0
  %1051 = vmatpush2.bf16.msra.mxu0 0
  %1052 = vmatprep.subr.bf16.mxu0 0
  %1053 = vmatpush2.bf16.msra.mxu0 0
  %1054 = vmatprep.subr.bf16.mxu0 0
  %1055 = vmatpush2.bf16.msra.mxu0 0
  %1056 = vmatprep.subr.bf16.mxu0 0
  %1057 = vmatpush2.bf16.msra.mxu0 0
  %1058 = vmatprep.subr.bf16.mxu0 0
  %1059 = vmatpush2.bf16.msra.mxu0 0
  %1060 = vmatprep.subr.bf16.mxu0 0
  %1061 = vmatpush2.bf16.msra.mxu0 0
  %1062 = vmatprep.subr.bf16.mxu0 0
  %1063 = vmatpush2.bf16.msra.mxu0 0
  %1064 = vmatprep.mubr.bf16.mxu0 0
  %1065 = vmatmul.mubr.bf16.gmra.mxu0 %v877
  %v1066 = vpop.f32.mrf.mxu0
  %v1067 = vadd.f32 0.0, %v1066
  %v1068 = vpop.f32.mrf.mxu0
  %v1069 = vpop.f32.mrf.mxu0
  %v1070 = vpop.f32.mrf.mxu0
  %1071 = vdwg.mxu0
  %v1072 = vadd.f32 %v1022, %v1067
  %v1073 = vxor.u32 %v919, 2147483648
  %v1074 = vmul.f32 %v1073, 1.442695
  %v1075 = vpow.pop %v1074
  %v1076 = vadd.f32 %v1075, 1.0
  %v1077 = vrcp.pop %v1076
  %v1078 = vmul.f32 1.0, %v1077
  %v1079 = vxor.u32 %v970, 2147483648
  %v1080 = vmul.f32 %v1079, 1.442695
  %v1081 = vpow.pop %v1080
  %v1082 = vadd.f32 %v1081, 1.0
  %v1083 = vrcp.pop %v1082
  %v1084 = vmul.f32 1.0, %v1083
  %v1085 = vtanh.pop %v1021
  %v1086 = vxor.u32 %v1072, 2147483648
  %v1087 = vmul.f32 %v1086, 1.442695
  %v1088 = vpow.pop %v1087
  %v1089 = vadd.f32 %v1088, 1.0
  %v1090 = vrcp.pop %v1089
  %v1091 = vmul.f32 1.0, %v1090
  %v1092 = vmul.f32 %v1084, 0.0
  %v1093 = vmul.f32 %v1078, %v1085
  %v1094 = vadd.f32 %v1092, %v1093
  %v1095 = vtanh.pop %v1094
  %v1096 = vmul.f32 %v1091, %v1095
  %vm1097 = vcmask 122880
  %1098 = vst.msk [vmem:[#allocation6] sm:$0x1] %vm1097, %v1096
  %v1099 = vpack.c.bf16 %v1096, %v1096
  %v1100 = vld [vmem:[#allocation2 + $0x1] sm:$0x1]
  %v1101 = vld [vmem:[%s6] sm:$0xf]
  %v1102 = vld [vmem:[%s6 + $0x4] sm:$0xf]
  %v1105 = vunpack.c.l.b16 %v1101
  %v1106 = vunpack.c.l.b16 %v1102
  %v1107 = vpack.c.b16 %v1106, %v1105
  %v1110 = vsel %vm427, %v1099, 0
  %1112 = vmatprep.subr.bf16.mxu0 0
  %1113 = vmatpush1.bf16.msra.mxu0 0
  %1114 = vmatprep.subr.bf16.mxu0 0
  %1115 = vmatpush1.bf16.msra.mxu0 0
  %1116 = vmatprep.subr.bf16.mxu0 0
  %1117 = vmatpush1.bf16.msra.mxu0 0
  %1118 = vmatprep.subr.bf16.mxu0 0
  %1119 = vmatpush1.bf16.msra.mxu0 0
  %1120 = vmatprep.subr.bf16.mxu0 0
  %1121 = vmatpush1.bf16.msra.mxu0 0
  %1122 = vmatprep.subr.bf16.mxu0 0
  %1123 = vmatpush1.bf16.msra.mxu0 0
  %1124 = vmatprep.subr.bf16.mxu0 0
  %1125 = vmatpush1.bf16.msra.mxu0 0
  %1126 = vmatprep.subr.bf16.mxu0 0
  %1127 = vmatpush1.bf16.msra.mxu0 %v1107
  %1128 = vmatprep.subr.bf16.mxu0 0
  %1129 = vmatpush2.bf16.msra.mxu0 0
  %1130 = vmatprep.subr.bf16.mxu0 0
  %1131 = vmatpush2.bf16.msra.mxu0 0
  %1132 = vmatprep.subr.bf16.mxu0 0
  %1133 = vmatpush2.bf16.msra.mxu0 0
  %1134 = vmatprep.subr.bf16.mxu0 0
  %1135 = vmatpush2.bf16.msra.mxu0 0
  %1136 = vmatprep.subr.bf16.mxu0 0
  %1137 = vmatpush2.bf16.msra.mxu0 0
  %1138 = vmatprep.subr.bf16.mxu0 0
  %1139 = vmatpush2.bf16.msra.mxu0 0
  %1140 = vmatprep.subr.bf16.mxu0 0
  %1141 = vmatpush2.bf16.msra.mxu0 0
  %1142 = vmatprep.subr.bf16.mxu0 0
  %1143 = vmatpush2.bf16.msra.mxu0 0
  %1144 = vmatprep.mubr.bf16.mxu0 0
  %1145 = vmatmul.mubr.bf16.gmra.mxu0 %v1110
  %v1146 = vpop.f32.mrf.mxu0
  %v1147 = vadd.f32 0.0, %v1146
  %v1148 = vpop.f32.mrf.mxu0
  %v1149 = vpop.f32.mrf.mxu0
  %v1150 = vpop.f32.mrf.mxu0
  %1151 = vdwg.mxu0
  %v1152 = vadd.f32 %v1100, %v1147
  %v1153 = vld [vmem:[#allocation3 + $0x1] sm:$0x1]
  %v1154 = vld [vmem:[%s921] sm:$0xf]
  %v1155 = vld [vmem:[%s921 + $0x4] sm:$0xf]
  %v1158 = vunpack.c.l.b16 %v1154
  %v1159 = vunpack.c.l.b16 %v1155
  %v1160 = vpack.c.b16 %v1159, %v1158
  %1162 = vmatprep.subr.bf16.mxu0 0
  %1163 = vmatpush1.bf16.msra.mxu0 0
  %1164 = vmatprep.subr.bf16.mxu0 0
  %1165 = vmatpush1.bf16.msra.mxu0 0
  %1166 = vmatprep.subr.bf16.mxu0 0
  %1167 = vmatpush1.bf16.msra.mxu0 0
  %1168 = vmatprep.subr.bf16.mxu0 0
  %1169 = vmatpush1.bf16.msra.mxu0 0
  %1170 = vmatprep.subr.bf16.mxu0 0
  %1171 = vmatpush1.bf16.msra.mxu0 0
  %1172 = vmatprep.subr.bf16.mxu0 0
  %1173 = vmatpush1.bf16.msra.mxu0 0
  %1174 = vmatprep.subr.bf16.mxu0 0
  %1175 = vmatpush1.bf16.msra.mxu0 0
  %1176 = vmatprep.subr.bf16.mxu0 0
  %1177 = vmatpush1.bf16.msra.mxu0 %v1160
  %1178 = vmatprep.subr.bf16.mxu0 0
  %1179 = vmatpush2.bf16.msra.mxu0 0
  %1180 = vmatprep.subr.bf16.mxu0 0
  %1181 = vmatpush2.bf16.msra.mxu0 0
  %1182 = vmatprep.subr.bf16.mxu0 0
  %1183 = vmatpush2.bf16.msra.mxu0 0
  %1184 = vmatprep.subr.bf16.mxu0 0
  %1185 = vmatpush2.bf16.msra.mxu0 0
  %1186 = vmatprep.subr.bf16.mxu0 0
  %1187 = vmatpush2.bf16.msra.mxu0 0
  %1188 = vmatprep.subr.bf16.mxu0 0
  %1189 = vmatpush2.bf16.msra.mxu0 0
  %1190 = vmatprep.subr.bf16.mxu0 0
  %1191 = vmatpush2.bf16.msra.mxu0 0
  %1192 = vmatprep.subr.bf16.mxu0 0
  %1193 = vmatpush2.bf16.msra.mxu0 0
  %1194 = vmatprep.mubr.bf16.mxu0 0
  %1195 = vmatmul.mubr.bf16.gmra.mxu0 %v1110
  %v1196 = vpop.f32.mrf.mxu0
  %v1197 = vadd.f32 0.0, %v1196
  %v1198 = vpop.f32.mrf.mxu0
  %v1199 = vpop.f32.mrf.mxu0
  %v1200 = vpop.f32.mrf.mxu0
  %1201 = vdwg.mxu0
  %v1202 = vadd.f32 %v1153, %v1197
  %v1203 = vld [vmem:[#allocation4 + $0x1] sm:$0x1]
  %v1204 = vld [vmem:[%s972] sm:$0xf]
  %v1205 = vld [vmem:[%s972 + $0x4] sm:$0xf]
  %v1208 = vunpack.c.l.b16 %v1204
  %v1209 = vunpack.c.l.b16 %v1205
  %v1210 = vpack.c.b16 %v1209, %v1208
  %1212 = vmatprep.subr.bf16.mxu0 0
  %1213 = vmatpush1.bf16.msra.mxu0 0
  %1214 = vmatprep.subr.bf16.mxu0 0
  %1215 = vmatpush1.bf16.msra.mxu0 0
  %1216 = vmatprep.subr.bf16.mxu0 0
  %1217 = vmatpush1.bf16.msra.mxu0 0
  %1218 = vmatprep.subr.bf16.mxu0 0
  %1219 = vmatpush1.bf16.msra.mxu0 0
  %1220 = vmatprep.subr.bf16.mxu0 0
  %1221 = vmatpush1.bf16.msra.mxu0 0
  %1222 = vmatprep.subr.bf16.mxu0 0
  %1223 = vmatpush1.bf16.msra.mxu0 0
  %1224 = vmatprep.subr.bf16.mxu0 0
  %1225 = vmatpush1.bf16.msra.mxu0 0
  %1226 = vmatprep.subr.bf16.mxu0 0
  %1227 = vmatpush1.bf16.msra.mxu0 %v1210
  %1228 = vmatprep.subr.bf16.mxu0 0
  %1229 = vmatpush2.bf16.msra.mxu0 0
  %1230 = vmatprep.subr.bf16.mxu0 0
  %1231 = vmatpush2.bf16.msra.mxu0 0
  %1232 = vmatprep.subr.bf16.mxu0 0
  %1233 = vmatpush2.bf16.msra.mxu0 0
  %1234 = vmatprep.subr.bf16.mxu0 0
  %1235 = vmatpush2.bf16.msra.mxu0 0
  %1236 = vmatprep.subr.bf16.mxu0 0
  %1237 = vmatpush2.bf16.msra.mxu0 0
  %1238 = vmatprep.subr.bf16.mxu0 0
  %1239 = vmatpush2.bf16.msra.mxu0 0
  %1240 = vmatprep.subr.bf16.mxu0 0
  %1241 = vmatpush2.bf16.msra.mxu0 0
  %1242 = vmatprep.subr.bf16.mxu0 0
  %1243 = vmatpush2.bf16.msra.mxu0 0
  %1244 = vmatprep.mubr.bf16.mxu0 0
  %1245 = vmatmul.mubr.bf16.gmra.mxu0 %v1110
  %v1246 = vpop.f32.mrf.mxu0
  %v1247 = vadd.f32 0.0, %v1246
  %v1248 = vpop.f32.mrf.mxu0
  %v1249 = vpop.f32.mrf.mxu0
  %v1250 = vpop.f32.mrf.mxu0
  %1251 = vdwg.mxu0
  %v1252 = vadd.f32 %v1203, %v1247
  %v1253 = vld [vmem:[#allocation5 + $0x1] sm:$0x1]
  %v1254 = vld [vmem:[%s1023] sm:$0xf]
  %v1255 = vld [vmem:[%s1023 + $0x4] sm:$0xf]
  %v1258 = vunpack.c.l.b16 %v1254
  %v1259 = vunpack.c.l.b16 %v1255
  %v1260 = vpack.c.b16 %v1259, %v1258
  %1262 = vmatprep.subr.bf16.mxu0 0
  %1263 = vmatpush1.bf16.msra.mxu0 0
  %1264 = vmatprep.subr.bf16.mxu0 0
  %1265 = vmatpush1.bf16.msra.mxu0 0
  %1266 = vmatprep.subr.bf16.mxu0 0
  %1267 = vmatpush1.bf16.msra.mxu0 0
  %1268 = vmatprep.subr.bf16.mxu0 0
  %1269 = vmatpush1.bf16.msra.mxu0 0
  %1270 = vmatprep.subr.bf16.mxu0 0
  %1271 = vmatpush1.bf16.msra.mxu0 0
  %1272 = vmatprep.subr.bf16.mxu0 0
  %1273 = vmatpush1.bf16.msra.mxu0 0
  %1274 = vmatprep.subr.bf16.mxu0 0
  %1275 = vmatpush1.bf16.msra.mxu0 0
  %1276 = vmatprep.subr.bf16.mxu0 0
  %1277 = vmatpush1.bf16.msra.mxu0 %v1260
  %1278 = vmatprep.subr.bf16.mxu0 0
  %1279 = vmatpush2.bf16.msra.mxu0 0
  %1280 = vmatprep.subr.bf16.mxu0 0
  %1281 = vmatpush2.bf16.msra.mxu0 0
  %1282 = vmatprep.subr.bf16.mxu0 0
  %1283 = vmatpush2.bf16.msra.mxu0 0
  %1284 = vmatprep.subr.bf16.mxu0 0
  %1285 = vmatpush2.bf16.msra.mxu0 0
  %1286 = vmatprep.subr.bf16.mxu0 0
  %1287 = vmatpush2.bf16.msra.mxu0 0
  %1288 = vmatprep.subr.bf16.mxu0 0
  %1289 = vmatpush2.bf16.msra.mxu0 0
  %1290 = vmatprep.subr.bf16.mxu0 0
  %1291 = vmatpush2.bf16.msra.mxu0 0
  %1292 = vmatprep.subr.bf16.mxu0 0
  %1293 = vmatpush2.bf16.msra.mxu0 0
  %1294 = vmatprep.mubr.bf16.mxu0 0
  %1295 = vmatmul.mubr.bf16.gmra.mxu0 %v1110
  %v1296 = vpop.f32.mrf.mxu0
  %v1297 = vadd.f32 0.0, %v1296
  %v1298 = vpop.f32.mrf.mxu0
  %v1299 = vpop.f32.mrf.mxu0
  %v1300 = vpop.f32.mrf.mxu0
  %1301 = vdwg.mxu0
  %v1302 = vadd.f32 %v1253, %v1297
  %v1303 = vxor.u32 %v1152, 2147483648
  %v1304 = vmul.f32 %v1303, 1.442695
  %v1305 = vpow.pop %v1304
  %v1306 = vadd.f32 %v1305, 1.0
  %v1307 = vrcp.pop %v1306
  %v1308 = vmul.f32 1.0, %v1307
  %v1309 = vxor.u32 %v1202, 2147483648
  %v1310 = vmul.f32 %v1309, 1.442695
  %v1311 = vpow.pop %v1310
  %v1312 = vadd.f32 %v1311, 1.0
  %v1313 = vrcp.pop %v1312
  %v1314 = vmul.f32 1.0, %v1313
  %v1315 = vtanh.pop %v1252
  %v1316 = vxor.u32 %v1302, 2147483648
  %v1317 = vmul.f32 %v1316, 1.442695
  %v1318 = vpow.pop %v1317
  %v1319 = vadd.f32 %v1318, 1.0
  %v1320 = vrcp.pop %v1319
  %v1321 = vmul.f32 1.0, %v1320
  %v1322 = vmul.f32 %v1314, %v1094
  %v1323 = vmul.f32 %v1308, %v1315
  %v1324 = vadd.f32 %v1322, %v1323
  %v1325 = vtanh.pop %v1324
  %v1326 = vmul.f32 %v1321, %v1325
  %1327 = vst.msk [vmem:[#allocation6 + $0x1] sm:$0x1] %vm1097, %v1326
  %v1328 = vpack.c.bf16 %v1326, %v1326
  %v1329 = vld [vmem:[#allocation2 + $0x2] sm:$0x1]
  %v1330 = vld [vmem:[%s6] sm:$0xf]
  %v1331 = vld [vmem:[%s6 + $0x4] sm:$0xf]
  %v1334 = vunpack.c.l.b16 %v1330
  %v1335 = vunpack.c.l.b16 %v1331
  %v1336 = vpack.c.b16 %v1335, %v1334
  %v1339 = vsel %vm427, %v1328, 0
  %1341 = vmatprep.subr.bf16.mxu0 0
  %1342 = vmatpush1.bf16.msra.mxu0 0
  %1343 = vmatprep.subr.bf16.mxu0 0
  %1344 = vmatpush1.bf16.msra.mxu0 0
  %1345 = vmatprep.subr.bf16.mxu0 0
  %1346 = vmatpush1.bf16.msra.mxu0 0
  %1347 = vmatprep.subr.bf16.mxu0 0
  %1348 = vmatpush1.bf16.msra.mxu0 0
  %1349 = vmatprep.subr.bf16.mxu0 0
  %1350 = vmatpush1.bf16.msra.mxu0 0
  %1351 = vmatprep.subr.bf16.mxu0 0
  %1352 = vmatpush1.bf16.msra.mxu0 0
  %1353 = vmatprep.subr.bf16.mxu0 0
  %1354 = vmatpush1.bf16.msra.mxu0 0
  %1355 = vmatprep.subr.bf16.mxu0 0
  %1356 = vmatpush1.bf16.msra.mxu0 %v1336
  %1357 = vmatprep.subr.bf16.mxu0 0
  %1358 = vmatpush2.bf16.msra.mxu0 0
  %1359 = vmatprep.subr.bf16.mxu0 0
  %1360 = vmatpush2.bf16.msra.mxu0 0
  %1361 = vmatprep.subr.bf16.mxu0 0
  %1362 = vmatpush2.bf16.msra.mxu0 0
  %1363 = vmatprep.subr.bf16.mxu0 0
  %1364 = vmatpush2.bf16.msra.mxu0 0
  %1365 = vmatprep.subr.bf16.mxu0 0
  %1366 = vmatpush2.bf16.msra.mxu0 0
  %1367 = vmatprep.subr.bf16.mxu0 0
  %1368 = vmatpush2.bf16.msra.mxu0 0
  %1369 = vmatprep.subr.bf16.mxu0 0
  %1370 = vmatpush2.bf16.msra.mxu0 0
  %1371 = vmatprep.subr.bf16.mxu0 0
  %1372 = vmatpush2.bf16.msra.mxu0 0
  %1373 = vmatprep.mubr.bf16.mxu0 0
  %1374 = vmatmul.mubr.bf16.gmra.mxu0 %v1339
  %v1375 = vpop.f32.mrf.mxu0
  %v1376 = vadd.f32 0.0, %v1375
  %v1377 = vpop.f32.mrf.mxu0
  %v1378 = vpop.f32.mrf.mxu0
  %v1379 = vpop.f32.mrf.mxu0
  %1380 = vdwg.mxu0
  %v1381 = vadd.f32 %v1329, %v1376
  %v1382 = vld [vmem:[#allocation3 + $0x2] sm:$0x1]
  %v1383 = vld [vmem:[%s921] sm:$0xf]
  %v1384 = vld [vmem:[%s921 + $0x4] sm:$0xf]
  %v1387 = vunpack.c.l.b16 %v1383
  %v1388 = vunpack.c.l.b16 %v1384
  %v1389 = vpack.c.b16 %v1388, %v1387
  %1391 = vmatprep.subr.bf16.mxu0 0
  %1392 = vmatpush1.bf16.msra.mxu0 0
  %1393 = vmatprep.subr.bf16.mxu0 0
  %1394 = vmatpush1.bf16.msra.mxu0 0
  %1395 = vmatprep.subr.bf16.mxu0 0
  %1396 = vmatpush1.bf16.msra.mxu0 0
  %1397 = vmatprep.subr.bf16.mxu0 0
  %1398 = vmatpush1.bf16.msra.mxu0 0
  %1399 = vmatprep.subr.bf16.mxu0 0
  %1400 = vmatpush1.bf16.msra.mxu0 0
  %1401 = vmatprep.subr.bf16.mxu0 0
  %1402 = vmatpush1.bf16.msra.mxu0 0
  %1403 = vmatprep.subr.bf16.mxu0 0
  %1404 = vmatpush1.bf16.msra.mxu0 0
  %1405 = vmatprep.subr.bf16.mxu0 0
  %1406 = vmatpush1.bf16.msra.mxu0 %v1389
  %1407 = vmatprep.subr.bf16.mxu0 0
  %1408 = vmatpush2.bf16.msra.mxu0 0
  %1409 = vmatprep.subr.bf16.mxu0 0
  %1410 = vmatpush2.bf16.msra.mxu0 0
  %1411 = vmatprep.subr.bf16.mxu0 0
  %1412 = vmatpush2.bf16.msra.mxu0 0
  %1413 = vmatprep.subr.bf16.mxu0 0
  %1414 = vmatpush2.bf16.msra.mxu0 0
  %1415 = vmatprep.subr.bf16.mxu0 0
  %1416 = vmatpush2.bf16.msra.mxu0 0
  %1417 = vmatprep.subr.bf16.mxu0 0
  %1418 = vmatpush2.bf16.msra.mxu0 0
  %1419 = vmatprep.subr.bf16.mxu0 0
  %1420 = vmatpush2.bf16.msra.mxu0 0
  %1421 = vmatprep.subr.bf16.mxu0 0
  %1422 = vmatpush2.bf16.msra.mxu0 0
  %1423 = vmatprep.mubr.bf16.mxu0 0
  %1424 = vmatmul.mubr.bf16.gmra.mxu0 %v1339
  %v1425 = vpop.f32.mrf.mxu0
  %v1426 = vadd.f32 0.0, %v1425
  %v1427 = vpop.f32.mrf.mxu0
  %v1428 = vpop.f32.mrf.mxu0
  %v1429 = vpop.f32.mrf.mxu0
  %1430 = vdwg.mxu0
  %v1431 = vadd.f32 %v1382, %v1426
  %v1432 = vld [vmem:[#allocation4 + $0x2] sm:$0x1]
  %v1433 = vld [vmem:[%s972] sm:$0xf]
  %v1434 = vld [vmem:[%s972 + $0x4] sm:$0xf]
  %v1437 = vunpack.c.l.b16 %v1433
  %v1438 = vunpack.c.l.b16 %v1434
  %v1439 = vpack.c.b16 %v1438, %v1437
  %1441 = vmatprep.subr.bf16.mxu0 0
  %1442 = vmatpush1.bf16.msra.mxu0 0
  %1443 = vmatprep.subr.bf16.mxu0 0
  %1444 = vmatpush1.bf16.msra.mxu0 0
  %1445 = vmatprep.subr.bf16.mxu0 0
  %1446 = vmatpush1.bf16.msra.mxu0 0
  %1447 = vmatprep.subr.bf16.mxu0 0
  %1448 = vmatpush1.bf16.msra.mxu0 0
  %1449 = vmatprep.subr.bf16.mxu0 0
  %1450 = vmatpush1.bf16.msra.mxu0 0
  %1451 = vmatprep.subr.bf16.mxu0 0
  %1452 = vmatpush1.bf16.msra.mxu0 0
  %1453 = vmatprep.subr.bf16.mxu0 0
  %1454 = vmatpush1.bf16.msra.mxu0 0
  %1455 = vmatprep.subr.bf16.mxu0 0
  %1456 = vmatpush1.bf16.msra.mxu0 %v1439
  %1457 = vmatprep.subr.bf16.mxu0 0
  %1458 = vmatpush2.bf16.msra.mxu0 0
  %1459 = vmatprep.subr.bf16.mxu0 0
  %1460 = vmatpush2.bf16.msra.mxu0 0
  %1461 = vmatprep.subr.bf16.mxu0 0
  %1462 = vmatpush2.bf16.msra.mxu0 0
  %1463 = vmatprep.subr.bf16.mxu0 0
  %1464 = vmatpush2.bf16.msra.mxu0 0
  %1465 = vmatprep.subr.bf16.mxu0 0
  %1466 = vmatpush2.bf16.msra.mxu0 0
  %1467 = vmatprep.subr.bf16.mxu0 0
  %1468 = vmatpush2.bf16.msra.mxu0 0
  %1469 = vmatprep.subr.bf16.mxu0 0
  %1470 = vmatpush2.bf16.msra.mxu0 0
  %1471 = vmatprep.subr.bf16.mxu0 0
  %1472 = vmatpush2.bf16.msra.mxu0 0
  %1473 = vmatprep.mubr.bf16.mxu0 0
  %1474 = vmatmul.mubr.bf16.gmra.mxu0 %v1339
  %v1475 = vpop.f32.mrf.mxu0
  %v1476 = vadd.f32 0.0, %v1475
  %v1477 = vpop.f32.mrf.mxu0
  %v1478 = vpop.f32.mrf.mxu0
  %v1479 = vpop.f32.mrf.mxu0
  %1480 = vdwg.mxu0
  %v1481 = vadd.f32 %v1432, %v1476
  %v1482 = vld [vmem:[#allocation5 + $0x2] sm:$0x1]
  %v1483 = vld [vmem:[%s1023] sm:$0xf]
  %v1484 = vld [vmem:[%s1023 + $0x4] sm:$0xf]
  %v1487 = vunpack.c.l.b16 %v1483
  %v1488 = vunpack.c.l.b16 %v1484
  %v1489 = vpack.c.b16 %v1488, %v1487
  %1491 = vmatprep.subr.bf16.mxu0 0
  %1492 = vmatpush1.bf16.msra.mxu0 0
  %1493 = vmatprep.subr.bf16.mxu0 0
  %1494 = vmatpush1.bf16.msra.mxu0 0
  %1495 = vmatprep.subr.bf16.mxu0 0
  %1496 = vmatpush1.bf16.msra.mxu0 0
  %1497 = vmatprep.subr.bf16.mxu0 0
  %1498 = vmatpush1.bf16.msra.mxu0 0
  %1499 = vmatprep.subr.bf16.mxu0 0
  %1500 = vmatpush1.bf16.msra.mxu0 0
  %1501 = vmatprep.subr.bf16.mxu0 0
  %1502 = vmatpush1.bf16.msra.mxu0 0
  %1503 = vmatprep.subr.bf16.mxu0 0
  %1504 = vmatpush1.bf16.msra.mxu0 0
  %1505 = vmatprep.subr.bf16.mxu0 0
  %1506 = vmatpush1.bf16.msra.mxu0 %v1489
  %1507 = vmatprep.subr.bf16.mxu0 0
  %1508 = vmatpush2.bf16.msra.mxu0 0
  %1509 = vmatprep.subr.bf16.mxu0 0
  %1510 = vmatpush2.bf16.msra.mxu0 0
  %1511 = vmatprep.subr.bf16.mxu0 0
  %1512 = vmatpush2.bf16.msra.mxu0 0
  %1513 = vmatprep.subr.bf16.mxu0 0
  %1514 = vmatpush2.bf16.msra.mxu0 0
  %1515 = vmatprep.subr.bf16.mxu0 0
  %1516 = vmatpush2.bf16.msra.mxu0 0
  %1517 = vmatprep.subr.bf16.mxu0 0
  %1518 = vmatpush2.bf16.msra.mxu0 0
  %1519 = vmatprep.subr.bf16.mxu0 0
  %1520 = vmatpush2.bf16.msra.mxu0 0
  %1521 = vmatprep.subr.bf16.mxu0 0
  %1522 = vmatpush2.bf16.msra.mxu0 0
  %1523 = vmatprep.mubr.bf16.mxu0 0
  %1524 = vmatmul.mubr.bf16.gmra.mxu0 %v1339
  %v1525 = vpop.f32.mrf.mxu0
  %v1526 = vadd.f32 0.0, %v1525
  %v1527 = vpop.f32.mrf.mxu0
  %v1528 = vpop.f32.mrf.mxu0
  %v1529 = vpop.f32.mrf.mxu0
  %1530 = vdwg.mxu0
  %v1531 = vadd.f32 %v1482, %v1526
  %v1532 = vxor.u32 %v1381, 2147483648
  %v1533 = vmul.f32 %v1532, 1.442695
  %v1534 = vpow.pop %v1533
  %v1535 = vadd.f32 %v1534, 1.0
  %v1536 = vrcp.pop %v1535
  %v1537 = vmul.f32 1.0, %v1536
  %v1538 = vxor.u32 %v1431, 2147483648
  %v1539 = vmul.f32 %v1538, 1.442695
  %v1540 = vpow.pop %v1539
  %v1541 = vadd.f32 %v1540, 1.0
  %v1542 = vrcp.pop %v1541
  %v1543 = vmul.f32 1.0, %v1542
  %v1544 = vtanh.pop %v1481
  %v1545 = vxor.u32 %v1531, 2147483648
  %v1546 = vmul.f32 %v1545, 1.442695
  %v1547 = vpow.pop %v1546
  %v1548 = vadd.f32 %v1547, 1.0
  %v1549 = vrcp.pop %v1548
  %v1550 = vmul.f32 1.0, %v1549
  %v1551 = vmul.f32 %v1543, %v1324
  %v1552 = vmul.f32 %v1537, %v1544
  %v1553 = vadd.f32 %v1551, %v1552
  %v1554 = vtanh.pop %v1553
  %v1555 = vmul.f32 %v1550, %v1554
  %1556 = vst.msk [vmem:[#allocation6 + $0x2] sm:$0x1] %vm1097, %v1555
  %v1557 = vpack.c.bf16 %v1555, %v1555
  %v1558 = vld [vmem:[#allocation2 + $0x3] sm:$0x1]
  %v1559 = vld [vmem:[%s6] sm:$0xf]
  %v1560 = vld [vmem:[%s6 + $0x4] sm:$0xf]
  %v1563 = vunpack.c.l.b16 %v1559
  %v1564 = vunpack.c.l.b16 %v1560
  %v1565 = vpack.c.b16 %v1564, %v1563
  %v1568 = vsel %vm427, %v1557, 0
  %1570 = vmatprep.subr.bf16.mxu0 0
  %1571 = vmatpush1.bf16.msra.mxu0 0
  %1572 = vmatprep.subr.bf16.mxu0 0
  %1573 = vmatpush1.bf16.msra.mxu0 0
  %1574 = vmatprep.subr.bf16.mxu0 0
  %1575 = vmatpush1.bf16.msra.mxu0 0
  %1576 = vmatprep.subr.bf16.mxu0 0
  %1577 = vmatpush1.bf16.msra.mxu0 0
  %1578 = vmatprep.subr.bf16.mxu0 0
  %1579 = vmatpush1.bf16.msra.mxu0 0
  %1580 = vmatprep.subr.bf16.mxu0 0
  %1581 = vmatpush1.bf16.msra.mxu0 0
  %1582 = vmatprep.subr.bf16.mxu0 0
  %1583 = vmatpush1.bf16.msra.mxu0 0
  %1584 = vmatprep.subr.bf16.mxu0 0
  %1585 = vmatpush1.bf16.msra.mxu0 %v1565
  %1586 = vmatprep.subr.bf16.mxu0 0
  %1587 = vmatpush2.bf16.msra.mxu0 0
  %1588 = vmatprep.subr.bf16.mxu0 0
  %1589 = vmatpush2.bf16.msra.mxu0 0
  %1590 = vmatprep.subr.bf16.mxu0 0
  %1591 = vmatpush2.bf16.msra.mxu0 0
  %1592 = vmatprep.subr.bf16.mxu0 0
  %1593 = vmatpush2.bf16.msra.mxu0 0
  %1594 = vmatprep.subr.bf16.mxu0 0
  %1595 = vmatpush2.bf16.msra.mxu0 0
  %1596 = vmatprep.subr.bf16.mxu0 0
  %1597 = vmatpush2.bf16.msra.mxu0 0
  %1598 = vmatprep.subr.bf16.mxu0 0
  %1599 = vmatpush2.bf16.msra.mxu0 0
  %1600 = vmatprep.subr.bf16.mxu0 0
  %1601 = vmatpush2.bf16.msra.mxu0 0
  %1602 = vmatprep.mubr.bf16.mxu0 0
  %1603 = vmatmul.mubr.bf16.gmra.mxu0 %v1568
  %v1604 = vpop.f32.mrf.mxu0
  %v1605 = vadd.f32 0.0, %v1604
  %v1606 = vpop.f32.mrf.mxu0
  %v1607 = vpop.f32.mrf.mxu0
  %v1608 = vpop.f32.mrf.mxu0
  %1609 = vdwg.mxu0
  %v1610 = vadd.f32 %v1558, %v1605
  %v1611 = vld [vmem:[#allocation3 + $0x3] sm:$0x1]
  %v1612 = vld [vmem:[%s921] sm:$0xf]
  %v1613 = vld [vmem:[%s921 + $0x4] sm:$0xf]
  %v1616 = vunpack.c.l.b16 %v1612
  %v1617 = vunpack.c.l.b16 %v1613
  %v1618 = vpack.c.b16 %v1617, %v1616
  %1620 = vmatprep.subr.bf16.mxu0 0
  %1621 = vmatpush1.bf16.msra.mxu0 0
  %1622 = vmatprep.subr.bf16.mxu0 0
  %1623 = vmatpush1.bf16.msra.mxu0 0
  %1624 = vmatprep.subr.bf16.mxu0 0
  %1625 = vmatpush1.bf16.msra.mxu0 0
  %1626 = vmatprep.subr.bf16.mxu0 0
  %1627 = vmatpush1.bf16.msra.mxu0 0
  %1628 = vmatprep.subr.bf16.mxu0 0
  %1629 = vmatpush1.bf16.msra.mxu0 0
  %1630 = vmatprep.subr.bf16.mxu0 0
  %1631 = vmatpush1.bf16.msra.mxu0 0
  %1632 = vmatprep.subr.bf16.mxu0 0
  %1633 = vmatpush1.bf16.msra.mxu0 0
  %1634 = vmatprep.subr.bf16.mxu0 0
  %1635 = vmatpush1.bf16.msra.mxu0 %v1618
  %1636 = vmatprep.subr.bf16.mxu0 0
  %1637 = vmatpush2.bf16.msra.mxu0 0
  %1638 = vmatprep.subr.bf16.mxu0 0
  %1639 = vmatpush2.bf16.msra.mxu0 0
  %1640 = vmatprep.subr.bf16.mxu0 0
  %1641 = vmatpush2.bf16.msra.mxu0 0
  %1642 = vmatprep.subr.bf16.mxu0 0
  %1643 = vmatpush2.bf16.msra.mxu0 0
  %1644 = vmatprep.subr.bf16.mxu0 0
  %1645 = vmatpush2.bf16.msra.mxu0 0
  %1646 = vmatprep.subr.bf16.mxu0 0
  %1647 = vmatpush2.bf16.msra.mxu0 0
  %1648 = vmatprep.subr.bf16.mxu0 0
  %1649 = vmatpush2.bf16.msra.mxu0 0
  %1650 = vmatprep.subr.bf16.mxu0 0
  %1651 = vmatpush2.bf16.msra.mxu0 0
  %1652 = vmatprep.mubr.bf16.mxu0 0
  %1653 = vmatmul.mubr.bf16.gmra.mxu0 %v1568
  %v1654 = vpop.f32.mrf.mxu0
  %v1655 = vadd.f32 0.0, %v1654
  %v1656 = vpop.f32.mrf.mxu0
  %v1657 = vpop.f32.mrf.mxu0
  %v1658 = vpop.f32.mrf.mxu0
  %1659 = vdwg.mxu0
  %v1660 = vadd.f32 %v1611, %v1655
  %v1661 = vld [vmem:[#allocation4 + $0x3] sm:$0x1]
  %v1662 = vld [vmem:[%s972] sm:$0xf]
  %v1663 = vld [vmem:[%s972 + $0x4] sm:$0xf]
  %v1666 = vunpack.c.l.b16 %v1662
  %v1667 = vunpack.c.l.b16 %v1663
  %v1668 = vpack.c.b16 %v1667, %v1666
  %1670 = vmatprep.subr.bf16.mxu0 0
  %1671 = vmatpush1.bf16.msra.mxu0 0
  %1672 = vmatprep.subr.bf16.mxu0 0
  %1673 = vmatpush1.bf16.msra.mxu0 0
  %1674 = vmatprep.subr.bf16.mxu0 0
  %1675 = vmatpush1.bf16.msra.mxu0 0
  %1676 = vmatprep.subr.bf16.mxu0 0
  %1677 = vmatpush1.bf16.msra.mxu0 0
  %1678 = vmatprep.subr.bf16.mxu0 0
  %1679 = vmatpush1.bf16.msra.mxu0 0
  %1680 = vmatprep.subr.bf16.mxu0 0
  %1681 = vmatpush1.bf16.msra.mxu0 0
  %1682 = vmatprep.subr.bf16.mxu0 0
  %1683 = vmatpush1.bf16.msra.mxu0 0
  %1684 = vmatprep.subr.bf16.mxu0 0
  %1685 = vmatpush1.bf16.msra.mxu0 %v1668
  %1686 = vmatprep.subr.bf16.mxu0 0
  %1687 = vmatpush2.bf16.msra.mxu0 0
  %1688 = vmatprep.subr.bf16.mxu0 0
  %1689 = vmatpush2.bf16.msra.mxu0 0
  %1690 = vmatprep.subr.bf16.mxu0 0
  %1691 = vmatpush2.bf16.msra.mxu0 0
  %1692 = vmatprep.subr.bf16.mxu0 0
  %1693 = vmatpush2.bf16.msra.mxu0 0
  %1694 = vmatprep.subr.bf16.mxu0 0
  %1695 = vmatpush2.bf16.msra.mxu0 0
  %1696 = vmatprep.subr.bf16.mxu0 0
  %1697 = vmatpush2.bf16.msra.mxu0 0
  %1698 = vmatprep.subr.bf16.mxu0 0
  %1699 = vmatpush2.bf16.msra.mxu0 0
  %1700 = vmatprep.subr.bf16.mxu0 0
  %1701 = vmatpush2.bf16.msra.mxu0 0
  %1702 = vmatprep.mubr.bf16.mxu0 0
  %1703 = vmatmul.mubr.bf16.gmra.mxu0 %v1568
  %v1704 = vpop.f32.mrf.mxu0
  %v1705 = vadd.f32 0.0, %v1704
  %v1706 = vpop.f32.mrf.mxu0
  %v1707 = vpop.f32.mrf.mxu0
  %v1708 = vpop.f32.mrf.mxu0
  %1709 = vdwg.mxu0
  %v1710 = vadd.f32 %v1661, %v1705
  %v1711 = vld [vmem:[#allocation5 + $0x3] sm:$0x1]
  %v1712 = vld [vmem:[%s1023] sm:$0xf]
  %v1713 = vld [vmem:[%s1023 + $0x4] sm:$0xf]
  %v1716 = vunpack.c.l.b16 %v1712
  %v1717 = vunpack.c.l.b16 %v1713
  %v1718 = vpack.c.b16 %v1717, %v1716
  %1720 = vmatprep.subr.bf16.mxu0 0
  %1721 = vmatpush1.bf16.msra.mxu0 0
  %1722 = vmatprep.subr.bf16.mxu0 0
  %1723 = vmatpush1.bf16.msra.mxu0 0
  %1724 = vmatprep.subr.bf16.mxu0 0
  %1725 = vmatpush1.bf16.msra.mxu0 0
  %1726 = vmatprep.subr.bf16.mxu0 0
  %1727 = vmatpush1.bf16.msra.mxu0 0
  %1728 = vmatprep.subr.bf16.mxu0 0
  %1729 = vmatpush1.bf16.msra.mxu0 0
  %1730 = vmatprep.subr.bf16.mxu0 0
  %1731 = vmatpush1.bf16.msra.mxu0 0
  %1732 = vmatprep.subr.bf16.mxu0 0
  %1733 = vmatpush1.bf16.msra.mxu0 0
  %1734 = vmatprep.subr.bf16.mxu0 0
  %1735 = vmatpush1.bf16.msra.mxu0 %v1718
  %1736 = vmatprep.subr.bf16.mxu0 0
  %1737 = vmatpush2.bf16.msra.mxu0 0
  %1738 = vmatprep.subr.bf16.mxu0 0
  %1739 = vmatpush2.bf16.msra.mxu0 0
  %1740 = vmatprep.subr.bf16.mxu0 0
  %1741 = vmatpush2.bf16.msra.mxu0 0
  %1742 = vmatprep.subr.bf16.mxu0 0
  %1743 = vmatpush2.bf16.msra.mxu0 0
  %1744 = vmatprep.subr.bf16.mxu0 0
  %1745 = vmatpush2.bf16.msra.mxu0 0
  %1746 = vmatprep.subr.bf16.mxu0 0
  %1747 = vmatpush2.bf16.msra.mxu0 0
  %1748 = vmatprep.subr.bf16.mxu0 0
  %1749 = vmatpush2.bf16.msra.mxu0 0
  %1750 = vmatprep.subr.bf16.mxu0 0
  %1751 = vmatpush2.bf16.msra.mxu0 0
  %1752 = vmatprep.mubr.bf16.mxu0 0
  %1753 = vmatmul.mubr.bf16.gmra.mxu0 %v1568
  %v1754 = vpop.f32.mrf.mxu0
  %v1755 = vadd.f32 0.0, %v1754
  %v1756 = vpop.f32.mrf.mxu0
  %v1757 = vpop.f32.mrf.mxu0
  %v1758 = vpop.f32.mrf.mxu0
  %1759 = vdwg.mxu0
  %v1760 = vadd.f32 %v1711, %v1755
  %v1761 = vxor.u32 %v1610, 2147483648
  %v1762 = vmul.f32 %v1761, 1.442695
  %v1763 = vpow.pop %v1762
  %v1764 = vadd.f32 %v1763, 1.0
  %v1765 = vrcp.pop %v1764
  %v1766 = vmul.f32 1.0, %v1765
  %v1767 = vxor.u32 %v1660, 2147483648
  %v1768 = vmul.f32 %v1767, 1.442695
  %v1769 = vpow.pop %v1768
  %v1770 = vadd.f32 %v1769, 1.0
  %v1771 = vrcp.pop %v1770
  %v1772 = vmul.f32 1.0, %v1771
  %v1773 = vtanh.pop %v1710
  %v1774 = vxor.u32 %v1760, 2147483648
  %v1775 = vmul.f32 %v1774, 1.442695
  %v1776 = vpow.pop %v1775
  %v1777 = vadd.f32 %v1776, 1.0
  %v1778 = vrcp.pop %v1777
  %v1779 = vmul.f32 1.0, %v1778
  %v1780 = vmul.f32 %v1772, %v1553
  %v1781 = vmul.f32 %v1766, %v1773
  %v1782 = vadd.f32 %v1780, %v1781
  %v1783 = vtanh.pop %v1782
  %v1784 = vmul.f32 %v1779, %v1783
  %1785 = vst.msk [vmem:[#allocation6 + $0x3] sm:$0x1] %vm1097, %v1784
  %v1786 = vpack.c.bf16 %v1784, %v1784
  %v1787 = vld [vmem:[#allocation2 + $0x4] sm:$0x1]
  %v1788 = vld [vmem:[%s6] sm:$0xf]
  %v1789 = vld [vmem:[%s6 + $0x4] sm:$0xf]
  %v1792 = vunpack.c.l.b16 %v1788
  %v1793 = vunpack.c.l.b16 %v1789
  %v1794 = vpack.c.b16 %v1793, %v1792
  %v1797 = vsel %vm427, %v1786, 0
  %1799 = vmatprep.subr.bf16.mxu0 0
  %1800 = vmatpush1.bf16.msra.mxu0 0
  %1801 = vmatprep.subr.bf16.mxu0 0
  %1802 = vmatpush1.bf16.msra.mxu0 0
  %1803 = vmatprep.subr.bf16.mxu0 0
  %1804 = vmatpush1.bf16.msra.mxu0 0
  %1805 = vmatprep.subr.bf16.mxu0 0
  %1806 = vmatpush1.bf16.msra.mxu0 0
  %1807 = vmatprep.subr.bf16.mxu0 0
  %1808 = vmatpush1.bf16.msra.mxu0 0
  %1809 = vmatprep.subr.bf16.mxu0 0
  %1810 = vmatpush1.bf16.msra.mxu0 0
  %1811 = vmatprep.subr.bf16.mxu0 0
  %1812 = vmatpush1.bf16.msra.mxu0 0
  %1813 = vmatprep.subr.bf16.mxu0 0
  %1814 = vmatpush1.bf16.msra.mxu0 %v1794
  %1815 = vmatprep.subr.bf16.mxu0 0
  %1816 = vmatpush2.bf16.msra.mxu0 0
  %1817 = vmatprep.subr.bf16.mxu0 0
  %1818 = vmatpush2.bf16.msra.mxu0 0
  %1819 = vmatprep.subr.bf16.mxu0 0
  %1820 = vmatpush2.bf16.msra.mxu0 0
  %1821 = vmatprep.subr.bf16.mxu0 0
  %1822 = vmatpush2.bf16.msra.mxu0 0
  %1823 = vmatprep.subr.bf16.mxu0 0
  %1824 = vmatpush2.bf16.msra.mxu0 0
  %1825 = vmatprep.subr.bf16.mxu0 0
  %1826 = vmatpush2.bf16.msra.mxu0 0
  %1827 = vmatprep.subr.bf16.mxu0 0
  %1828 = vmatpush2.bf16.msra.mxu0 0
  %1829 = vmatprep.subr.bf16.mxu0 0
  %1830 = vmatpush2.bf16.msra.mxu0 0
  %1831 = vmatprep.mubr.bf16.mxu0 0
  %1832 = vmatmul.mubr.bf16.gmra.mxu0 %v1797
  %v1833 = vpop.f32.mrf.mxu0
  %v1834 = vadd.f32 0.0, %v1833
  %v1835 = vpop.f32.mrf.mxu0
  %v1836 = vpop.f32.mrf.mxu0
  %v1837 = vpop.f32.mrf.mxu0
  %1838 = vdwg.mxu0
  %v1839 = vadd.f32 %v1787, %v1834
  %v1840 = vld [vmem:[#allocation3 + $0x4] sm:$0x1]
  %v1841 = vld [vmem:[%s921] sm:$0xf]
  %v1842 = vld [vmem:[%s921 + $0x4] sm:$0xf]
  %v1845 = vunpack.c.l.b16 %v1841
  %v1846 = vunpack.c.l.b16 %v1842
  %v1847 = vpack.c.b16 %v1846, %v1845
  %1849 = vmatprep.subr.bf16.mxu0 0
  %1850 = vmatpush1.bf16.msra.mxu0 0
  %1851 = vmatprep.subr.bf16.mxu0 0
  %1852 = vmatpush1.bf16.msra.mxu0 0
  %1853 = vmatprep.subr.bf16.mxu0 0
  %1854 = vmatpush1.bf16.msra.mxu0 0
  %1855 = vmatprep.subr.bf16.mxu0 0
  %1856 = vmatpush1.bf16.msra.mxu0 0
  %1857 = vmatprep.subr.bf16.mxu0 0
  %1858 = vmatpush1.bf16.msra.mxu0 0
  %1859 = vmatprep.subr.bf16.mxu0 0
  %1860 = vmatpush1.bf16.msra.mxu0 0
  %1861 = vmatprep.subr.bf16.mxu0 0
  %1862 = vmatpush1.bf16.msra.mxu0 0
  %1863 = vmatprep.subr.bf16.mxu0 0
  %1864 = vmatpush1.bf16.msra.mxu0 %v1847
  %1865 = vmatprep.subr.bf16.mxu0 0
  %1866 = vmatpush2.bf16.msra.mxu0 0
  %1867 = vmatprep.subr.bf16.mxu0 0
  %1868 = vmatpush2.bf16.msra.mxu0 0
  %1869 = vmatprep.subr.bf16.mxu0 0
  %1870 = vmatpush2.bf16.msra.mxu0 0
  %1871 = vmatprep.subr.bf16.mxu0 0
  %1872 = vmatpush2.bf16.msra.mxu0 0
  %1873 = vmatprep.subr.bf16.mxu0 0
  %1874 = vmatpush2.bf16.msra.mxu0 0
  %1875 = vmatprep.subr.bf16.mxu0 0
  %1876 = vmatpush2.bf16.msra.mxu0 0
  %1877 = vmatprep.subr.bf16.mxu0 0
  %1878 = vmatpush2.bf16.msra.mxu0 0
  %1879 = vmatprep.subr.bf16.mxu0 0
  %1880 = vmatpush2.bf16.msra.mxu0 0
  %1881 = vmatprep.mubr.bf16.mxu0 0
  %1882 = vmatmul.mubr.bf16.gmra.mxu0 %v1797
  %v1883 = vpop.f32.mrf.mxu0
  %v1884 = vadd.f32 0.0, %v1883
  %v1885 = vpop.f32.mrf.mxu0
  %v1886 = vpop.f32.mrf.mxu0
  %v1887 = vpop.f32.mrf.mxu0
  %1888 = vdwg.mxu0
  %v1889 = vadd.f32 %v1840, %v1884
  %v1890 = vld [vmem:[#allocation4 + $0x4] sm:$0x1]
  %v1891 = vld [vmem:[%s972] sm:$0xf]
  %v1892 = vld [vmem:[%s972 + $0x4] sm:$0xf]
  %v1895 = vunpack.c.l.b16 %v1891
  %v1896 = vunpack.c.l.b16 %v1892
  %v1897 = vpack.c.b16 %v1896, %v1895
  %1899 = vmatprep.subr.bf16.mxu0 0
  %1900 = vmatpush1.bf16.msra.mxu0 0
  %1901 = vmatprep.subr.bf16.mxu0 0
  %1902 = vmatpush1.bf16.msra.mxu0 0
  %1903 = vmatprep.subr.bf16.mxu0 0
  %1904 = vmatpush1.bf16.msra.mxu0 0
  %1905 = vmatprep.subr.bf16.mxu0 0
  %1906 = vmatpush1.bf16.msra.mxu0 0
  %1907 = vmatprep.subr.bf16.mxu0 0
  %1908 = vmatpush1.bf16.msra.mxu0 0
  %1909 = vmatprep.subr.bf16.mxu0 0
  %1910 = vmatpush1.bf16.msra.mxu0 0
  %1911 = vmatprep.subr.bf16.mxu0 0
  %1912 = vmatpush1.bf16.msra.mxu0 0
  %1913 = vmatprep.subr.bf16.mxu0 0
  %1914 = vmatpush1.bf16.msra.mxu0 %v1897
  %1915 = vmatprep.subr.bf16.mxu0 0
  %1916 = vmatpush2.bf16.msra.mxu0 0
  %1917 = vmatprep.subr.bf16.mxu0 0
  %1918 = vmatpush2.bf16.msra.mxu0 0
  %1919 = vmatprep.subr.bf16.mxu0 0
  %1920 = vmatpush2.bf16.msra.mxu0 0
  %1921 = vmatprep.subr.bf16.mxu0 0
  %1922 = vmatpush2.bf16.msra.mxu0 0
  %1923 = vmatprep.subr.bf16.mxu0 0
  %1924 = vmatpush2.bf16.msra.mxu0 0
  %1925 = vmatprep.subr.bf16.mxu0 0
  %1926 = vmatpush2.bf16.msra.mxu0 0
  %1927 = vmatprep.subr.bf16.mxu0 0
  %1928 = vmatpush2.bf16.msra.mxu0 0
  %1929 = vmatprep.subr.bf16.mxu0 0
  %1930 = vmatpush2.bf16.msra.mxu0 0
  %1931 = vmatprep.mubr.bf16.mxu0 0
  %1932 = vmatmul.mubr.bf16.gmra.mxu0 %v1797
  %v1933 = vpop.f32.mrf.mxu0
  %v1934 = vadd.f32 0.0, %v1933
  %v1935 = vpop.f32.mrf.mxu0
  %v1936 = vpop.f32.mrf.mxu0
  %v1937 = vpop.f32.mrf.mxu0
  %1938 = vdwg.mxu0
  %v1939 = vadd.f32 %v1890, %v1934
  %v1940 = vld [vmem:[#allocation5 + $0x4] sm:$0x1]
  %v1941 = vld [vmem:[%s1023] sm:$0xf]
  %v1942 = vld [vmem:[%s1023 + $0x4] sm:$0xf]
  %v1945 = vunpack.c.l.b16 %v1941
  %v1946 = vunpack.c.l.b16 %v1942
  %v1947 = vpack.c.b16 %v1946, %v1945
  %1949 = vmatprep.subr.bf16.mxu0 0
  %1950 = vmatpush1.bf16.msra.mxu0 0
  %1951 = vmatprep.subr.bf16.mxu0 0
  %1952 = vmatpush1.bf16.msra.mxu0 0
  %1953 = vmatprep.subr.bf16.mxu0 0
  %1954 = vmatpush1.bf16.msra.mxu0 0
  %1955 = vmatprep.subr.bf16.mxu0 0
  %1956 = vmatpush1.bf16.msra.mxu0 0
  %1957 = vmatprep.subr.bf16.mxu0 0
  %1958 = vmatpush1.bf16.msra.mxu0 0
  %1959 = vmatprep.subr.bf16.mxu0 0
  %1960 = vmatpush1.bf16.msra.mxu0 0
  %1961 = vmatprep.subr.bf16.mxu0 0
  %1962 = vmatpush1.bf16.msra.mxu0 0
  %1963 = vmatprep.subr.bf16.mxu0 0
  %1964 = vmatpush1.bf16.msra.mxu0 %v1947
  %1965 = vmatprep.subr.bf16.mxu0 0
  %1966 = vmatpush2.bf16.msra.mxu0 0
  %1967 = vmatprep.subr.bf16.mxu0 0
  %1968 = vmatpush2.bf16.msra.mxu0 0
  %1969 = vmatprep.subr.bf16.mxu0 0
  %1970 = vmatpush2.bf16.msra.mxu0 0
  %1971 = vmatprep.subr.bf16.mxu0 0
  %1972 = vmatpush2.bf16.msra.mxu0 0
  %1973 = vmatprep.subr.bf16.mxu0 0
  %1974 = vmatpush2.bf16.msra.mxu0 0
  %1975 = vmatprep.subr.bf16.mxu0 0
  %1976 = vmatpush2.bf16.msra.mxu0 0
  %1977 = vmatprep.subr.bf16.mxu0 0
  %1978 = vmatpush2.bf16.msra.mxu0 0
  %1979 = vmatprep.subr.bf16.mxu0 0
  %1980 = vmatpush2.bf16.msra.mxu0 0
  %1981 = vmatprep.mubr.bf16.mxu0 0
  %1982 = vmatmul.mubr.bf16.gmra.mxu0 %v1797
  %v1983 = vpop.f32.mrf.mxu0
  %v1984 = vadd.f32 0.0, %v1983
  %v1985 = vpop.f32.mrf.mxu0
  %v1986 = vpop.f32.mrf.mxu0
  %v1987 = vpop.f32.mrf.mxu0
  %1988 = vdwg.mxu0
  %v1989 = vadd.f32 %v1940, %v1984
  %v1990 = vxor.u32 %v1839, 2147483648
  %v1991 = vmul.f32 %v1990, 1.442695
  %v1992 = vpow.pop %v1991
  %v1993 = vadd.f32 %v1992, 1.0
  %v1994 = vrcp.pop %v1993
  %v1995 = vmul.f32 1.0, %v1994
  %v1996 = vxor.u32 %v1889, 2147483648
  %v1997 = vmul.f32 %v1996, 1.442695
  %v1998 = vpow.pop %v1997
  %v1999 = vadd.f32 %v1998, 1.0
  %v2000 = vrcp.pop %v1999
  %v2001 = vmul.f32 1.0, %v2000
  %v2002 = vtanh.pop %v1939
  %v2003 = vxor.u32 %v1989, 2147483648
  %v2004 = vmul.f32 %v2003, 1.442695
  %v2005 = vpow.pop %v2004
  %v2006 = vadd.f32 %v2005, 1.0
  %v2007 = vrcp.pop %v2006
  %v2008 = vmul.f32 1.0, %v2007
  %v2009 = vmul.f32 %v2001, %v1782
  %v2010 = vmul.f32 %v1995, %v2002
  %v2011 = vadd.f32 %v2009, %v2010
  %v2012 = vtanh.pop %v2011
  %v2013 = vmul.f32 %v2008, %v2012
  %2014 = vst.msk [vmem:[#allocation6 + $0x4] sm:$0x1] %vm1097, %v2013
  %v2015 = vpack.c.bf16 %v2013, %v2013
  %v2016 = vld [vmem:[#allocation2 + $0x5] sm:$0x1]
  %v2017 = vld [vmem:[%s6] sm:$0xf]
  %v2018 = vld [vmem:[%s6 + $0x4] sm:$0xf]
  %v2021 = vunpack.c.l.b16 %v2017
  %v2022 = vunpack.c.l.b16 %v2018
  %v2023 = vpack.c.b16 %v2022, %v2021
  %v2026 = vsel %vm427, %v2015, 0
  %2028 = vmatprep.subr.bf16.mxu0 0
  %2029 = vmatpush1.bf16.msra.mxu0 0
  %2030 = vmatprep.subr.bf16.mxu0 0
  %2031 = vmatpush1.bf16.msra.mxu0 0
  %2032 = vmatprep.subr.bf16.mxu0 0
  %2033 = vmatpush1.bf16.msra.mxu0 0
  %2034 = vmatprep.subr.bf16.mxu0 0
  %2035 = vmatpush1.bf16.msra.mxu0 0
  %2036 = vmatprep.subr.bf16.mxu0 0
  %2037 = vmatpush1.bf16.msra.mxu0 0
  %2038 = vmatprep.subr.bf16.mxu0 0
  %2039 = vmatpush1.bf16.msra.mxu0 0
  %2040 = vmatprep.subr.bf16.mxu0 0
  %2041 = vmatpush1.bf16.msra.mxu0 0
  %2042 = vmatprep.subr.bf16.mxu0 0
  %2043 = vmatpush1.bf16.msra.mxu0 %v2023
  %2044 = vmatprep.subr.bf16.mxu0 0
  %2045 = vmatpush2.bf16.msra.mxu0 0
  %2046 = vmatprep.subr.bf16.mxu0 0
  %2047 = vmatpush2.bf16.msra.mxu0 0
  %2048 = vmatprep.subr.bf16.mxu0 0
  %2049 = vmatpush2.bf16.msra.mxu0 0
  %2050 = vmatprep.subr.bf16.mxu0 0
  %2051 = vmatpush2.bf16.msra.mxu0 0
  %2052 = vmatprep.subr.bf16.mxu0 0
  %2053 = vmatpush2.bf16.msra.mxu0 0
  %2054 = vmatprep.subr.bf16.mxu0 0
  %2055 = vmatpush2.bf16.msra.mxu0 0
  %2056 = vmatprep.subr.bf16.mxu0 0
  %2057 = vmatpush2.bf16.msra.mxu0 0
  %2058 = vmatprep.subr.bf16.mxu0 0
  %2059 = vmatpush2.bf16.msra.mxu0 0
  %2060 = vmatprep.mubr.bf16.mxu0 0
  %2061 = vmatmul.mubr.bf16.gmra.mxu0 %v2026
  %v2062 = vpop.f32.mrf.mxu0
  %v2063 = vadd.f32 0.0, %v2062
  %v2064 = vpop.f32.mrf.mxu0
  %v2065 = vpop.f32.mrf.mxu0
  %v2066 = vpop.f32.mrf.mxu0
  %2067 = vdwg.mxu0
  %v2068 = vadd.f32 %v2016, %v2063
  %v2069 = vld [vmem:[#allocation3 + $0x5] sm:$0x1]
  %v2070 = vld [vmem:[%s921] sm:$0xf]
  %v2071 = vld [vmem:[%s921 + $0x4] sm:$0xf]
  %v2074 = vunpack.c.l.b16 %v2070
  %v2075 = vunpack.c.l.b16 %v2071
  %v2076 = vpack.c.b16 %v2075, %v2074
  %2078 = vmatprep.subr.bf16.mxu0 0
  %2079 = vmatpush1.bf16.msra.mxu0 0
  %2080 = vmatprep.subr.bf16.mxu0 0
  %2081 = vmatpush1.bf16.msra.mxu0 0
  %2082 = vmatprep.subr.bf16.mxu0 0
  %2083 = vmatpush1.bf16.msra.mxu0 0
  %2084 = vmatprep.subr.bf16.mxu0 0
  %2085 = vmatpush1.bf16.msra.mxu0 0
  %2086 = vmatprep.subr.bf16.mxu0 0
  %2087 = vmatpush1.bf16.msra.mxu0 0
  %2088 = vmatprep.subr.bf16.mxu0 0
  %2089 = vmatpush1.bf16.msra.mxu0 0
  %2090 = vmatprep.subr.bf16.mxu0 0
  %2091 = vmatpush1.bf16.msra.mxu0 0
  %2092 = vmatprep.subr.bf16.mxu0 0
  %2093 = vmatpush1.bf16.msra.mxu0 %v2076
  %2094 = vmatprep.subr.bf16.mxu0 0
  %2095 = vmatpush2.bf16.msra.mxu0 0
  %2096 = vmatprep.subr.bf16.mxu0 0
  %2097 = vmatpush2.bf16.msra.mxu0 0
  %2098 = vmatprep.subr.bf16.mxu0 0
  %2099 = vmatpush2.bf16.msra.mxu0 0
  %2100 = vmatprep.subr.bf16.mxu0 0
  %2101 = vmatpush2.bf16.msra.mxu0 0
  %2102 = vmatprep.subr.bf16.mxu0 0
  %2103 = vmatpush2.bf16.msra.mxu0 0
  %2104 = vmatprep.subr.bf16.mxu0 0
  %2105 = vmatpush2.bf16.msra.mxu0 0
  %2106 = vmatprep.subr.bf16.mxu0 0
  %2107 = vmatpush2.bf16.msra.mxu0 0
  %2108 = vmatprep.subr.bf16.mxu0 0
  %2109 = vmatpush2.bf16.msra.mxu0 0
  %2110 = vmatprep.mubr.bf16.mxu0 0
  %2111 = vmatmul.mubr.bf16.gmra.mxu0 %v2026
  %v2112 = vpop.f32.mrf.mxu0
  %v2113 = vadd.f32 0.0, %v2112
  %v2114 = vpop.f32.mrf.mxu0
  %v2115 = vpop.f32.mrf.mxu0
  %v2116 = vpop.f32.mrf.mxu0
  %2117 = vdwg.mxu0
  %v2118 = vadd.f32 %v2069, %v2113
  %v2119 = vld [vmem:[#allocation4 + $0x5] sm:$0x1]
  %v2120 = vld [vmem:[%s972] sm:$0xf]
  %v2121 = vld [vmem:[%s972 + $0x4] sm:$0xf]
  %v2124 = vunpack.c.l.b16 %v2120
  %v2125 = vunpack.c.l.b16 %v2121
  %v2126 = vpack.c.b16 %v2125, %v2124
  %2128 = vmatprep.subr.bf16.mxu0 0
  %2129 = vmatpush1.bf16.msra.mxu0 0
  %2130 = vmatprep.subr.bf16.mxu0 0
  %2131 = vmatpush1.bf16.msra.mxu0 0
  %2132 = vmatprep.subr.bf16.mxu0 0
  %2133 = vmatpush1.bf16.msra.mxu0 0
  %2134 = vmatprep.subr.bf16.mxu0 0
  %2135 = vmatpush1.bf16.msra.mxu0 0
  %2136 = vmatprep.subr.bf16.mxu0 0
  %2137 = vmatpush1.bf16.msra.mxu0 0
  %2138 = vmatprep.subr.bf16.mxu0 0
  %2139 = vmatpush1.bf16.msra.mxu0 0
  %2140 = vmatprep.subr.bf16.mxu0 0
  %2141 = vmatpush1.bf16.msra.mxu0 0
  %2142 = vmatprep.subr.bf16.mxu0 0
  %2143 = vmatpush1.bf16.msra.mxu0 %v2126
  %2144 = vmatprep.subr.bf16.mxu0 0
  %2145 = vmatpush2.bf16.msra.mxu0 0
  %2146 = vmatprep.subr.bf16.mxu0 0
  %2147 = vmatpush2.bf16.msra.mxu0 0
  %2148 = vmatprep.subr.bf16.mxu0 0
  %2149 = vmatpush2.bf16.msra.mxu0 0
  %2150 = vmatprep.subr.bf16.mxu0 0
  %2151 = vmatpush2.bf16.msra.mxu0 0
  %2152 = vmatprep.subr.bf16.mxu0 0
  %2153 = vmatpush2.bf16.msra.mxu0 0
  %2154 = vmatprep.subr.bf16.mxu0 0
  %2155 = vmatpush2.bf16.msra.mxu0 0
  %2156 = vmatprep.subr.bf16.mxu0 0
  %2157 = vmatpush2.bf16.msra.mxu0 0
  %2158 = vmatprep.subr.bf16.mxu0 0
  %2159 = vmatpush2.bf16.msra.mxu0 0
  %2160 = vmatprep.mubr.bf16.mxu0 0
  %2161 = vmatmul.mubr.bf16.gmra.mxu0 %v2026
  %v2162 = vpop.f32.mrf.mxu0
  %v2163 = vadd.f32 0.0, %v2162
  %v2164 = vpop.f32.mrf.mxu0
  %v2165 = vpop.f32.mrf.mxu0
  %v2166 = vpop.f32.mrf.mxu0
  %2167 = vdwg.mxu0
  %v2168 = vadd.f32 %v2119, %v2163
  %v2169 = vld [vmem:[#allocation5 + $0x5] sm:$0x1]
  %v2170 = vld [vmem:[%s1023] sm:$0xf]
  %v2171 = vld [vmem:[%s1023 + $0x4] sm:$0xf]
  %v2174 = vunpack.c.l.b16 %v2170
  %v2175 = vunpack.c.l.b16 %v2171
  %v2176 = vpack.c.b16 %v2175, %v2174
  %2178 = vmatprep.subr.bf16.mxu0 0
  %2179 = vmatpush1.bf16.msra.mxu0 0
  %2180 = vmatprep.subr.bf16.mxu0 0
  %2181 = vmatpush1.bf16.msra.mxu0 0
  %2182 = vmatprep.subr.bf16.mxu0 0
  %2183 = vmatpush1.bf16.msra.mxu0 0
  %2184 = vmatprep.subr.bf16.mxu0 0
  %2185 = vmatpush1.bf16.msra.mxu0 0
  %2186 = vmatprep.subr.bf16.mxu0 0
  %2187 = vmatpush1.bf16.msra.mxu0 0
  %2188 = vmatprep.subr.bf16.mxu0 0
  %2189 = vmatpush1.bf16.msra.mxu0 0
  %2190 = vmatprep.subr.bf16.mxu0 0
  %2191 = vmatpush1.bf16.msra.mxu0 0
  %2192 = vmatprep.subr.bf16.mxu0 0
  %2193 = vmatpush1.bf16.msra.mxu0 %v2176
  %2194 = vmatprep.subr.bf16.mxu0 0
  %2195 = vmatpush2.bf16.msra.mxu0 0
  %2196 = vmatprep.subr.bf16.mxu0 0
  %2197 = vmatpush2.bf16.msra.mxu0 0
  %2198 = vmatprep.subr.bf16.mxu0 0
  %2199 = vmatpush2.bf16.msra.mxu0 0
  %2200 = vmatprep.subr.bf16.mxu0 0
  %2201 = vmatpush2.bf16.msra.mxu0 0
  %2202 = vmatprep.subr.bf16.mxu0 0
  %2203 = vmatpush2.bf16.msra.mxu0 0
  %2204 = vmatprep.subr.bf16.mxu0 0
  %2205 = vmatpush2.bf16.msra.mxu0 0
  %2206 = vmatprep.subr.bf16.mxu0 0
  %2207 = vmatpush2.bf16.msra.mxu0 0
  %2208 = vmatprep.subr.bf16.mxu0 0
  %2209 = vmatpush2.bf16.msra.mxu0 0
  %2210 = vmatprep.mubr.bf16.mxu0 0
  %2211 = vmatmul.mubr.bf16.gmra.mxu0 %v2026
  %v2212 = vpop.f32.mrf.mxu0
  %v2213 = vadd.f32 0.0, %v2212
  %v2214 = vpop.f32.mrf.mxu0
  %v2215 = vpop.f32.mrf.mxu0
  %v2216 = vpop.f32.mrf.mxu0
  %2217 = vdwg.mxu0
  %v2218 = vadd.f32 %v2169, %v2213
  %v2219 = vxor.u32 %v2068, 2147483648
  %v2220 = vmul.f32 %v2219, 1.442695
  %v2221 = vpow.pop %v2220
  %v2222 = vadd.f32 %v2221, 1.0
  %v2223 = vrcp.pop %v2222
  %v2224 = vmul.f32 1.0, %v2223
  %v2225 = vxor.u32 %v2118, 2147483648
  %v2226 = vmul.f32 %v2225, 1.442695
  %v2227 = vpow.pop %v2226
  %v2228 = vadd.f32 %v2227, 1.0
  %v2229 = vrcp.pop %v2228
  %v2230 = vmul.f32 1.0, %v2229
  %v2231 = vtanh.pop %v2168
  %v2232 = vxor.u32 %v2218, 2147483648
  %v2233 = vmul.f32 %v2232, 1.442695
  %v2234 = vpow.pop %v2233
  %v2235 = vadd.f32 %v2234, 1.0
  %v2236 = vrcp.pop %v2235
  %v2237 = vmul.f32 1.0, %v2236
  %v2238 = vmul.f32 %v2230, %v2011
  %v2239 = vmul.f32 %v2224, %v2231
  %v2240 = vadd.f32 %v2238, %v2239
  %v2241 = vtanh.pop %v2240
  %v2242 = vmul.f32 %v2237, %v2241
  %2243 = vst.msk [vmem:[#allocation6 + $0x5] sm:$0x1] %vm1097, %v2242
  %v2244 = vpack.c.bf16 %v2242, %v2242
  %v2245 = vld [vmem:[#allocation2 + $0x6] sm:$0x1]
  %v2246 = vld [vmem:[%s6] sm:$0xf]
  %v2247 = vld [vmem:[%s6 + $0x4] sm:$0xf]
  %v2250 = vunpack.c.l.b16 %v2246
  %v2251 = vunpack.c.l.b16 %v2247
  %v2252 = vpack.c.b16 %v2251, %v2250
  %v2255 = vsel %vm427, %v2244, 0
  %2257 = vmatprep.subr.bf16.mxu0 0
  %2258 = vmatpush1.bf16.msra.mxu0 0
  %2259 = vmatprep.subr.bf16.mxu0 0
  %2260 = vmatpush1.bf16.msra.mxu0 0
  %2261 = vmatprep.subr.bf16.mxu0 0
  %2262 = vmatpush1.bf16.msra.mxu0 0
  %2263 = vmatprep.subr.bf16.mxu0 0
  %2264 = vmatpush1.bf16.msra.mxu0 0
  %2265 = vmatprep.subr.bf16.mxu0 0
  %2266 = vmatpush1.bf16.msra.mxu0 0
  %2267 = vmatprep.subr.bf16.mxu0 0
  %2268 = vmatpush1.bf16.msra.mxu0 0
  %2269 = vmatprep.subr.bf16.mxu0 0
  %2270 = vmatpush1.bf16.msra.mxu0 0
  %2271 = vmatprep.subr.bf16.mxu0 0
  %2272 = vmatpush1.bf16.msra.mxu0 %v2252
  %2273 = vmatprep.subr.bf16.mxu0 0
  %2274 = vmatpush2.bf16.msra.mxu0 0
  %2275 = vmatprep.subr.bf16.mxu0 0
  %2276 = vmatpush2.bf16.msra.mxu0 0
  %2277 = vmatprep.subr.bf16.mxu0 0
  %2278 = vmatpush2.bf16.msra.mxu0 0
  %2279 = vmatprep.subr.bf16.mxu0 0
  %2280 = vmatpush2.bf16.msra.mxu0 0
  %2281 = vmatprep.subr.bf16.mxu0 0
  %2282 = vmatpush2.bf16.msra.mxu0 0
  %2283 = vmatprep.subr.bf16.mxu0 0
  %2284 = vmatpush2.bf16.msra.mxu0 0
  %2285 = vmatprep.subr.bf16.mxu0 0
  %2286 = vmatpush2.bf16.msra.mxu0 0
  %2287 = vmatprep.subr.bf16.mxu0 0
  %2288 = vmatpush2.bf16.msra.mxu0 0
  %2289 = vmatprep.mubr.bf16.mxu0 0
  %2290 = vmatmul.mubr.bf16.gmra.mxu0 %v2255
  %v2291 = vpop.f32.mrf.mxu0
  %v2292 = vadd.f32 0.0, %v2291
  %v2293 = vpop.f32.mrf.mxu0
  %v2294 = vpop.f32.mrf.mxu0
  %v2295 = vpop.f32.mrf.mxu0
  %2296 = vdwg.mxu0
  %v2297 = vadd.f32 %v2245, %v2292
  %v2298 = vld [vmem:[#allocation3 + $0x6] sm:$0x1]
  %v2299 = vld [vmem:[%s921] sm:$0xf]
  %v2300 = vld [vmem:[%s921 + $0x4] sm:$0xf]
  %v2303 = vunpack.c.l.b16 %v2299
  %v2304 = vunpack.c.l.b16 %v2300
  %v2305 = vpack.c.b16 %v2304, %v2303
  %2307 = vmatprep.subr.bf16.mxu0 0
  %2308 = vmatpush1.bf16.msra.mxu0 0
  %2309 = vmatprep.subr.bf16.mxu0 0
  %2310 = vmatpush1.bf16.msra.mxu0 0
  %2311 = vmatprep.subr.bf16.mxu0 0
  %2312 = vmatpush1.bf16.msra.mxu0 0
  %2313 = vmatprep.subr.bf16.mxu0 0
  %2314 = vmatpush1.bf16.msra.mxu0 0
  %2315 = vmatprep.subr.bf16.mxu0 0
  %2316 = vmatpush1.bf16.msra.mxu0 0
  %2317 = vmatprep.subr.bf16.mxu0 0
  %2318 = vmatpush1.bf16.msra.mxu0 0
  %2319 = vmatprep.subr.bf16.mxu0 0
  %2320 = vmatpush1.bf16.msra.mxu0 0
  %2321 = vmatprep.subr.bf16.mxu0 0
  %2322 = vmatpush1.bf16.msra.mxu0 %v2305
  %2323 = vmatprep.subr.bf16.mxu0 0
  %2324 = vmatpush2.bf16.msra.mxu0 0
  %2325 = vmatprep.subr.bf16.mxu0 0
  %2326 = vmatpush2.bf16.msra.mxu0 0
  %2327 = vmatprep.subr.bf16.mxu0 0
  %2328 = vmatpush2.bf16.msra.mxu0 0
  %2329 = vmatprep.subr.bf16.mxu0 0
  %2330 = vmatpush2.bf16.msra.mxu0 0
  %2331 = vmatprep.subr.bf16.mxu0 0
  %2332 = vmatpush2.bf16.msra.mxu0 0
  %2333 = vmatprep.subr.bf16.mxu0 0
  %2334 = vmatpush2.bf16.msra.mxu0 0
  %2335 = vmatprep.subr.bf16.mxu0 0
  %2336 = vmatpush2.bf16.msra.mxu0 0
  %2337 = vmatprep.subr.bf16.mxu0 0
  %2338 = vmatpush2.bf16.msra.mxu0 0
  %2339 = vmatprep.mubr.bf16.mxu0 0
  %2340 = vmatmul.mubr.bf16.gmra.mxu0 %v2255
  %v2341 = vpop.f32.mrf.mxu0
  %v2342 = vadd.f32 0.0, %v2341
  %v2343 = vpop.f32.mrf.mxu0
  %v2344 = vpop.f32.mrf.mxu0
  %v2345 = vpop.f32.mrf.mxu0
  %2346 = vdwg.mxu0
  %v2347 = vadd.f32 %v2298, %v2342
  %v2348 = vld [vmem:[#allocation4 + $0x6] sm:$0x1]
  %v2349 = vld [vmem:[%s972] sm:$0xf]
  %v2350 = vld [vmem:[%s972 + $0x4] sm:$0xf]
  %v2353 = vunpack.c.l.b16 %v2349
  %v2354 = vunpack.c.l.b16 %v2350
  %v2355 = vpack.c.b16 %v2354, %v2353
  %2357 = vmatprep.subr.bf16.mxu0 0
  %2358 = vmatpush1.bf16.msra.mxu0 0
  %2359 = vmatprep.subr.bf16.mxu0 0
  %2360 = vmatpush1.bf16.msra.mxu0 0
  %2361 = vmatprep.subr.bf16.mxu0 0
  %2362 = vmatpush1.bf16.msra.mxu0 0
  %2363 = vmatprep.subr.bf16.mxu0 0
  %2364 = vmatpush1.bf16.msra.mxu0 0
  %2365 = vmatprep.subr.bf16.mxu0 0
  %2366 = vmatpush1.bf16.msra.mxu0 0
  %2367 = vmatprep.subr.bf16.mxu0 0
  %2368 = vmatpush1.bf16.msra.mxu0 0
  %2369 = vmatprep.subr.bf16.mxu0 0
  %2370 = vmatpush1.bf16.msra.mxu0 0
  %2371 = vmatprep.subr.bf16.mxu0 0
  %2372 = vmatpush1.bf16.msra.mxu0 %v2355
  %2373 = vmatprep.subr.bf16.mxu0 0
  %2374 = vmatpush2.bf16.msra.mxu0 0
  %2375 = vmatprep.subr.bf16.mxu0 0
  %2376 = vmatpush2.bf16.msra.mxu0 0
  %2377 = vmatprep.subr.bf16.mxu0 0
  %2378 = vmatpush2.bf16.msra.mxu0 0
  %2379 = vmatprep.subr.bf16.mxu0 0
  %2380 = vmatpush2.bf16.msra.mxu0 0
  %2381 = vmatprep.subr.bf16.mxu0 0
  %2382 = vmatpush2.bf16.msra.mxu0 0
  %2383 = vmatprep.subr.bf16.mxu0 0
  %2384 = vmatpush2.bf16.msra.mxu0 0
  %2385 = vmatprep.subr.bf16.mxu0 0
  %2386 = vmatpush2.bf16.msra.mxu0 0
  %2387 = vmatprep.subr.bf16.mxu0 0
  %2388 = vmatpush2.bf16.msra.mxu0 0
  %2389 = vmatprep.mubr.bf16.mxu0 0
  %2390 = vmatmul.mubr.bf16.gmra.mxu0 %v2255
  %v2391 = vpop.f32.mrf.mxu0
  %v2392 = vadd.f32 0.0, %v2391
  %v2393 = vpop.f32.mrf.mxu0
  %v2394 = vpop.f32.mrf.mxu0
  %v2395 = vpop.f32.mrf.mxu0
  %2396 = vdwg.mxu0
  %v2397 = vadd.f32 %v2348, %v2392
  %v2398 = vld [vmem:[#allocation5 + $0x6] sm:$0x1]
  %v2399 = vld [vmem:[%s1023] sm:$0xf]
  %v2400 = vld [vmem:[%s1023 + $0x4] sm:$0xf]
  %v2403 = vunpack.c.l.b16 %v2399
  %v2404 = vunpack.c.l.b16 %v2400
  %v2405 = vpack.c.b16 %v2404, %v2403
  %2407 = vmatprep.subr.bf16.mxu0 0
  %2408 = vmatpush1.bf16.msra.mxu0 0
  %2409 = vmatprep.subr.bf16.mxu0 0
  %2410 = vmatpush1.bf16.msra.mxu0 0
  %2411 = vmatprep.subr.bf16.mxu0 0
  %2412 = vmatpush1.bf16.msra.mxu0 0
  %2413 = vmatprep.subr.bf16.mxu0 0
  %2414 = vmatpush1.bf16.msra.mxu0 0
  %2415 = vmatprep.subr.bf16.mxu0 0
  %2416 = vmatpush1.bf16.msra.mxu0 0
  %2417 = vmatprep.subr.bf16.mxu0 0
  %2418 = vmatpush1.bf16.msra.mxu0 0
  %2419 = vmatprep.subr.bf16.mxu0 0
  %2420 = vmatpush1.bf16.msra.mxu0 0
  %2421 = vmatprep.subr.bf16.mxu0 0
  %2422 = vmatpush1.bf16.msra.mxu0 %v2405
  %2423 = vmatprep.subr.bf16.mxu0 0
  %2424 = vmatpush2.bf16.msra.mxu0 0
  %2425 = vmatprep.subr.bf16.mxu0 0
  %2426 = vmatpush2.bf16.msra.mxu0 0
  %2427 = vmatprep.subr.bf16.mxu0 0
  %2428 = vmatpush2.bf16.msra.mxu0 0
  %2429 = vmatprep.subr.bf16.mxu0 0
  %2430 = vmatpush2.bf16.msra.mxu0 0
  %2431 = vmatprep.subr.bf16.mxu0 0
  %2432 = vmatpush2.bf16.msra.mxu0 0
  %2433 = vmatprep.subr.bf16.mxu0 0
  %2434 = vmatpush2.bf16.msra.mxu0 0
  %2435 = vmatprep.subr.bf16.mxu0 0
  %2436 = vmatpush2.bf16.msra.mxu0 0
  %2437 = vmatprep.subr.bf16.mxu0 0
  %2438 = vmatpush2.bf16.msra.mxu0 0
  %2439 = vmatprep.mubr.bf16.mxu0 0
  %2440 = vmatmul.mubr.bf16.gmra.mxu0 %v2255
  %v2441 = vpop.f32.mrf.mxu0
  %v2442 = vadd.f32 0.0, %v2441
  %v2443 = vpop.f32.mrf.mxu0
  %v2444 = vpop.f32.mrf.mxu0
  %v2445 = vpop.f32.mrf.mxu0
  %2446 = vdwg.mxu0
  %v2447 = vadd.f32 %v2398, %v2442
  %v2448 = vxor.u32 %v2297, 2147483648
  %v2449 = vmul.f32 %v2448, 1.442695
  %v2450 = vpow.pop %v2449
  %v2451 = vadd.f32 %v2450, 1.0
  %v2452 = vrcp.pop %v2451
  %v2453 = vmul.f32 1.0, %v2452
  %v2454 = vxor.u32 %v2347, 2147483648
  %v2455 = vmul.f32 %v2454, 1.442695
  %v2456 = vpow.pop %v2455
  %v2457 = vadd.f32 %v2456, 1.0
  %v2458 = vrcp.pop %v2457
  %v2459 = vmul.f32 1.0, %v2458
  %v2460 = vtanh.pop %v2397
  %v2461 = vxor.u32 %v2447, 2147483648
  %v2462 = vmul.f32 %v2461, 1.442695
  %v2463 = vpow.pop %v2462
  %v2464 = vadd.f32 %v2463, 1.0
  %v2465 = vrcp.pop %v2464
  %v2466 = vmul.f32 1.0, %v2465
  %v2467 = vmul.f32 %v2459, %v2240
  %v2468 = vmul.f32 %v2453, %v2460
  %v2469 = vadd.f32 %v2467, %v2468
  %v2470 = vtanh.pop %v2469
  %v2471 = vmul.f32 %v2466, %v2470
  %2472 = vst.msk [vmem:[#allocation6 + $0x6] sm:$0x1] %vm1097, %v2471
  %v2473 = vpack.c.bf16 %v2471, %v2471
  %v2474 = vld [vmem:[#allocation2 + $0x7] sm:$0x1]
  %v2475 = vld [vmem:[%s6] sm:$0xf]
  %v2476 = vld [vmem:[%s6 + $0x4] sm:$0xf]
  %v2479 = vunpack.c.l.b16 %v2475
  %v2480 = vunpack.c.l.b16 %v2476
  %v2481 = vpack.c.b16 %v2480, %v2479
  %v2484 = vsel %vm427, %v2473, 0
  %2486 = vmatprep.subr.bf16.mxu0 0
  %2487 = vmatpush1.bf16.msra.mxu0 0
  %2488 = vmatprep.subr.bf16.mxu0 0
  %2489 = vmatpush1.bf16.msra.mxu0 0
  %2490 = vmatprep.subr.bf16.mxu0 0
  %2491 = vmatpush1.bf16.msra.mxu0 0
  %2492 = vmatprep.subr.bf16.mxu0 0
  %2493 = vmatpush1.bf16.msra.mxu0 0
  %2494 = vmatprep.subr.bf16.mxu0 0
  %2495 = vmatpush1.bf16.msra.mxu0 0
  %2496 = vmatprep.subr.bf16.mxu0 0
  %2497 = vmatpush1.bf16.msra.mxu0 0
  %2498 = vmatprep.subr.bf16.mxu0 0
  %2499 = vmatpush1.bf16.msra.mxu0 0
  %2500 = vmatprep.subr.bf16.mxu0 0
  %2501 = vmatpush1.bf16.msra.mxu0 %v2481
  %2502 = vmatprep.subr.bf16.mxu0 0
  %2503 = vmatpush2.bf16.msra.mxu0 0
  %2504 = vmatprep.subr.bf16.mxu0 0
  %2505 = vmatpush2.bf16.msra.mxu0 0
  %2506 = vmatprep.subr.bf16.mxu0 0
  %2507 = vmatpush2.bf16.msra.mxu0 0
  %2508 = vmatprep.subr.bf16.mxu0 0
  %2509 = vmatpush2.bf16.msra.mxu0 0
  %2510 = vmatprep.subr.bf16.mxu0 0
  %2511 = vmatpush2.bf16.msra.mxu0 0
  %2512 = vmatprep.subr.bf16.mxu0 0
  %2513 = vmatpush2.bf16.msra.mxu0 0
  %2514 = vmatprep.subr.bf16.mxu0 0
  %2515 = vmatpush2.bf16.msra.mxu0 0
  %2516 = vmatprep.subr.bf16.mxu0 0
  %2517 = vmatpush2.bf16.msra.mxu0 0
  %2518 = vmatprep.mubr.bf16.mxu0 0
  %2519 = vmatmul.mubr.bf16.gmra.mxu0 %v2484
  %v2520 = vpop.f32.mrf.mxu0
  %v2521 = vadd.f32 0.0, %v2520
  %v2522 = vpop.f32.mrf.mxu0
  %v2523 = vpop.f32.mrf.mxu0
  %v2524 = vpop.f32.mrf.mxu0
  %2525 = vdwg.mxu0
  %v2526 = vadd.f32 %v2474, %v2521
  %v2527 = vld [vmem:[#allocation3 + $0x7] sm:$0x1]
  %v2528 = vld [vmem:[%s921] sm:$0xf]
  %v2529 = vld [vmem:[%s921 + $0x4] sm:$0xf]
  %v2532 = vunpack.c.l.b16 %v2528
  %v2533 = vunpack.c.l.b16 %v2529
  %v2534 = vpack.c.b16 %v2533, %v2532
  %2536 = vmatprep.subr.bf16.mxu0 0
  %2537 = vmatpush1.bf16.msra.mxu0 0
  %2538 = vmatprep.subr.bf16.mxu0 0
  %2539 = vmatpush1.bf16.msra.mxu0 0
  %2540 = vmatprep.subr.bf16.mxu0 0
  %2541 = vmatpush1.bf16.msra.mxu0 0
  %2542 = vmatprep.subr.bf16.mxu0 0
  %2543 = vmatpush1.bf16.msra.mxu0 0
  %2544 = vmatprep.subr.bf16.mxu0 0
  %2545 = vmatpush1.bf16.msra.mxu0 0
  %2546 = vmatprep.subr.bf16.mxu0 0
  %2547 = vmatpush1.bf16.msra.mxu0 0
  %2548 = vmatprep.subr.bf16.mxu0 0
  %2549 = vmatpush1.bf16.msra.mxu0 0
  %2550 = vmatprep.subr.bf16.mxu0 0
  %2551 = vmatpush1.bf16.msra.mxu0 %v2534
  %2552 = vmatprep.subr.bf16.mxu0 0
  %2553 = vmatpush2.bf16.msra.mxu0 0
  %2554 = vmatprep.subr.bf16.mxu0 0
  %2555 = vmatpush2.bf16.msra.mxu0 0
  %2556 = vmatprep.subr.bf16.mxu0 0
  %2557 = vmatpush2.bf16.msra.mxu0 0
  %2558 = vmatprep.subr.bf16.mxu0 0
  %2559 = vmatpush2.bf16.msra.mxu0 0
  %2560 = vmatprep.subr.bf16.mxu0 0
  %2561 = vmatpush2.bf16.msra.mxu0 0
  %2562 = vmatprep.subr.bf16.mxu0 0
  %2563 = vmatpush2.bf16.msra.mxu0 0
  %2564 = vmatprep.subr.bf16.mxu0 0
  %2565 = vmatpush2.bf16.msra.mxu0 0
  %2566 = vmatprep.subr.bf16.mxu0 0
  %2567 = vmatpush2.bf16.msra.mxu0 0
  %2568 = vmatprep.mubr.bf16.mxu0 0
  %2569 = vmatmul.mubr.bf16.gmra.mxu0 %v2484
  %v2570 = vpop.f32.mrf.mxu0
  %v2571 = vadd.f32 0.0, %v2570
  %v2572 = vpop.f32.mrf.mxu0
  %v2573 = vpop.f32.mrf.mxu0
  %v2574 = vpop.f32.mrf.mxu0
  %2575 = vdwg.mxu0
  %v2576 = vadd.f32 %v2527, %v2571
  %v2577 = vld [vmem:[#allocation4 + $0x7] sm:$0x1]
  %v2578 = vld [vmem:[%s972] sm:$0xf]
  %v2579 = vld [vmem:[%s972 + $0x4] sm:$0xf]
  %v2582 = vunpack.c.l.b16 %v2578
  %v2583 = vunpack.c.l.b16 %v2579
  %v2584 = vpack.c.b16 %v2583, %v2582
  %2586 = vmatprep.subr.bf16.mxu0 0
  %2587 = vmatpush1.bf16.msra.mxu0 0
  %2588 = vmatprep.subr.bf16.mxu0 0
  %2589 = vmatpush1.bf16.msra.mxu0 0
  %2590 = vmatprep.subr.bf16.mxu0 0
  %2591 = vmatpush1.bf16.msra.mxu0 0
  %2592 = vmatprep.subr.bf16.mxu0 0
  %2593 = vmatpush1.bf16.msra.mxu0 0
  %2594 = vmatprep.subr.bf16.mxu0 0
  %2595 = vmatpush1.bf16.msra.mxu0 0
  %2596 = vmatprep.subr.bf16.mxu0 0
  %2597 = vmatpush1.bf16.msra.mxu0 0
  %2598 = vmatprep.subr.bf16.mxu0 0
  %2599 = vmatpush1.bf16.msra.mxu0 0
  %2600 = vmatprep.subr.bf16.mxu0 0
  %2601 = vmatpush1.bf16.msra.mxu0 %v2584
  %2602 = vmatprep.subr.bf16.mxu0 0
  %2603 = vmatpush2.bf16.msra.mxu0 0
  %2604 = vmatprep.subr.bf16.mxu0 0
  %2605 = vmatpush2.bf16.msra.mxu0 0
  %2606 = vmatprep.subr.bf16.mxu0 0
  %2607 = vmatpush2.bf16.msra.mxu0 0
  %2608 = vmatprep.subr.bf16.mxu0 0
  %2609 = vmatpush2.bf16.msra.mxu0 0
  %2610 = vmatprep.subr.bf16.mxu0 0
  %2611 = vmatpush2.bf16.msra.mxu0 0
  %2612 = vmatprep.subr.bf16.mxu0 0
  %2613 = vmatpush2.bf16.msra.mxu0 0
  %2614 = vmatprep.subr.bf16.mxu0 0
  %2615 = vmatpush2.bf16.msra.mxu0 0
  %2616 = vmatprep.subr.bf16.mxu0 0
  %2617 = vmatpush2.bf16.msra.mxu0 0
  %2618 = vmatprep.mubr.bf16.mxu0 0
  %2619 = vmatmul.mubr.bf16.gmra.mxu0 %v2484
  %v2620 = vpop.f32.mrf.mxu0
  %v2621 = vadd.f32 0.0, %v2620
  %v2622 = vpop.f32.mrf.mxu0
  %v2623 = vpop.f32.mrf.mxu0
  %v2624 = vpop.f32.mrf.mxu0
  %2625 = vdwg.mxu0
  %v2626 = vadd.f32 %v2577, %v2621
  %v2627 = vld [vmem:[#allocation5 + $0x7] sm:$0x1]
  %v2628 = vld [vmem:[%s1023] sm:$0xf]
  %v2629 = vld [vmem:[%s1023 + $0x4] sm:$0xf]
  %v2632 = vunpack.c.l.b16 %v2628
  %v2633 = vunpack.c.l.b16 %v2629
  %v2634 = vpack.c.b16 %v2633, %v2632
  %2636 = vmatprep.subr.bf16.mxu0 0
  %2637 = vmatpush1.bf16.msra.mxu0 0
  %2638 = vmatprep.subr.bf16.mxu0 0
  %2639 = vmatpush1.bf16.msra.mxu0 0
  %2640 = vmatprep.subr.bf16.mxu0 0
  %2641 = vmatpush1.bf16.msra.mxu0 0
  %2642 = vmatprep.subr.bf16.mxu0 0
  %2643 = vmatpush1.bf16.msra.mxu0 0
  %2644 = vmatprep.subr.bf16.mxu0 0
  %2645 = vmatpush1.bf16.msra.mxu0 0
  %2646 = vmatprep.subr.bf16.mxu0 0
  %2647 = vmatpush1.bf16.msra.mxu0 0
  %2648 = vmatprep.subr.bf16.mxu0 0
  %2649 = vmatpush1.bf16.msra.mxu0 0
  %2650 = vmatprep.subr.bf16.mxu0 0
  %2651 = vmatpush1.bf16.msra.mxu0 %v2634
  %2652 = vmatprep.subr.bf16.mxu0 0
  %2653 = vmatpush2.bf16.msra.mxu0 0
  %2654 = vmatprep.subr.bf16.mxu0 0
  %2655 = vmatpush2.bf16.msra.mxu0 0
  %2656 = vmatprep.subr.bf16.mxu0 0
  %2657 = vmatpush2.bf16.msra.mxu0 0
  %2658 = vmatprep.subr.bf16.mxu0 0
  %2659 = vmatpush2.bf16.msra.mxu0 0
  %2660 = vmatprep.subr.bf16.mxu0 0
  %2661 = vmatpush2.bf16.msra.mxu0 0
  %2662 = vmatprep.subr.bf16.mxu0 0
  %2663 = vmatpush2.bf16.msra.mxu0 0
  %2664 = vmatprep.subr.bf16.mxu0 0
  %2665 = vmatpush2.bf16.msra.mxu0 0
  %2666 = vmatprep.subr.bf16.mxu0 0
  %2667 = vmatpush2.bf16.msra.mxu0 0
  %2668 = vmatprep.mubr.bf16.mxu0 0
  %2669 = vmatmul.mubr.bf16.gmra.mxu0 %v2484
  %v2670 = vpop.f32.mrf.mxu0
  %v2671 = vadd.f32 0.0, %v2670
  %v2672 = vpop.f32.mrf.mxu0
  %v2673 = vpop.f32.mrf.mxu0
  %v2674 = vpop.f32.mrf.mxu0
  %2675 = vdwg.mxu0
  %v2676 = vadd.f32 %v2627, %v2671
  %v2677 = vxor.u32 %v2526, 2147483648
  %v2678 = vmul.f32 %v2677, 1.442695
  %v2679 = vpow.pop %v2678
  %v2680 = vadd.f32 %v2679, 1.0
  %v2681 = vrcp.pop %v2680
  %v2682 = vmul.f32 1.0, %v2681
  %v2683 = vxor.u32 %v2576, 2147483648
  %v2684 = vmul.f32 %v2683, 1.442695
  %v2685 = vpow.pop %v2684
  %v2686 = vadd.f32 %v2685, 1.0
  %v2687 = vrcp.pop %v2686
  %v2688 = vmul.f32 1.0, %v2687
  %v2689 = vtanh.pop %v2626
  %v2690 = vxor.u32 %v2676, 2147483648
  %v2691 = vmul.f32 %v2690, 1.442695
  %v2692 = vpow.pop %v2691
  %v2693 = vadd.f32 %v2692, 1.0
  %v2694 = vrcp.pop %v2693
  %v2695 = vmul.f32 1.0, %v2694
  %v2696 = vmul.f32 %v2688, %v2469
  %v2697 = vmul.f32 %v2682, %v2689
  %v2698 = vadd.f32 %v2696, %v2697
  %v2699 = vtanh.pop %v2698
  %v2700 = vmul.f32 %v2695, %v2699
  %2701 = vst.msk [vmem:[#allocation6 + $0x7] sm:$0x1] %vm1097, %v2700
  %v2702 = vld [vmem:[#allocation6] sm:$0xff]
  %v2703 = vpack.c.bf16 %v2702, %v2702
  %v2704 = vld [vmem:[%s8] sm:$0xf]
  %v2705 = vld [vmem:[%s8 + $0x4] sm:$0xf]
  %v2706 = vld [vmem:[#allocation7] sm:$0x1]
  %v2708 = vlaneseq
  %v2709 = vshrl.u32 %v2708, 7
  %v2710 = vsub.s32 0, %v2709
  %v2711 = vrot.slane %v2706, %v2710
  %v2715 = vunpack.c.l.b16 %v2704
  %v2716 = vunpack.c.l.b16 %v2705
  %v2717 = vpack.c.b16 %v2716, %v2715
  %v2720 = vsel %vm427, %v2703, 0
  %2722 = vmatprep.subr.bf16.mxu0 0
  %2723 = vmatpush1.bf16.msra.mxu0 0
  %2724 = vmatprep.subr.bf16.mxu0 0
  %2725 = vmatpush1.bf16.msra.mxu0 0
  %2726 = vmatprep.subr.bf16.mxu0 0
  %2727 = vmatpush1.bf16.msra.mxu0 0
  %2728 = vmatprep.subr.bf16.mxu0 0
  %2729 = vmatpush1.bf16.msra.mxu0 0
  %2730 = vmatprep.subr.bf16.mxu0 0
  %2731 = vmatpush1.bf16.msra.mxu0 0
  %2732 = vmatprep.subr.bf16.mxu0 0
  %2733 = vmatpush1.bf16.msra.mxu0 0
  %2734 = vmatprep.subr.bf16.mxu0 0
  %2735 = vmatpush1.bf16.msra.mxu0 0
  %2736 = vmatprep.subr.bf16.mxu0 0
  %2737 = vmatpush1.bf16.msra.mxu0 %v2717
  %2738 = vmatprep.subr.bf16.mxu0 0
  %2739 = vmatpush2.bf16.msra.mxu0 0
  %2740 = vmatprep.subr.bf16.mxu0 0
  %2741 = vmatpush2.bf16.msra.mxu0 0
  %2742 = vmatprep.subr.bf16.mxu0 0
  %2743 = vmatpush2.bf16.msra.mxu0 0
  %2744 = vmatprep.subr.bf16.mxu0 0
  %2745 = vmatpush2.bf16.msra.mxu0 0
  %2746 = vmatprep.subr.bf16.mxu0 0
  %2747 = vmatpush2.bf16.msra.mxu0 0
  %2748 = vmatprep.subr.bf16.mxu0 0
  %2749 = vmatpush2.bf16.msra.mxu0 0
  %2750 = vmatprep.subr.bf16.mxu0 0
  %2751 = vmatpush2.bf16.msra.mxu0 0
  %2752 = vmatprep.subr.bf16.mxu0 0
  %2753 = vmatpush2.bf16.msra.mxu0 0
  %2754 = vmatprep.mubr.bf16.mxu0 0
  %2755 = vmatmul.mubr.bf16.gmra.mxu0 %v2720
  %v2756 = vpop.f32.mrf.mxu0
  %v2757 = vadd.f32 %v2711, %v2756
  %v2758 = vpop.f32.mrf.mxu0
  %v2759 = vpop.f32.mrf.mxu0
  %v2760 = vpop.f32.mrf.mxu0
  %2761 = vdwg.mxu0
  %vm2762 = vcmask 7168
  %2763 = vst.msk [vmem:[%s10] sm:$0xff] %vm2762, %v2757
  // Predicated region
  $region42: #{edge_gcn_lstm_forward.3} parent=0 // pred_check
    _
  $region43: #{edge_gcn_lstm_forward.3} parent=0 // pred_check_branch
    %2765 = sbr.rel (0) target = $region45
  $region44: #{edge_gcn_lstm_forward.3} parent=0 // pred_region
    _
  $region45: #{edge_gcn_lstm_forward.3} parent=0 // pred_fallthru
    _
  // Predicated region
  $region46: #{edge_gcn_lstm_forward.3} parent=0 // pred_check
    _
  $region47: #{edge_gcn_lstm_forward.3} parent=0 // pred_check_branch
    %2767 = sbr.rel (0) target = $region49
  $region48: #{edge_gcn_lstm_forward.3} parent=0 // pred_region
    _
  $region49: #{edge_gcn_lstm_forward.3} parent=0 // pred_fallthru
    _

</llo_original>
